<compile_context>
chip_gen: v7x
topology: tpu7x:2x2x1
jax: 0.10.0
libtpu: 0.0.40
codegen_flags: <defaults>
</compile_context>

<pallas_src>
import functools

import jax
import jax.numpy as jnp
from jax import lax
from jax.experimental import pallas as pl
from jax.experimental.pallas import tpu as pltpu


def _round_up(x, m):
    return (x + m - 1) // m * m


def _embedding_head_kernel(x_ref, acc0_ref, w1_ref, w2_ref, b2_ref,
                           w3_ref, b3_ref, o_ref, acc_ref,
                           *, H, W, Wp, D, n_k, eps):
    """One (batch image, Cin-chunk) grid step.

    x_ref   : (1, H+2, Wp, TK)  bf16/f32  zero-padded feature chunk (NHWC)
    acc0_ref: (1, H, Wp, D)     f32       conv1(y) + b1  (accumulator init)
    w1_ref  : (3, TK, 3*D)                3x3 taps, dx packed along out dim
    w2_ref  : (D, D), b2_ref: (1, D)      1x1 conv2
    w3_ref  : (D, D), b3_ref: (1, D)      1x1 eh_layer
    o_ref   : (1, H, W, D)      f32       L2-normalized embedding
    acc_ref : (H*Wp, D)         f32       VMEM accumulator (persists over k)
    """
    k = pl.program_id(1)
    M = H * Wp

    @pl.when(k == 0)
    def _init():
        acc_ref[...] = acc0_ref[0].reshape(M, D)

    xp = x_ref[0]                                     # (H+2, Wp, TK)
    for dy in range(3):
        # dy-shifted slab: slice along the untiled row axis only; the reshape
        # is layout preserving since Wp is a multiple of the sublane tile.
        slab = xp[dy:dy + H].reshape(M, -1)           # (M, TK)
        # One MXU call per dy covering all three dx taps: (M, TK) x (TK, 3D).
        r = jnp.dot(slab, w1_ref[dy],
                    preferred_element_type=jnp.float32)        # (M, 3D)
        contrib = r[:, :D]                                      # dx = 0
        for dx in (1, 2):
            # realign the dx column shift on the small (M, D) result slice:
            # rolled[m] = p[m + dx]  (wrapped rows land in discarded pad
            # columns only).  Lane slice at D-aligned offset, XLU roll.
            p = pltpu.roll(r[:, dx * D:(dx + 1) * D], M - dx, 0)
            contrib = contrib + p
        acc_ref[...] += contrib

    @pl.when(k == n_k - 1)
    def _finalize():
        h = jnp.maximum(acc_ref[...], 0.0)            # relu1, (M, D) f32
        h = jnp.dot(h.astype(w2_ref.dtype), w2_ref[...],
                    preferred_element_type=jnp.float32) + b2_ref[...]
        h = jnp.maximum(h, 0.0)                       # relu2
        e = jnp.dot(h.astype(w3_ref.dtype), w3_ref[...],
                    preferred_element_type=jnp.float32) + b3_ref[...]
        inv = lax.rsqrt(jnp.sum(e * e, axis=-1, keepdims=True) + eps)
        out = (e * inv).reshape(H, Wp, D)
        o_ref[0] = out[:, :W, :].astype(o_ref.dtype)


def bfvos_embedding_head(feat_nhwc, y_nhwc, params, *,
                         compute_dtype=jnp.bfloat16, tk=None, eps=1e-12):
    """feat_nhwc: (N,H,W,Cf) backbone features; y_nhwc: (N,H,W,2) guidance."""
    w1, b1, w2, b2, w3, b3 = params
    N, H, W, Cf = feat_nhwc.shape
    Cy = y_nhwc.shape[-1]
    D = w1.shape[-1]
    assert w1.shape[:3] == (3, 3, Cf + Cy)

    if tk is None:
        tk = min(512, _round_up(Cf, 128))
    tk = _round_up(tk, 128)
    n_k = max(1, -(-Cf // tk))           # ceil(Cf / tk)
    Ck = n_k * tk                        # channel-padded (MXU-aligned) Cin

    cdt = jnp.dtype(compute_dtype)
    itemsize = cdt.itemsize
    # Sublane tile of the compute dtype (8 for f32, 16 for bf16): keeps the
    # in-kernel (H, Wp, TK) -> (H*Wp, TK) flatten a no-copy view.
    sub = 8 * max(1, 4 // itemsize)
    Wp = _round_up(W + 2, sub)           # padded width

    # Split conv1 weights: feature channels go through the kernel; the tiny
    # 2-channel y contribution (+ conv1 bias) is computed here by XLA and used
    # to initialize the in-kernel accumulator (no 2050-channel concat in HBM).
    w1 = w1.astype(jnp.float32)
    w1_feat = w1[:, :, :Cf, :]
    w1_y = w1[:, :, Cf:, :]
    acc0 = lax.conv_general_dilated(
        y_nhwc.astype(jnp.float32), w1_y, window_strides=(1, 1),
        padding="SAME", dimension_numbers=("NHWC", "HWIO", "NHWC"))
    acc0 = acc0 + b1.reshape(1, 1, 1, D).astype(jnp.float32)
    acc0 = jnp.pad(acc0, ((0, 0), (0, 0), (0, Wp - W), (0, 0)))

    # One fused cast+pad pass over the features: 3x3 halo (1 top/left,
    # 1+extra bottom/right) and channel pad to the TK multiple.
    x = jnp.pad(feat_nhwc.astype(cdt),
                ((0, 0), (1, 1), (1, Wp - W - 1), (0, Ck - Cf)))

    # Pack the 3 dx taps of each dy row side by side along the output dim:
    # (3, 3, Ck, D) -> (3, Ck, 3*D).  One matmul per dy then covers all dx
    # taps and fills the 256-wide MXU when D == 128.
    w1_taps = jnp.pad(w1_feat, ((0, 0), (0, 0), (0, Ck - Cf), (0, 0)))
    w1_taps = jnp.transpose(w1_taps, (0, 2, 1, 3)).reshape(3, Ck, 3 * D)
    w1_taps = w1_taps.astype(cdt)
    w2c = w2.astype(cdt)
    w3c = w3.astype(cdt)
    b2_2d = b2.reshape(1, D).astype(jnp.float32)
    b3_2d = b3.reshape(1, D).astype(jnp.float32)

    kernel = functools.partial(_embedding_head_kernel,
                               H=H, W=W, Wp=Wp, D=D, n_k=n_k, eps=eps)

    # VMEM budget: double-buffered x / w1 / acc0 / out blocks + resident
    # accumulator + the (M, 3D) f32 matmul result.  Capped at 64 MiB (v7x).
    M = H * Wp
    x_blk = (H + 2) * Wp * tk * itemsize
    w1_blk = 3 * tk * 3 * D * itemsize
    small = 2 * D * D * itemsize + 4 * D * 4
    need = (2 * x_blk + 2 * w1_blk + 2 * M * D * 4 + 2 * H * W * D * 4
            + M * D * 4 + M * 3 * D * 4 + 2 * small)
    vmem_limit = int(min(max(2 * need, 32 * 1024 * 1024), 64 * 1024 * 1024))

    cost = pl.CostEstimate(
        flops=int(2 * N * H * W * D * (9 * (Cf + Cy) + 2 * D)),
        transcendentals=int(N * H * W),
        bytes_accessed=int(x.size * itemsize + w1_taps.size * itemsize
                           + acc0.size * 4 + w2.size * itemsize
                           + w3.size * itemsize + N * H * W * D * 4))

    grid_spec = pltpu.PrefetchScalarGridSpec(
        num_scalar_prefetch=0,
        grid=(N, n_k),
        in_specs=[
            pl.BlockSpec((1, H + 2, Wp, tk), lambda b, k: (b, 0, 0, k)),
            pl.BlockSpec((1, H, Wp, D), lambda b, k: (b, 0, 0, 0)),
            pl.BlockSpec((3, tk, 3 * D), lambda b, k: (0, k, 0)),
            pl.BlockSpec((D, D), lambda b, k: (0, 0)),
            pl.BlockSpec((1, D), lambda b, k: (0, 0)),
            pl.BlockSpec((D, D), lambda b, k: (0, 0)),
            pl.BlockSpec((1, D), lambda b, k: (0, 0)),
        ],
        out_specs=pl.BlockSpec((1, H, W, D), lambda b, k: (b, 0, 0, 0)),
        scratch_shapes=[pltpu.VMEM((M, D), jnp.float32)],
    )

    return pl.pallas_call(
        kernel,
        out_shape=jax.ShapeDtypeStruct((N, H, W, D), jnp.float32),
        grid_spec=grid_spec,
        compiler_params=pltpu.CompilerParams(
            dimension_semantics=("parallel", "arbitrary"),
            vmem_limit_bytes=vmem_limit),
        cost_estimate=cost,
    )(x, acc0, w1_taps, w2c, b2_2d, w3c, b3_2d)


def reference_forward(feat_nhwc, y_nhwc, params):
    """Plain-JAX mirror of the PyTorch forward (for validation)."""
    w1, b1, w2, b2, w3, b3 = params
    x = jnp.concatenate([feat_nhwc, y_nhwc], axis=-1)
    h = lax.conv_general_dilated(
        x, w1, window_strides=(1, 1), padding="SAME",
        dimension_numbers=("NHWC", "HWIO", "NHWC"))
    h = jax.nn.relu(h + b1)
    h = jax.nn.relu(jnp.einsum("nhwc,cd->nhwd", h, w2) + b2)
    e = jnp.einsum("nhwc,cd->nhwd", h, w3) + b3
    return e / jnp.sqrt(jnp.sum(e * e, axis=-1, keepdims=True))


def init_params(key, c_in, dims):
    """Deterministic synthetic init of the embedding-head parameters.

    PyTorch shapes: conv1 (D, 2050, 3, 3), conv2/eh (D, D, 1, 1); stored here
    as HWIO / (Cin, D) for the channels-last layout.
    """
    k1, k2, k3 = jax.random.split(key, 3)
    w1 = jax.random.normal(k1, (3, 3, c_in, dims), jnp.float32) * 0.05
    b1 = jnp.linspace(-0.1, 0.1, dims, dtype=jnp.float32)
    w2 = jax.random.normal(k2, (dims, dims), jnp.float32) * 0.05
    b2 = jnp.linspace(0.1, -0.1, dims, dtype=jnp.float32)
    w3 = jax.random.normal(k3, (dims, dims), jnp.float32) * 0.05
    b3 = jnp.zeros((dims,), jnp.float32) + 0.01
    return (w1, b1, w2, b2, w3, b3)


if __name__ == "__main__":
    # PyTorch: features (N, 2048, H, W), y (N, 2, H, W), D = 128.
    # Small stand-in shapes: 200 feature channels, 16x16 spatial, D = 128.
    N, H, W = 2, 16, 16
    CF, CY = 200, 2
    DIMS = 128

    key = jax.random.PRNGKey(0)
    kf, ky, kp = jax.random.split(key, 3)

    # PyTorch-layout (NCHW) inputs, permuted to the kernel's NHWC layout.
    feat_nchw = jax.random.normal(kf, (N, CF, H, W), jnp.float32)
    y_nchw = jax.random.normal(ky, (N, CY, H, W), jnp.float32)
    feat = jnp.transpose(feat_nchw, (0, 2, 3, 1))
    y = jnp.transpose(y_nchw, (0, 2, 3, 1))

    params = init_params(kp, CF + CY, DIMS)

    ref = jax.block_until_ready(reference_forward(feat, y, params))

    # f32 path; tk=128 so the Cin reduction spans 2 grid steps.
    out_f32 = jax.block_until_ready(
        bfvos_embedding_head(feat, y, params,
                             compute_dtype=jnp.float32, tk=128))
    assert out_f32.shape == (N, H, W, DIMS)
    err_f32 = float(jnp.max(jnp.abs(out_f32 - ref)))
    assert err_f32 < 2e-2, err_f32

    # bf16 path (production / perf config); looser tolerance.
    out_bf16 = jax.block_until_ready(
        bfvos_embedding_head(feat, y, params,
                             compute_dtype=jnp.bfloat16, tk=128))
    err_bf16 = float(jnp.max(jnp.abs(out_bf16 - ref)))
    assert err_bf16 < 1.2e-1, err_bf16

    print("KERNEL_OK")
</pallas_src>

<mosaic_0001>
module attributes {stable_mosaic.version = 11 : i64} {
  func.func @_embedding_head_kernel(%arg0: i32, %arg1: i32, %arg2: memref<1x18x24x128xf32, #tpu.memory_space<vmem>>, %arg3: memref<1x16x24x128xf32, #tpu.memory_space<vmem>>, %arg4: memref<3x128x384xf32, #tpu.memory_space<vmem>>, %arg5: memref<128x128xf32, #tpu.memory_space<vmem>>, %arg6: memref<1x128xf32, #tpu.memory_space<vmem>>, %arg7: memref<128x128xf32, #tpu.memory_space<vmem>>, %arg8: memref<1x128xf32, #tpu.memory_space<vmem>>, %arg9: memref<1x16x16x128xf32, #tpu.memory_space<vmem>>, %arg10: memref<384x128xf32, #tpu.memory_space<vmem>>) attributes {dimension_semantics = [#tpu.dimension_semantics<parallel>, #tpu.dimension_semantics<arbitrary>], iteration_bounds = array<i64: 2, 2>, scalar_prefetch = 0 : i64, scratch_operands = 1 : i64, tpu.core_type = #tpu.core_type<tc>, window_params = [{transform_indices = @transform_0, window_bounds = array<i64: 1, 18, 24, 128>}, {transform_indices = @transform_1, window_bounds = array<i64: 1, 16, 24, 128>}, {transform_indices = @transform_2, window_bounds = array<i64: 3, 128, 384>}, {pipeline_mode = #tpu.pipeline_mode<synchronous>, transform_indices = @transform_3, window_bounds = array<i64: 128, 128>}, {pipeline_mode = #tpu.pipeline_mode<synchronous>, transform_indices = @transform_4, window_bounds = array<i64: 1, 128>}, {pipeline_mode = #tpu.pipeline_mode<synchronous>, transform_indices = @transform_5, window_bounds = array<i64: 128, 128>}, {pipeline_mode = #tpu.pipeline_mode<synchronous>, transform_indices = @transform_6, window_bounds = array<i64: 1, 128>}, {transform_indices = @transform_7, window_bounds = array<i64: 1, 16, 16, 128>}]} {
    %c0_i32 = arith.constant 0 : i32
    %0 = arith.cmpi eq, %arg1, %c0_i32 : i32
    %1 = arith.extui %0 : i1 to i32
    %c0_i32_0 = arith.constant 0 : i32
    %2 = arith.cmpi ne, %1, %c0_i32_0 : i32
    scf.if %2 {
      %c0_30 = arith.constant 0 : index
      %c0_31 = arith.constant 0 : index
      %c0_32 = arith.constant 0 : index
      %c0_33 = arith.constant 0 : index
      %53 = vector.load %arg3[%c0_30, %c0_31, %c0_32, %c0_33] : memref<1x16x24x128xf32, #tpu.memory_space<vmem>>, vector<1x16x24x128xf32>
      %54 = vector.shape_cast %53 : vector<1x16x24x128xf32> to vector<16x24x128xf32>
      %55 = vector.shape_cast %54 : vector<16x24x128xf32> to vector<384x128xf32>
      %c0_34 = arith.constant 0 : index
      %c0_35 = arith.constant 0 : index
      %56 = vector.load %arg10[%c0_34, %c0_35] : memref<384x128xf32, #tpu.memory_space<vmem>>, vector<384x128xf32>
      tpu.vector_store %arg10[%c0_34, %c0_35], %55 {strides = array<i32>} : memref<384x128xf32, #tpu.memory_space<vmem>>, vector<384x128xf32>,
    } else {
    }
    %c0 = arith.constant 0 : index
    %c0_1 = arith.constant 0 : index
    %c0_2 = arith.constant 0 : index
    %c0_3 = arith.constant 0 : index
    %3 = vector.load %arg2[%c0, %c0_1, %c0_2, %c0_3] : memref<1x18x24x128xf32, #tpu.memory_space<vmem>>, vector<1x18x24x128xf32>
    %4 = vector.shape_cast %3 : vector<1x18x24x128xf32> to vector<18x24x128xf32>
    %5 = vector.extract_strided_slice %4 {offsets = [0, 0, 0], sizes = [16, 24, 128], strides = [1, 1, 1]} : vector<18x24x128xf32> to vector<16x24x128xf32>
    %6 = vector.shape_cast %5 : vector<16x24x128xf32> to vector<384x128xf32>
    %c0_4 = arith.constant 0 : index
    %c0_5 = arith.constant 0 : index
    %c0_6 = arith.constant 0 : index
    %7 = vector.load %arg4[%c0_4, %c0_5, %c0_6] : memref<3x128x384xf32, #tpu.memory_space<vmem>>, vector<1x128x384xf32>
    %8 = vector.shape_cast %7 : vector<1x128x384xf32> to vector<128x384xf32>
    %cst = arith.constant dense<0.000000e+00> : vector<384x384xf32>
    %9 = tpu.matmul %6, %8, %cst {dimension_numbers = #tpu.dot_dimension_numbers<[1], [0], [0], [1], [0, 0, 1, 1], [], []>} : vector<384x128xf32>, vector<128x384xf32>, vector<384x384xf32> -> vector<384x384xf32>
    %10 = vector.extract_strided_slice %9 {offsets = [0, 0], sizes = [384, 128], strides = [1, 1]} : vector<384x384xf32> to vector<384x128xf32>
    %11 = vector.extract_strided_slice %9 {offsets = [0, 128], sizes = [384, 128], strides = [1, 1]} : vector<384x384xf32> to vector<384x128xf32>
    %c383_i32 = arith.constant 383 : i32
    %12 = tpu.dynamic_rotate %11 by %c383_i32 dim 0 : vector<384x128xf32>, i32 -> vector<384x128xf32>
    %13 = arith.addf %10, %12 : vector<384x128xf32>
    %14 = vector.extract_strided_slice %9 {offsets = [0, 256], sizes = [384, 128], strides = [1, 1]} : vector<384x384xf32> to vector<384x128xf32>
    %c382_i32 = arith.constant 382 : i32
    %15 = tpu.dynamic_rotate %14 by %c382_i32 dim 0 : vector<384x128xf32>, i32 -> vector<384x128xf32>
    %16 = arith.addf %13, %15 : vector<384x128xf32>
    %c0_7 = arith.constant 0 : index
    %c0_8 = arith.constant 0 : index
    %17 = vector.load %arg10[%c0_7, %c0_8] : memref<384x128xf32, #tpu.memory_space<vmem>>, vector<384x128xf32>
    %18 = arith.addf %17, %16 : vector<384x128xf32>
    %c0_9 = arith.constant 0 : index
    %c0_10 = arith.constant 0 : index
    %19 = vector.load %arg10[%c0_9, %c0_10] : memref<384x128xf32, #tpu.memory_space<vmem>>, vector<384x128xf32>
    tpu.vector_store %arg10[%c0_9, %c0_10], %18 {strides = array<i32>} : memref<384x128xf32, #tpu.memory_space<vmem>>, vector<384x128xf32>,
    %20 = vector.extract_strided_slice %4 {offsets = [1, 0, 0], sizes = [16, 24, 128], strides = [1, 1, 1]} : vector<18x24x128xf32> to vector<16x24x128xf32>
    %21 = vector.shape_cast %20 : vector<16x24x128xf32> to vector<384x128xf32>
    %c1 = arith.constant 1 : index
    %c0_11 = arith.constant 0 : index
    %c0_12 = arith.constant 0 : index
    %22 = vector.load %arg4[%c1, %c0_11, %c0_12] : memref<3x128x384xf32, #tpu.memory_space<vmem>>, vector<1x128x384xf32>
    %23 = vector.shape_cast %22 : vector<1x128x384xf32> to vector<128x384xf32>
    %cst_13 = arith.constant dense<0.000000e+00> : vector<384x384xf32>
    %24 = tpu.matmul %21, %23, %cst_13 {dimension_numbers = #tpu.dot_dimension_numbers<[1], [0], [0], [1], [0, 0, 1, 1], [], []>} : vector<384x128xf32>, vector<128x384xf32>, vector<384x384xf32> -> vector<384x384xf32>
    %25 = vector.extract_strided_slice %24 {offsets = [0, 0], sizes = [384, 128], strides = [1, 1]} : vector<384x384xf32> to vector<384x128xf32>
    %26 = vector.extract_strided_slice %24 {offsets = [0, 128], sizes = [384, 128], strides = [1, 1]} : vector<384x384xf32> to vector<384x128xf32>
    %c383_i32_14 = arith.constant 383 : i32
    %27 = tpu.dynamic_rotate %26 by %c383_i32_14 dim 0 : vector<384x128xf32>, i32 -> vector<384x128xf32>
    %28 = arith.addf %25, %27 : vector<384x128xf32>
    %29 = vector.extract_strided_slice %24 {offsets = [0, 256], sizes = [384, 128], strides = [1, 1]} : vector<384x384xf32> to vector<384x128xf32>
    %c382_i32_15 = arith.constant 382 : i32
    %30 = tpu.dynamic_rotate %29 by %c382_i32_15 dim 0 : vector<384x128xf32>, i32 -> vector<384x128xf32>
    %31 = arith.addf %28, %30 : vector<384x128xf32>
    %c0_16 = arith.constant 0 : index
    %c0_17 = arith.constant 0 : index
    %32 = vector.load %arg10[%c0_16, %c0_17] : memref<384x128xf32, #tpu.memory_space<vmem>>, vector<384x128xf32>
    %33 = arith.addf %32, %31 : vector<384x128xf32>
    %c0_18 = arith.constant 0 : index
    %c0_19 = arith.constant 0 : index
    %34 = vector.load %arg10[%c0_18, %c0_19] : memref<384x128xf32, #tpu.memory_space<vmem>>, vector<384x128xf32>
    tpu.vector_store %arg10[%c0_18, %c0_19], %33 {strides = array<i32>} : memref<384x128xf32, #tpu.memory_space<vmem>>, vector<384x128xf32>,
    %35 = vector.extract_strided_slice %4 {offsets = [2, 0, 0], sizes = [16, 24, 128], strides = [1, 1, 1]} : vector<18x24x128xf32> to vector<16x24x128xf32>
    %36 = vector.shape_cast %35 : vector<16x24x128xf32> to vector<384x128xf32>
    %c2 = arith.constant 2 : index
    %c0_20 = arith.constant 0 : index
    %c0_21 = arith.constant 0 : index
    %37 = vector.load %arg4[%c2, %c0_20, %c0_21] : memref<3x128x384xf32, #tpu.memory_space<vmem>>, vector<1x128x384xf32>
    %38 = vector.shape_cast %37 : vector<1x128x384xf32> to vector<128x384xf32>
    %cst_22 = arith.constant dense<0.000000e+00> : vector<384x384xf32>
    %39 = tpu.matmul %36, %38, %cst_22 {dimension_numbers = #tpu.dot_dimension_numbers<[1], [0], [0], [1], [0, 0, 1, 1], [], []>} : vector<384x128xf32>, vector<128x384xf32>, vector<384x384xf32> -> vector<384x384xf32>
    %40 = vector.extract_strided_slice %39 {offsets = [0, 0], sizes = [384, 128], strides = [1, 1]} : vector<384x384xf32> to vector<384x128xf32>
    %41 = vector.extract_strided_slice %39 {offsets = [0, 128], sizes = [384, 128], strides = [1, 1]} : vector<384x384xf32> to vector<384x128xf32>
    %c383_i32_23 = arith.constant 383 : i32
    %42 = tpu.dynamic_rotate %41 by %c383_i32_23 dim 0 : vector<384x128xf32>, i32 -> vector<384x128xf32>
    %43 = arith.addf %40, %42 : vector<384x128xf32>
    %44 = vector.extract_strided_slice %39 {offsets = [0, 256], sizes = [384, 128], strides = [1, 1]} : vector<384x384xf32> to vector<384x128xf32>
    %c382_i32_24 = arith.constant 382 : i32
    %45 = tpu.dynamic_rotate %44 by %c382_i32_24 dim 0 : vector<384x128xf32>, i32 -> vector<384x128xf32>
    %46 = arith.addf %43, %45 : vector<384x128xf32>
    %c0_25 = arith.constant 0 : index
    %c0_26 = arith.constant 0 : index
    %47 = vector.load %arg10[%c0_25, %c0_26] : memref<384x128xf32, #tpu.memory_space<vmem>>, vector<384x128xf32>
    %48 = arith.addf %47, %46 : vector<384x128xf32>
    %c0_27 = arith.constant 0 : index
    %c0_28 = arith.constant 0 : index
    %49 = vector.load %arg10[%c0_27, %c0_28] : memref<384x128xf32, #tpu.memory_space<vmem>>, vector<384x128xf32>
    tpu.vector_store %arg10[%c0_27, %c0_28], %48 {strides = array<i32>} : memref<384x128xf32, #tpu.memory_space<vmem>>, vector<384x128xf32>,
    %c1_i32 = arith.constant 1 : i32
    %50 = arith.cmpi eq, %arg1, %c1_i32 : i32
    %51 = arith.extui %50 : i1 to i32
    %c0_i32_29 = arith.constant 0 : i32
    %52 = arith.cmpi ne, %51, %c0_i32_29 : i32
    scf.if %52 {
      %c0_30 = arith.constant 0 : index
      %c0_31 = arith.constant 0 : index
      %53 = vector.load %arg10[%c0_30, %c0_31] : memref<384x128xf32, #tpu.memory_space<vmem>>, vector<384x128xf32>
      %cst_32 = arith.constant 0.000000e+00 : f32
      %54 = vector.broadcast %cst_32 : f32 to vector<384x128xf32>
      %55 = arith.maximumf %53, %54 : vector<384x128xf32>
      %c0_33 = arith.constant 0 : index
      %c0_34 = arith.constant 0 : index
      %56 = vector.load %arg5[%c0_33, %c0_34] : memref<128x128xf32, #tpu.memory_space<vmem>>, vector<128x128xf32>
      %cst_35 = arith.constant dense<0.000000e+00> : vector<384x128xf32>
      %57 = tpu.matmul %55, %56, %cst_35 {dimension_numbers = #tpu.dot_dimension_numbers<[1], [0], [0], [1], [0, 0, 1, 1], [], []>} : vector<384x128xf32>, vector<128x128xf32>, vector<384x128xf32> -> vector<384x128xf32>
      %c0_36 = arith.constant 0 : index
      %c0_37 = arith.constant 0 : index
      %58 = vector.load %arg6[%c0_36, %c0_37] : memref<1x128xf32, #tpu.memory_space<vmem>>, vector<1x128xf32>
      %59 = vector.broadcast %58 : vector<1x128xf32> to vector<384x128xf32>
      %60 = arith.addf %57, %59 : vector<384x128xf32>
      %cst_38 = arith.constant 0.000000e+00 : f32
      %61 = vector.broadcast %cst_38 : f32 to vector<384x128xf32>
      %62 = arith.maximumf %60, %61 : vector<384x128xf32>
      %c0_39 = arith.constant 0 : index
      %c0_40 = arith.constant 0 : index
      %63 = vector.load %arg7[%c0_39, %c0_40] : memref<128x128xf32, #tpu.memory_space<vmem>>, vector<128x128xf32>
      %cst_41 = arith.constant dense<0.000000e+00> : vector<384x128xf32>
      %64 = tpu.matmul %62, %63, %cst_41 {dimension_numbers = #tpu.dot_dimension_numbers<[1], [0], [0], [1], [0, 0, 1, 1], [], []>} : vector<384x128xf32>, vector<128x128xf32>, vector<384x128xf32> -> vector<384x128xf32>
      %c0_42 = arith.constant 0 : index
      %c0_43 = arith.constant 0 : index
      %65 = vector.load %arg8[%c0_42, %c0_43] : memref<1x128xf32, #tpu.memory_space<vmem>>, vector<1x128xf32>
      %66 = vector.broadcast %65 : vector<1x128xf32> to vector<384x128xf32>
      %67 = arith.addf %64, %66 : vector<384x128xf32>
      %68 = arith.mulf %67, %67 : vector<384x128xf32>
      %cst_44 = arith.constant dense<0.000000e+00> : vector<384xf32>
      %69 = vector.multi_reduction <add>, %68, %cst_44 [1] : vector<384x128xf32> to vector<384xf32>
      %70 = vector.shape_cast %69 : vector<384xf32> to vector<384x1xf32>
      %cst_45 = arith.constant 9.99999996E-13 : f32
      %71 = vector.broadcast %cst_45 : f32 to vector<384x1xf32>
      %72 = arith.addf %70, %71 : vector<384x1xf32>
      %73 = math.rsqrt %72 : vector<384x1xf32>
      %74 = vector.broadcast %73 : vector<384x1xf32> to vector<384x128xf32>
      %75 = arith.mulf %67, %74 : vector<384x128xf32>
      %76 = vector.shape_cast %75 : vector<384x128xf32> to vector<16x24x128xf32>
      %77 = vector.extract_strided_slice %76 {offsets = [0, 0, 0], sizes = [16, 16, 128], strides = [1, 1, 1]} : vector<16x24x128xf32> to vector<16x16x128xf32>
      %c0_46 = arith.constant 0 : index
      %c0_47 = arith.constant 0 : index
      %c0_48 = arith.constant 0 : index
      %c0_49 = arith.constant 0 : index
      %78 = vector.load %arg9[%c0_46, %c0_47, %c0_48, %c0_49] : memref<1x16x16x128xf32, #tpu.memory_space<vmem>>, vector<1x16x16x128xf32>
      %79 = vector.shape_cast %78 : vector<1x16x16x128xf32> to vector<16x16x128xf32>
      %80 = vector.shape_cast %77 : vector<16x16x128xf32> to vector<1x16x16x128xf32>
      tpu.vector_store %arg9[%c0_46, %c0_47, %c0_48, %c0_49], %80 {strides = array<i32>} : memref<1x16x16x128xf32, #tpu.memory_space<vmem>>, vector<1x16x16x128xf32>,
    } else {
    }
    return
  }
  func.func @transform_0(%arg0: i32, %arg1: i32) -> (i32, i32, i32, i32) {
    %c0_i32 = arith.constant 0 : i32
    %c0_i32_0 = arith.constant 0 : i32
    %c0_i32_1 = arith.constant 0 : i32
    return %arg0, %c0_i32, %c0_i32_0, %arg1 : i32, i32, i32, i32
  }
  func.func @transform_1(%arg0: i32, %arg1: i32) -> (i32, i32, i32, i32) {
    %c0_i32 = arith.constant 0 : i32
    %c0_i32_0 = arith.constant 0 : i32
    %c0_i32_1 = arith.constant 0 : i32
    %c0_i32_2 = arith.constant 0 : i32
    return %arg0, %c0_i32, %c0_i32_0, %c0_i32_1 : i32, i32, i32, i32
  }
  func.func @transform_2(%arg0: i32, %arg1: i32) -> (i32, i32, i32) {
    %c0_i32 = arith.constant 0 : i32
    %c0_i32_0 = arith.constant 0 : i32
    %c0_i32_1 = arith.constant 0 : i32
    return %c0_i32, %arg1, %c0_i32_0 : i32, i32, i32
  }
  func.func @transform_3(%arg0: i32, %arg1: i32) -> (i32, i32) {
    %c0_i32 = arith.constant 0 : i32
    %c0_i32_0 = arith.constant 0 : i32
    %c0_i32_1 = arith.constant 0 : i32
    return %c0_i32, %c0_i32_0 : i32, i32
  }
  func.func @transform_4(%arg0: i32, %arg1: i32) -> (i32, i32) {
    %c0_i32 = arith.constant 0 : i32
    %c0_i32_0 = arith.constant 0 : i32
    %c0_i32_1 = arith.constant 0 : i32
    return %c0_i32, %c0_i32_0 : i32, i32
  }
  func.func @transform_5(%arg0: i32, %arg1: i32) -> (i32, i32) {
    %c0_i32 = arith.constant 0 : i32
    %c0_i32_0 = arith.constant 0 : i32
    %c0_i32_1 = arith.constant 0 : i32
    return %c0_i32, %c0_i32_0 : i32, i32
  }
  func.func @transform_6(%arg0: i32, %arg1: i32) -> (i32, i32) {
    %c0_i32 = arith.constant 0 : i32
    %c0_i32_0 = arith.constant 0 : i32
    %c0_i32_1 = arith.constant 0 : i32
    return %c0_i32, %c0_i32_0 : i32, i32
  }
  func.func @transform_7(%arg0: i32, %arg1: i32) -> (i32, i32, i32, i32) {
    %c0_i32 = arith.constant 0 : i32
    %c0_i32_0 = arith.constant 0 : i32
    %c0_i32_1 = arith.constant 0 : i32
    %c0_i32_2 = arith.constant 0 : i32
    return %arg0, %c0_i32, %c0_i32_0, %c0_i32_1 : i32, i32, i32, i32
  }
}

</mosaic_0001>

<llo_original>
// kernel: tpu_custom_call.1
$region0: #{tpu_custom_call.1}
  #allocation0 [shape = 'u32[]', space=smem, size = 0x4, offset = 0x4, fixed_abs, tag = 'smem constant byte address 0x4 - core index']
  #allocation1 [shape = 'u32[144,128]{1,0:T(1,128)}', space=vmem, size = 0x12000, scoped, tag = 'internal scratch']
  #allocation2 [shape = 'f32[384,128]{1,0:T(8,128)}', space=vmem, size = 0x30000, scoped, tag = 'scratch operand']
  #allocation16 [shape = 's32[]', space=sflag, size = 0x4, offset = 0, fixed_abs, tag = 'sflag constant byte address 0x0 - dummy sync flag']
  %s0 = inlined_call_operand.hbm [shape: f32[2,18,24,256], index: 0, kind: input, shape index: {}]
  %s1 = inlined_call_operand.hbm [shape: f32[2,16,24,128], index: 1, kind: input, shape index: {}]
  %s2 = inlined_call_operand.hbm [shape: f32[3,256,384], index: 2, kind: input, shape index: {}]
  %s3 = inlined_call_operand.hbm [shape: f32[128,128], index: 3, kind: input, shape index: {}]
  %s4 = inlined_call_operand.hbm [shape: f32[1,128], index: 4, kind: input, shape index: {}]
  %s5 = inlined_call_operand.hbm [shape: f32[128,128], index: 5, kind: input, shape index: {}]
  %s6 = inlined_call_operand.hbm [shape: f32[1,128], index: 6, kind: input, shape index: {}]
  %s7 = inlined_call_operand.hbm [shape: f32[2,16,16,128], index: 7, kind: output, shape index: {}]
  %s8 = sld [smem:[#allocation0]]
  $region97: #{tpu_custom_call.1} parent=0
    _
  %s10 = ssub.s32 1, %s8
  %s11 = scalar_select 0, %s10, %s8
  $region1: #{tpu_custom_call.1} parent=0
    #allocation3 [shape = 'u8[442368]{0}', space=vmem, size = 0x6c000, scoped, tag = 'input window, operand 0']
    #allocation4 [shape = 's32[2]{0}', space=sflag, size = 0x8, scoped, tag = 'scoped memory for tpu_custom_call.1']
    #allocation5 [shape = 's32[2]{0}', space=sflag, size = 0x8, scoped, tag = 'scoped memory for tpu_custom_call.1']
    #allocation6 [shape = 'u8[393216]{0}', space=vmem, size = 0x60000, scoped, tag = 'input window, operand 1']
    #allocation7 [shape = 's32[2]{0}', space=sflag, size = 0x8, scoped, tag = 'scoped memory for tpu_custom_call.1']
    #allocation8 [shape = 'u8[1179648]{0}', space=vmem, size = 0x120000, scoped, tag = 'input window, operand 2']
    #allocation9 [shape = 'u8[65536]{0}', space=vmem, size = 0x10000, scoped, tag = 'input window, operand 3, single buffered']
    #allocation10 [shape = 's32[1]{0}', space=sflag, size = 0x4, scoped, tag = 'scoped memory for tpu_custom_call.1']
    #allocation11 [shape = 'u8[512]{0}', space=vmem, size = 0x400, scoped, tag = 'input window, operand 4, single buffered']
    #allocation12 [shape = 'u8[65536]{0}', space=vmem, size = 0x10000, scoped, tag = 'input window, operand 5, single buffered']
    #allocation13 [shape = 's32[1]{0}', space=sflag, size = 0x4, scoped, tag = 'scoped memory for tpu_custom_call.1']
    #allocation14 [shape = 'u8[512]{0}', space=vmem, size = 0x400, scoped, tag = 'input window, operand 6, single buffered']
    #allocation15 [shape = 'u8[262144]{0}', space=vmem, size = 0x40000, scoped, tag = 'output window, operand 0']
    %12 = vsyncpa [#allocation4], 0
    %s13 = scalar_lea.sflag [#allocation4], 1
    %14 = vsyncpa %s13, 0
    %15 = vsyncpa [#allocation7], 0
    %s16 = scalar_lea.sflag [#allocation7], 1
    %17 = vsyncpa %s16, 0
    %18 = vsyncpa [#allocation10], 0
    %19 = vsyncpa [#allocation13], 0
    %20 = vsyncpa [#allocation5], 0
    %s21 = scalar_lea.sflag [#allocation5], 1
    %22 = vsyncpa %s21, 0
    loop: start=0, step=1, limit=6
    $region2: #{tpu_custom_call.1} parent=1 // loop_pre_header
      _
    $region3: #{tpu_custom_call.1} parent=1 // loop_header
      %s24 = sphi 0, %s28
      %p25 = scmp.ge.s32.totalorder %s24, 6
      %s31 = sphi 0, %s43
      %s32 = sphi 0, %s39
      %s33 = sphi 0, %s31
      %s34 = sphi 0, %s32
      %s35 = sphi 0, %s33
      %s36 = sphi 0, %s34
      %s48 = sphi 0, %s50
      %s51 = sphi 0, %s48
      %s52 = sphi 0, %s51
      %s68 = sphi 0, %s52
      %s74 = sphi 0, %s76
      %s77 = sphi 0, %s74
      %s78 = sphi 0, %s77
      %s94 = sphi 0, %s78
      %s100 = sphi 0, %s102
      %s103 = sphi 0, %s100
      %s104 = sphi 0, %s103
      %s120 = sphi 0, %s104
      %s124 = sphi 0, %s124
      %s126 = sphi 0, %s124
      %s127 = sphi 0, %s126
      %s141 = sphi 0, %s127
      %s145 = sphi 0, %s145
      %s147 = sphi 0, %s145
      %s148 = sphi 0, %s147
      %s162 = sphi 0, %s148
      %s166 = sphi 0, %s166
      %s168 = sphi 0, %s166
      %s169 = sphi 0, %s168
      %s183 = sphi 0, %s169
      %s187 = sphi 0, %s187
      %s189 = sphi 0, %s187
      %s190 = sphi 0, %s189
      %s204 = sphi 0, %s190
      %s210 = sphi 0, %s212
      %s213 = sphi 0, %s210
      %s214 = sphi 0, %s213
      %s230 = sphi 0, %s214
    $region4: #{tpu_custom_call.1} parent=1 // loop_header_branch
      %27 = sbr.rel (%p25) target = $region8
    $region5: #{tpu_custom_call.1} parent=1 // loop_body
      %s29 = ssub.s32 %s24, 1
      %s30 = ssub.s32 %s24, 2
      %s37 = sadd.s32 1, %s32
      %p38 = scmp.ge.s32.totalorder %s37, 2
      %s39 = scalar_select %p38, 0, %s37
      %s40 = sadd.s32 1, %s31
      %s41 = scalar_select %p38, %s40, %s31
      %p42 = scmp.ge.s32.totalorder %s41, 2
      %s43 = scalar_select %p42, 0, %s41
      %s44 = ssub.s32 %s31, %s43
      %s45 = ssub.s32 %s32, %s39
      %s46 = sor.u32 %s44, %s45
      %p47 = scmp.eq.s32.totalorder %s46, 0
      %s49 = sadd.s32 %s48, 1
      %s50 = scalar_select %p47, %s48, %s49
      %p53 = pneg %p47
      %p54 = scmp.eq.s32.totalorder %s24, 3
      %p55 = por %p53, %p54
      %p56 = scmp.ne.s32.totalorder %s48, %s51
      %p57 = scmp.eq.s32.totalorder %s24, 0
      %p58 = por %p56, %p57
      %p59 = scmp.ne.s32.totalorder %s48, %s51
      %p60 = scmp.eq.s32.totalorder %s29, 3
      %p61 = por %p59, %p60
      %p62 = scmp.ne.s32.totalorder %s51, %s52
      %p63 = scmp.eq.s32.totalorder %s29, 0
      %p64 = por %p62, %p63
      %p65 = scmp.ne.s32.totalorder %s51, %s52
      %p66 = scmp.eq.s32.totalorder %s30, 3
      %p67 = por %p65, %p66
      %p69 = scmp.ne.s32.totalorder %s52, %s68
      %p70 = scmp.eq.s32.totalorder %s30, 0
      %p71 = por %p69, %p70
      %s72 = ssub.s32 %s31, %s43
      %p73 = scmp.eq.s32.totalorder %s72, 0
      %s75 = sadd.s32 %s74, 1
      %s76 = scalar_select %p73, %s74, %s75
      %p79 = pneg %p73
      %p80 = scmp.eq.s32.totalorder %s24, 3
      %p81 = por %p79, %p80
      %p82 = scmp.ne.s32.totalorder %s74, %s77
      %p83 = scmp.eq.s32.totalorder %s24, 0
      %p84 = por %p82, %p83
      %p85 = scmp.ne.s32.totalorder %s74, %s77
      %p86 = scmp.eq.s32.totalorder %s29, 3
      %p87 = por %p85, %p86
      %p88 = scmp.ne.s32.totalorder %s77, %s78
      %p89 = scmp.eq.s32.totalorder %s29, 0
      %p90 = por %p88, %p89
      %p91 = scmp.ne.s32.totalorder %s77, %s78
      %p92 = scmp.eq.s32.totalorder %s30, 3
      %p93 = por %p91, %p92
      %p95 = scmp.ne.s32.totalorder %s78, %s94
      %p96 = scmp.eq.s32.totalorder %s30, 0
      %p97 = por %p95, %p96
      %s98 = ssub.s32 %s32, %s39
      %p99 = scmp.eq.s32.totalorder %s98, 0
      %s101 = sadd.s32 %s100, 1
      %s102 = scalar_select %p99, %s100, %s101
      %p105 = pneg %p99
      %p106 = scmp.eq.s32.totalorder %s24, 3
      %p107 = por %p105, %p106
      %p108 = scmp.ne.s32.totalorder %s100, %s103
      %p109 = scmp.eq.s32.totalorder %s24, 0
      %p110 = por %p108, %p109
      %p111 = scmp.ne.s32.totalorder %s100, %s103
      %p112 = scmp.eq.s32.totalorder %s29, 3
      %p113 = por %p111, %p112
      %p114 = scmp.ne.s32.totalorder %s103, %s104
      %p115 = scmp.eq.s32.totalorder %s29, 0
      %p116 = por %p114, %p115
      %p117 = scmp.ne.s32.totalorder %s103, %s104
      %p118 = scmp.eq.s32.totalorder %s30, 3
      %p119 = por %p117, %p118
      %p121 = scmp.ne.s32.totalorder %s104, %s120
      %p122 = scmp.eq.s32.totalorder %s30, 0
      %p123 = por %p121, %p122
      %s125 = sadd.s32 %s124, 1
      %p128 = scmp.eq.s32.totalorder %s24, 3
      %p129 = scmp.ne.s32.totalorder %s124, %s126
      %p130 = scmp.eq.s32.totalorder %s24, 0
      %p131 = por %p129, %p130
      %p132 = scmp.ne.s32.totalorder %s124, %s126
      %p133 = scmp.eq.s32.totalorder %s29, 3
      %p134 = por %p132, %p133
      %p135 = scmp.ne.s32.totalorder %s126, %s127
      %p136 = scmp.eq.s32.totalorder %s29, 0
      %p137 = por %p135, %p136
      %p138 = scmp.ne.s32.totalorder %s126, %s127
      %p139 = scmp.eq.s32.totalorder %s30, 3
      %p140 = por %p138, %p139
      %p142 = scmp.ne.s32.totalorder %s127, %s141
      %p143 = scmp.eq.s32.totalorder %s30, 0
      %p144 = por %p142, %p143
      %s146 = sadd.s32 %s145, 1
      %p149 = scmp.eq.s32.totalorder %s24, 3
      %p150 = scmp.ne.s32.totalorder %s145, %s147
      %p151 = scmp.eq.s32.totalorder %s24, 0
      %p152 = por %p150, %p151
      %p153 = scmp.ne.s32.totalorder %s145, %s147
      %p154 = scmp.eq.s32.totalorder %s29, 3
      %p155 = por %p153, %p154
      %p156 = scmp.ne.s32.totalorder %s147, %s148
      %p157 = scmp.eq.s32.totalorder %s29, 0
      %p158 = por %p156, %p157
      %p159 = scmp.ne.s32.totalorder %s147, %s148
      %p160 = scmp.eq.s32.totalorder %s30, 3
      %p161 = por %p159, %p160
      %p163 = scmp.ne.s32.totalorder %s148, %s162
      %p164 = scmp.eq.s32.totalorder %s30, 0
      %p165 = por %p163, %p164
      %s167 = sadd.s32 %s166, 1
      %p170 = scmp.eq.s32.totalorder %s24, 3
      %p171 = scmp.ne.s32.totalorder %s166, %s168
      %p172 = scmp.eq.s32.totalorder %s24, 0
      %p173 = por %p171, %p172
      %p174 = scmp.ne.s32.totalorder %s166, %s168
      %p175 = scmp.eq.s32.totalorder %s29, 3
      %p176 = por %p174, %p175
      %p177 = scmp.ne.s32.totalorder %s168, %s169
      %p178 = scmp.eq.s32.totalorder %s29, 0
      %p179 = por %p177, %p178
      %p180 = scmp.ne.s32.totalorder %s168, %s169
      %p181 = scmp.eq.s32.totalorder %s30, 3
      %p182 = por %p180, %p181
      %p184 = scmp.ne.s32.totalorder %s169, %s183
      %p185 = scmp.eq.s32.totalorder %s30, 0
      %p186 = por %p184, %p185
      %s188 = sadd.s32 %s187, 1
      %p191 = scmp.eq.s32.totalorder %s24, 3
      %p192 = scmp.ne.s32.totalorder %s187, %s189
      %p193 = scmp.eq.s32.totalorder %s24, 0
      %p194 = por %p192, %p193
      %p195 = scmp.ne.s32.totalorder %s187, %s189
      %p196 = scmp.eq.s32.totalorder %s29, 3
      %p197 = por %p195, %p196
      %p198 = scmp.ne.s32.totalorder %s189, %s190
      %p199 = scmp.eq.s32.totalorder %s29, 0
      %p200 = por %p198, %p199
      %p201 = scmp.ne.s32.totalorder %s189, %s190
      %p202 = scmp.eq.s32.totalorder %s30, 3
      %p203 = por %p201, %p202
      %p205 = scmp.ne.s32.totalorder %s190, %s204
      %p206 = scmp.eq.s32.totalorder %s30, 0
      %p207 = por %p205, %p206
      %s208 = ssub.s32 %s31, %s43
      %p209 = scmp.eq.s32.totalorder %s208, 0
      %s211 = sadd.s32 %s210, 1
      %s212 = scalar_select %p209, %s210, %s211
      %p215 = pneg %p209
      %p216 = scmp.eq.s32.totalorder %s24, 3
      %p217 = por %p215, %p216
      %p218 = scmp.ne.s32.totalorder %s210, %s213
      %p219 = scmp.eq.s32.totalorder %s24, 0
      %p220 = por %p218, %p219
      %p221 = scmp.ne.s32.totalorder %s210, %s213
      %p222 = scmp.eq.s32.totalorder %s29, 3
      %p223 = por %p221, %p222
      %p224 = scmp.ne.s32.totalorder %s213, %s214
      %p225 = scmp.eq.s32.totalorder %s29, 0
      %p226 = por %p224, %p225
      %p227 = scmp.ne.s32.totalorder %s213, %s214
      %p228 = scmp.eq.s32.totalorder %s30, 3
      %p229 = por %p227, %p228
      %p231 = scmp.ne.s32.totalorder %s214, %s230
      %p232 = scmp.eq.s32.totalorder %s30, 0
      %p233 = por %p231, %p232
      %p234 = scmp.le.s32.totalorder 1, %s24
      %p235 = scmp.lt.s32.totalorder %s24, 5
      %p236 = pnand %p234, %p235
      %p237 = pneg %p236
      // Predicated region
      $region9: #{tpu_custom_call.1} parent=5 // pred_check
        _
      $region10: #{tpu_custom_call.1} parent=5 // pred_check_branch
        %239 = sbr.rel (%p236) target = $region12
      $region11: #{tpu_custom_call.1} parent=5 // pred_region
        %s240 = ssub.s32 %s24, 1
        // Predicated region
        $region13: #{tpu_custom_call.1} parent=11 // pred_check
          %p241 = pneg %p137
        $region14: #{tpu_custom_call.1} parent=11 // pred_check_branch
          %243 = sbr.rel (%p241) target = $region16
        $region15: #{tpu_custom_call.1} parent=11 // pred_region
          %s245 = ssub.s32 2048, 2048
          %246 = vsyncadd [#allocation10], %s245
          %s247 = sshll.u32 [#allocation9], 4
          %s248 = int_to_ptr.vmem [resolvable:$true] %s247
          %253 = dma.hbm_to_vmem [thread:$0]  %s3, 2048, %s248, [#allocation10], 128, 128, 8
        $region16: #{tpu_custom_call.1} parent=11 // pred_fallthru
          _
        // Predicated region
        $region17: #{tpu_custom_call.1} parent=11 // pred_check
          %p254 = pneg %p158
        $region18: #{tpu_custom_call.1} parent=11 // pred_check_branch
          %256 = sbr.rel (%p254) target = $region20
        $region19: #{tpu_custom_call.1} parent=11 // pred_region
          %s258 = ssub.s32 16, 16
          %259 = vsyncadd [#allocation10], %s258
          %s261 = sshll.u32 [#allocation11], 4
          %s262 = int_to_ptr.vmem [resolvable:$true] %s261
          %264 = dma.hbm_to_vmem [thread:$0]  %s4, 16, %s262, [#allocation10]
        $region20: #{tpu_custom_call.1} parent=11 // pred_fallthru
          _
        // Predicated region
        $region21: #{tpu_custom_call.1} parent=11 // pred_check
          %p265 = pneg %p179
        $region22: #{tpu_custom_call.1} parent=11 // pred_check_branch
          %267 = sbr.rel (%p265) target = $region24
        $region23: #{tpu_custom_call.1} parent=11 // pred_region
          %s269 = ssub.s32 2048, 2048
          %270 = vsyncadd [#allocation13], %s269
          %s271 = sshll.u32 [#allocation12], 4
          %s272 = int_to_ptr.vmem [resolvable:$true] %s271
          %277 = dma.hbm_to_vmem [thread:$0]  %s5, 2048, %s272, [#allocation13], 128, 128, 8
        $region24: #{tpu_custom_call.1} parent=11 // pred_fallthru
          _
        // Predicated region
        $region25: #{tpu_custom_call.1} parent=11 // pred_check
          %p278 = pneg %p200
        $region26: #{tpu_custom_call.1} parent=11 // pred_check_branch
          %280 = sbr.rel (%p278) target = $region28
        $region27: #{tpu_custom_call.1} parent=11 // pred_region
          %s282 = ssub.s32 16, 16
          %283 = vsyncadd [#allocation13], %s282
          %s285 = sshll.u32 [#allocation14], 4
          %s286 = int_to_ptr.vmem [resolvable:$true] %s285
          %288 = dma.hbm_to_vmem [thread:$0]  %s6, 16, %s286, [#allocation13]
        $region28: #{tpu_custom_call.1} parent=11 // pred_fallthru
          _
      $region12: #{tpu_custom_call.1} parent=5 // pred_fallthru
        _
      %p289 = scmp.lt.s32.totalorder %s24, 4
      // Predicated region
      $region29: #{tpu_custom_call.1} parent=5 // pred_check
        %p290 = pneg %p289
      $region30: #{tpu_custom_call.1} parent=5 // pred_check_branch
        %292 = sbr.rel (%p290) target = $region32
      $region31: #{tpu_custom_call.1} parent=5 // pred_region
        // Predicated region
        $region33: #{tpu_custom_call.1} parent=31 // pred_check
          %p293 = pneg %p58
        $region34: #{tpu_custom_call.1} parent=31 // pred_check_branch
          %295 = sbr.rel (%p293) target = $region36
        $region35: #{tpu_custom_call.1} parent=31 // pred_region
          %s296 = sand.u32 %s48, 1
          %s297 = scalar_lea.sflag [#allocation4], %s296
          %s298 = sand.u32 %s48, 1
          %s299 = smul.addr %s298, 432
          %s300 = scalar_lea.vmem [#allocation3], %s299
          %s302 = ssub.s32 6912, 6912
          %303 = vsyncadd %s297, %s302
          %s304 = smul.addr %s31, 108
          %s305 = sadd.s32 %s32, %s304
          %s306 = smul.addr %s305, 128
          %s307 = scalar_lea.hbm %s0, %s306
          %s308 = sshll.u32 %s300, 4
          %s309 = int_to_ptr.vmem [resolvable:$true] %s308
          %314 = dma.hbm_to_vmem [thread:$0]  %s307, 6912, %s309, %s297, 256, 128, 8
        $region36: #{tpu_custom_call.1} parent=31 // pred_fallthru
          _
        // Predicated region
        $region37: #{tpu_custom_call.1} parent=31 // pred_check
          %p315 = pneg %p84
        $region38: #{tpu_custom_call.1} parent=31 // pred_check_branch
          %317 = sbr.rel (%p315) target = $region40
        $region39: #{tpu_custom_call.1} parent=31 // pred_region
          %s318 = sand.u32 %s24, 1
          %s319 = scalar_lea.sflag [#allocation7], %s318
          %s320 = sand.u32 %s74, 1
          %s321 = smul.addr %s320, 384
          %s322 = scalar_lea.vmem [#allocation6], %s321
          %s324 = ssub.s32 6144, 6144
          %325 = vsyncadd %s319, %s324
          %s326 = smul.addr %s31, 48
          %s327 = smul.addr %s326, 128
          %s328 = scalar_lea.hbm %s1, %s327
          %s329 = sshll.u32 %s322, 4
          %s330 = int_to_ptr.vmem [resolvable:$true] %s329
          %335 = dma.hbm_to_vmem [thread:$0]  %s328, 6144, %s330, %s319, 128, 128, 8
        $region40: #{tpu_custom_call.1} parent=31 // pred_fallthru
          _
        // Predicated region
        $region41: #{tpu_custom_call.1} parent=31 // pred_check
          %p336 = pneg %p110
        $region42: #{tpu_custom_call.1} parent=31 // pred_check_branch
          %338 = sbr.rel (%p336) target = $region44
        $region43: #{tpu_custom_call.1} parent=31 // pred_region
          #allocation17 [shape = 'u32[6]{0}', space=smem, size = 0x18, scoped, tag = 'DMA stride descriptor']
          %s339 = sand.u32 %s24, 1
          %s340 = scalar_lea.sflag [#allocation7], %s339
          %s341 = sand.u32 %s100, 1
          %s342 = smul.addr %s341, 1152
          %s343 = scalar_lea.vmem [#allocation8], %s342
          %s344 = smul.u32 16, %s32
          %s346 = ssub.s32 18432, 18432
          %347 = vsyncadd %s340, %s346
          %s348 = smul.addr %s344, 3
          %s349 = smul.addr %s348, 128
          %s350 = scalar_lea.hbm %s2, %s349
          %s352 = sshll.u32 1, 14
          %s353 = sxor.u32 4294967295, %s352
          %s355 = sld [smem:[#allocation0]]
          %s356 = sadd.s32 2, %s355
          %s358 = sshll.u32 7, 26
          %s359 = sxor.u32 4294967295, %s358
          %s360 = sand.u32 0, %s359
          %s361 = sshll.u32 %s356, 26
          %s362 = sor.u32 %s360, %s361
          %s363 = sshll.u32 %s343, 4
          %s364 = int_to_ptr.vmem [resolvable:$true] %s363
          %370 = sst [smem:[#allocation17]] 12288
          %s371 = scalar_lea.smem [#allocation17], 1
          %372 = sst [smem:[%s371]] 6144
          %s373 = scalar_lea.smem [#allocation17], 2
          %374 = sst [smem:[%s373]] 16
          %s375 = scalar_lea.smem [#allocation17], 3
          %376 = sst [smem:[%s375]] 384
          %s377 = scalar_lea.smem [#allocation17], 4
          %378 = sst [smem:[%s377]] 384
          %s379 = scalar_lea.smem [#allocation17], 5
          %380 = sst [smem:[%s379]] 24
          %382 = dma.general %s350, 18432, %s364, %s340, [#allocation16], [#allocation17], %s362, 0
        $region44: #{tpu_custom_call.1} parent=31 // pred_fallthru
          _
      $region32: #{tpu_custom_call.1} parent=5 // pred_fallthru
        _
      %p383 = scmp.le.s32.totalorder 1, %s24
      %p384 = scmp.lt.s32.totalorder %s24, 5
      %p385 = pnand %p383, %p384
      %p386 = pneg %p385
      // Predicated region
      $region45: #{tpu_custom_call.1} parent=5 // pred_check
        _
      $region46: #{tpu_custom_call.1} parent=5 // pred_check_branch
        %388 = sbr.rel (%p385) target = $region48
      $region47: #{tpu_custom_call.1} parent=5 // pred_region
        %s389 = ssub.s32 %s24, 1
        %s390 = sand.u32 %s51, 1
        %s391 = scalar_lea.sflag [#allocation4], %s390
        %s392 = sand.u32 %s51, 1
        %s393 = smul.addr %s392, 432
        %s394 = scalar_lea.vmem [#allocation3], %s393
        // Predicated region
        $region49: #{tpu_custom_call.1} parent=47 // pred_check
          %p395 = pneg %p64
        $region50: #{tpu_custom_call.1} parent=47 // pred_check_branch
          %397 = sbr.rel (%p395) target = $region52
        $region51: #{tpu_custom_call.1} parent=47 // pred_region
          %398 = dma.done %s391, 6912
        $region52: #{tpu_custom_call.1} parent=47 // pred_fallthru
          _
        %s399 = sand.u32 %s29, 1
        %s400 = scalar_lea.sflag [#allocation7], %s399
        %s401 = sand.u32 %s77, 1
        %s402 = smul.addr %s401, 384
        %s403 = scalar_lea.vmem [#allocation6], %s402
        // Predicated region
        $region53: #{tpu_custom_call.1} parent=47 // pred_check
          %p404 = pneg %p90
        $region54: #{tpu_custom_call.1} parent=47 // pred_check_branch
          %406 = sbr.rel (%p404) target = $region56
        $region55: #{tpu_custom_call.1} parent=47 // pred_region
          %407 = dma.done %s400, 6144
        $region56: #{tpu_custom_call.1} parent=47 // pred_fallthru
          _
        %s408 = sand.u32 %s29, 1
        %s409 = scalar_lea.sflag [#allocation7], %s408
        %s410 = sand.u32 %s103, 1
        %s411 = smul.addr %s410, 1152
        %s412 = scalar_lea.vmem [#allocation8], %s411
        // Predicated region
        $region57: #{tpu_custom_call.1} parent=47 // pred_check
          %p413 = pneg %p116
        $region58: #{tpu_custom_call.1} parent=47 // pred_check_branch
          %415 = sbr.rel (%p413) target = $region60
        $region59: #{tpu_custom_call.1} parent=47 // pred_region
          %416 = dma.done %s409, 18432
        $region60: #{tpu_custom_call.1} parent=47 // pred_fallthru
          _
        // Predicated region
        $region61: #{tpu_custom_call.1} parent=47 // pred_check
          %p417 = pneg %p137
        $region62: #{tpu_custom_call.1} parent=47 // pred_check_branch
          %419 = sbr.rel (%p417) target = $region64
        $region63: #{tpu_custom_call.1} parent=47 // pred_region
          %420 = dma.done [#allocation10], 2048
        $region64: #{tpu_custom_call.1} parent=47 // pred_fallthru
          _
        // Predicated region
        $region65: #{tpu_custom_call.1} parent=47 // pred_check
          %p421 = pneg %p158
        $region66: #{tpu_custom_call.1} parent=47 // pred_check_branch
          %423 = sbr.rel (%p421) target = $region68
        $region67: #{tpu_custom_call.1} parent=47 // pred_region
          %424 = dma.done [#allocation10], 16
        $region68: #{tpu_custom_call.1} parent=47 // pred_fallthru
          _
        // Predicated region
        $region69: #{tpu_custom_call.1} parent=47 // pred_check
          %p425 = pneg %p179
        $region70: #{tpu_custom_call.1} parent=47 // pred_check_branch
          %427 = sbr.rel (%p425) target = $region72
        $region71: #{tpu_custom_call.1} parent=47 // pred_region
          %428 = dma.done [#allocation13], 2048
        $region72: #{tpu_custom_call.1} parent=47 // pred_fallthru
          _
        // Predicated region
        $region73: #{tpu_custom_call.1} parent=47 // pred_check
          %p429 = pneg %p200
        $region74: #{tpu_custom_call.1} parent=47 // pred_check_branch
          %431 = sbr.rel (%p429) target = $region76
        $region75: #{tpu_custom_call.1} parent=47 // pred_region
          %432 = dma.done [#allocation13], 16
        $region76: #{tpu_custom_call.1} parent=47 // pred_fallthru
          _
        %s433 = sand.u32 %s51, 1
        %s434 = scalar_lea.sflag [#allocation4], %s433
        %s435 = sand.u32 %s51, 1
        %s436 = smul.addr %s435, 432
        %s437 = scalar_lea.vmem [#allocation3], %s436
        %p438 = pneg %p64
        %p439 = pneg %p61
        %s440 = sand.u32 %s29, 1
        %s441 = scalar_lea.sflag [#allocation7], %s440
        %s442 = sand.u32 %s77, 1
        %s443 = smul.addr %s442, 384
        %s444 = scalar_lea.vmem [#allocation6], %s443
        %p445 = pneg %p90
        %p446 = pneg %p87
        %s447 = sand.u32 %s29, 1
        %s448 = scalar_lea.sflag [#allocation7], %s447
        %s449 = sand.u32 %s103, 1
        %s450 = smul.addr %s449, 1152
        %s451 = scalar_lea.vmem [#allocation8], %s450
        %p452 = pneg %p116
        %p453 = pneg %p113
        %p454 = pneg %p137
        %p455 = pneg %p134
        %p456 = pneg %p158
        %p457 = pneg %p155
        %p458 = pneg %p179
        %p459 = pneg %p176
        %p460 = pneg %p200
        %p461 = pneg %p197
        %p462 = pneg %p226
        %p463 = pneg %p223
        %s464 = sand.u32 %s213, 1
        %s465 = scalar_lea.sflag [#allocation5], %s464
        %s466 = sand.u32 %s213, 1
        %s467 = smul.addr %s466, 256
        %s468 = scalar_lea.vmem [#allocation15], %s467
        %s469 = smul.u32 16, %s34
        %p470 = scmp.eq.s32.totalorder %s34, 0
        // Predicated region
        $region77: #{tpu_custom_call.1} parent=47 // pred_check
          %p471 = pneg %p470
        $region78: #{tpu_custom_call.1} parent=47 // pred_check_branch
          %473 = sbr.rel (%p471) target = $region80
        $region79: #{tpu_custom_call.1} parent=47 // pred_region
          %v474 = vld [vmem:[%s403] sm:$0xff]
          %v475 = vld [vmem:[%s403 + $0x8] sm:$0xff]
          %v476 = vld [vmem:[%s403 + $0x10] sm:$0xff]
          %v477 = vld [vmem:[%s403 + $0x18] sm:$0xff]
          %v478 = vld [vmem:[%s403 + $0x20] sm:$0xff]
          %v479 = vld [vmem:[%s403 + $0x28] sm:$0xff]
          %v480 = vld [vmem:[%s403 + $0x30] sm:$0xff]
          %v481 = vld [vmem:[%s403 + $0x38] sm:$0xff]
          %v482 = vld [vmem:[%s403 + $0x40] sm:$0xff]
          %v483 = vld [vmem:[%s403 + $0x48] sm:$0xff]
          %v484 = vld [vmem:[%s403 + $0x50] sm:$0xff]
          %v485 = vld [vmem:[%s403 + $0x58] sm:$0xff]
          %v486 = vld [vmem:[%s403 + $0x60] sm:$0xff]
          %v487 = vld [vmem:[%s403 + $0x68] sm:$0xff]
          %v488 = vld [vmem:[%s403 + $0x70] sm:$0xff]
          %v489 = vld [vmem:[%s403 + $0x78] sm:$0xff]
          %v490 = vld [vmem:[%s403 + $0x80] sm:$0xff]
          %v491 = vld [vmem:[%s403 + $0x88] sm:$0xff]
          %v492 = vld [vmem:[%s403 + $0x90] sm:$0xff]
          %v493 = vld [vmem:[%s403 + $0x98] sm:$0xff]
          %v494 = vld [vmem:[%s403 + $0xa0] sm:$0xff]
          %v495 = vld [vmem:[%s403 + $0xa8] sm:$0xff]
          %v496 = vld [vmem:[%s403 + $0xb0] sm:$0xff]
          %v497 = vld [vmem:[%s403 + $0xb8] sm:$0xff]
          %v498 = vld [vmem:[%s403 + $0xc0] sm:$0xff]
          %v499 = vld [vmem:[%s403 + $0xc8] sm:$0xff]
          %v500 = vld [vmem:[%s403 + $0xd0] sm:$0xff]
          %v501 = vld [vmem:[%s403 + $0xd8] sm:$0xff]
          %v502 = vld [vmem:[%s403 + $0xe0] sm:$0xff]
          %v503 = vld [vmem:[%s403 + $0xe8] sm:$0xff]
          %v504 = vld [vmem:[%s403 + $0xf0] sm:$0xff]
          %v505 = vld [vmem:[%s403 + $0xf8] sm:$0xff]
          %v506 = vld [vmem:[%s403 + $0x100] sm:$0xff]
          %v507 = vld [vmem:[%s403 + $0x108] sm:$0xff]
          %v508 = vld [vmem:[%s403 + $0x110] sm:$0xff]
          %v509 = vld [vmem:[%s403 + $0x118] sm:$0xff]
          %v510 = vld [vmem:[%s403 + $0x120] sm:$0xff]
          %v511 = vld [vmem:[%s403 + $0x128] sm:$0xff]
          %v512 = vld [vmem:[%s403 + $0x130] sm:$0xff]
          %v513 = vld [vmem:[%s403 + $0x138] sm:$0xff]
          %v514 = vld [vmem:[%s403 + $0x140] sm:$0xff]
          %v515 = vld [vmem:[%s403 + $0x148] sm:$0xff]
          %v516 = vld [vmem:[%s403 + $0x150] sm:$0xff]
          %v517 = vld [vmem:[%s403 + $0x158] sm:$0xff]
          %v518 = vld [vmem:[%s403 + $0x160] sm:$0xff]
          %v519 = vld [vmem:[%s403 + $0x168] sm:$0xff]
          %v520 = vld [vmem:[%s403 + $0x170] sm:$0xff]
          %v521 = vld [vmem:[%s403 + $0x178] sm:$0xff]
          %522 = vst [vmem:[#allocation2] sm:$0xff] %v474
          %523 = vst [vmem:[#allocation2 + $0x8] sm:$0xff] %v475
          %524 = vst [vmem:[#allocation2 + $0x10] sm:$0xff] %v476
          %525 = vst [vmem:[#allocation2 + $0x18] sm:$0xff] %v477
          %526 = vst [vmem:[#allocation2 + $0x20] sm:$0xff] %v478
          %527 = vst [vmem:[#allocation2 + $0x28] sm:$0xff] %v479
          %528 = vst [vmem:[#allocation2 + $0x30] sm:$0xff] %v480
          %529 = vst [vmem:[#allocation2 + $0x38] sm:$0xff] %v481
          %530 = vst [vmem:[#allocation2 + $0x40] sm:$0xff] %v482
          %531 = vst [vmem:[#allocation2 + $0x48] sm:$0xff] %v483
          %532 = vst [vmem:[#allocation2 + $0x50] sm:$0xff] %v484
          %533 = vst [vmem:[#allocation2 + $0x58] sm:$0xff] %v485
          %534 = vst [vmem:[#allocation2 + $0x60] sm:$0xff] %v486
          %535 = vst [vmem:[#allocation2 + $0x68] sm:$0xff] %v487
          %536 = vst [vmem:[#allocation2 + $0x70] sm:$0xff] %v488
          %537 = vst [vmem:[#allocation2 + $0x78] sm:$0xff] %v489
          %538 = vst [vmem:[#allocation2 + $0x80] sm:$0xff] %v490
          %539 = vst [vmem:[#allocation2 + $0x88] sm:$0xff] %v491
          %540 = vst [vmem:[#allocation2 + $0x90] sm:$0xff] %v492
          %541 = vst [vmem:[#allocation2 + $0x98] sm:$0xff] %v493
          %542 = vst [vmem:[#allocation2 + $0xa0] sm:$0xff] %v494
          %543 = vst [vmem:[#allocation2 + $0xa8] sm:$0xff] %v495
          %544 = vst [vmem:[#allocation2 + $0xb0] sm:$0xff] %v496
          %545 = vst [vmem:[#allocation2 + $0xb8] sm:$0xff] %v497
          %546 = vst [vmem:[#allocation2 + $0xc0] sm:$0xff] %v498
          %547 = vst [vmem:[#allocation2 + $0xc8] sm:$0xff] %v499
          %548 = vst [vmem:[#allocation2 + $0xd0] sm:$0xff] %v500
          %549 = vst [vmem:[#allocation2 + $0xd8] sm:$0xff] %v501
          %550 = vst [vmem:[#allocation2 + $0xe0] sm:$0xff] %v502
          %551 = vst [vmem:[#allocation2 + $0xe8] sm:$0xff] %v503
          %552 = vst [vmem:[#allocation2 + $0xf0] sm:$0xff] %v504
          %553 = vst [vmem:[#allocation2 + $0xf8] sm:$0xff] %v505
          %554 = vst [vmem:[#allocation2 + $0x100] sm:$0xff] %v506
          %555 = vst [vmem:[#allocation2 + $0x108] sm:$0xff] %v507
          %556 = vst [vmem:[#allocation2 + $0x110] sm:$0xff] %v508
          %557 = vst [vmem:[#allocation2 + $0x118] sm:$0xff] %v509
          %558 = vst [vmem:[#allocation2 + $0x120] sm:$0xff] %v510
          %559 = vst [vmem:[#allocation2 + $0x128] sm:$0xff] %v511
          %560 = vst [vmem:[#allocation2 + $0x130] sm:$0xff] %v512
          %561 = vst [vmem:[#allocation2 + $0x138] sm:$0xff] %v513
          %562 = vst [vmem:[#allocation2 + $0x140] sm:$0xff] %v514
          %563 = vst [vmem:[#allocation2 + $0x148] sm:$0xff] %v515
          %564 = vst [vmem:[#allocation2 + $0x150] sm:$0xff] %v516
          %565 = vst [vmem:[#allocation2 + $0x158] sm:$0xff] %v517
          %566 = vst [vmem:[#allocation2 + $0x160] sm:$0xff] %v518
          %567 = vst [vmem:[#allocation2 + $0x168] sm:$0xff] %v519
          %568 = vst [vmem:[#allocation2 + $0x170] sm:$0xff] %v520
          %569 = vst [vmem:[#allocation2 + $0x178] sm:$0xff] %v521
        $region80: #{tpu_custom_call.1} parent=47 // pred_fallthru
          _
        %v570 = vld [vmem:[%s394] sm:$0xff]
        %v571 = vld [vmem:[%s394 + $0x8] sm:$0xff]
        %v572 = vld [vmem:[%s394 + $0x10] sm:$0xff]
        %v573 = vld [vmem:[%s394 + $0x18] sm:$0xff]
        %v574 = vld [vmem:[%s394 + $0x20] sm:$0xff]
        %v575 = vld [vmem:[%s394 + $0x28] sm:$0xff]
        %v576 = vld [vmem:[%s394 + $0x30] sm:$0xff]
        %v577 = vld [vmem:[%s394 + $0x38] sm:$0xff]
        %v578 = vld [vmem:[%s394 + $0x40] sm:$0xff]
        %v579 = vld [vmem:[%s394 + $0x48] sm:$0xff]
        %v580 = vld [vmem:[%s394 + $0x50] sm:$0xff]
        %v581 = vld [vmem:[%s394 + $0x58] sm:$0xff]
        %v582 = vld [vmem:[%s394 + $0x60] sm:$0xff]
        %v583 = vld [vmem:[%s394 + $0x68] sm:$0xff]
        %v584 = vld [vmem:[%s394 + $0x70] sm:$0xff]
        %v585 = vld [vmem:[%s394 + $0x78] sm:$0xff]
        %v586 = vld [vmem:[%s394 + $0x80] sm:$0xff]
        %v587 = vld [vmem:[%s394 + $0x88] sm:$0xff]
        %v588 = vld [vmem:[%s394 + $0x90] sm:$0xff]
        %v589 = vld [vmem:[%s394 + $0x98] sm:$0xff]
        %v590 = vld [vmem:[%s394 + $0xa0] sm:$0xff]
        %v591 = vld [vmem:[%s394 + $0xa8] sm:$0xff]
        %v592 = vld [vmem:[%s394 + $0xb0] sm:$0xff]
        %v593 = vld [vmem:[%s394 + $0xb8] sm:$0xff]
        %v594 = vld [vmem:[%s394 + $0xc0] sm:$0xff]
        %v595 = vld [vmem:[%s394 + $0xc8] sm:$0xff]
        %v596 = vld [vmem:[%s394 + $0xd0] sm:$0xff]
        %v597 = vld [vmem:[%s394 + $0xd8] sm:$0xff]
        %v598 = vld [vmem:[%s394 + $0xe0] sm:$0xff]
        %v599 = vld [vmem:[%s394 + $0xe8] sm:$0xff]
        %v600 = vld [vmem:[%s394 + $0xf0] sm:$0xff]
        %v601 = vld [vmem:[%s394 + $0xf8] sm:$0xff]
        %v602 = vld [vmem:[%s394 + $0x100] sm:$0xff]
        %v603 = vld [vmem:[%s394 + $0x108] sm:$0xff]
        %v604 = vld [vmem:[%s394 + $0x110] sm:$0xff]
        %v605 = vld [vmem:[%s394 + $0x118] sm:$0xff]
        %v606 = vld [vmem:[%s394 + $0x120] sm:$0xff]
        %v607 = vld [vmem:[%s394 + $0x128] sm:$0xff]
        %v608 = vld [vmem:[%s394 + $0x130] sm:$0xff]
        %v609 = vld [vmem:[%s394 + $0x138] sm:$0xff]
        %v610 = vld [vmem:[%s394 + $0x140] sm:$0xff]
        %v611 = vld [vmem:[%s394 + $0x148] sm:$0xff]
        %v612 = vld [vmem:[%s394 + $0x150] sm:$0xff]
        %v613 = vld [vmem:[%s394 + $0x158] sm:$0xff]
        %v614 = vld [vmem:[%s394 + $0x160] sm:$0xff]
        %v615 = vld [vmem:[%s394 + $0x168] sm:$0xff]
        %v616 = vld [vmem:[%s394 + $0x170] sm:$0xff]
        %v617 = vld [vmem:[%s394 + $0x178] sm:$0xff]
        %v618 = vld [vmem:[%s394 + $0x180] sm:$0xff]
        %v619 = vld [vmem:[%s394 + $0x188] sm:$0xff]
        %v620 = vld [vmem:[%s394 + $0x190] sm:$0xff]
        %v621 = vld [vmem:[%s394 + $0x198] sm:$0xff]
        %v622 = vld [vmem:[%s394 + $0x1a0] sm:$0xff]
        %v623 = vld [vmem:[%s394 + $0x1a8] sm:$0xff]
        %v624 = vld [vmem:[%s412] sm:$0xff]
        %v625 = vld [vmem:[%s412 + $0x8] sm:$0xff]
        %v626 = vld [vmem:[%s412 + $0x10] sm:$0xff]
        %v627 = vld [vmem:[%s412 + $0x18] sm:$0xff]
        %v628 = vld [vmem:[%s412 + $0x20] sm:$0xff]
        %v629 = vld [vmem:[%s412 + $0x28] sm:$0xff]
        %v630 = vld [vmem:[%s412 + $0x30] sm:$0xff]
        %v631 = vld [vmem:[%s412 + $0x38] sm:$0xff]
        %v632 = vld [vmem:[%s412 + $0x40] sm:$0xff]
        %v633 = vld [vmem:[%s412 + $0x48] sm:$0xff]
        %v634 = vld [vmem:[%s412 + $0x50] sm:$0xff]
        %v635 = vld [vmem:[%s412 + $0x58] sm:$0xff]
        %v636 = vld [vmem:[%s412 + $0x60] sm:$0xff]
        %v637 = vld [vmem:[%s412 + $0x68] sm:$0xff]
        %v638 = vld [vmem:[%s412 + $0x70] sm:$0xff]
        %v639 = vld [vmem:[%s412 + $0x78] sm:$0xff]
        %v640 = vld [vmem:[%s412 + $0x80] sm:$0xff]
        %v641 = vld [vmem:[%s412 + $0x88] sm:$0xff]
        %v642 = vld [vmem:[%s412 + $0x90] sm:$0xff]
        %v643 = vld [vmem:[%s412 + $0x98] sm:$0xff]
        %v644 = vld [vmem:[%s412 + $0xa0] sm:$0xff]
        %v645 = vld [vmem:[%s412 + $0xa8] sm:$0xff]
        %v646 = vld [vmem:[%s412 + $0xb0] sm:$0xff]
        %v647 = vld [vmem:[%s412 + $0xb8] sm:$0xff]
        %v648 = vld [vmem:[%s412 + $0xc0] sm:$0xff]
        %v649 = vld [vmem:[%s412 + $0xc8] sm:$0xff]
        %v650 = vld [vmem:[%s412 + $0xd0] sm:$0xff]
        %v651 = vld [vmem:[%s412 + $0xd8] sm:$0xff]
        %v652 = vld [vmem:[%s412 + $0xe0] sm:$0xff]
        %v653 = vld [vmem:[%s412 + $0xe8] sm:$0xff]
        %v654 = vld [vmem:[%s412 + $0xf0] sm:$0xff]
        %v655 = vld [vmem:[%s412 + $0xf8] sm:$0xff]
        %v656 = vld [vmem:[%s412 + $0x100] sm:$0xff]
        %v657 = vld [vmem:[%s412 + $0x108] sm:$0xff]
        %v658 = vld [vmem:[%s412 + $0x110] sm:$0xff]
        %v659 = vld [vmem:[%s412 + $0x118] sm:$0xff]
        %v660 = vld [vmem:[%s412 + $0x120] sm:$0xff]
        %v661 = vld [vmem:[%s412 + $0x128] sm:$0xff]
        %v662 = vld [vmem:[%s412 + $0x130] sm:$0xff]
        %v663 = vld [vmem:[%s412 + $0x138] sm:$0xff]
        %v664 = vld [vmem:[%s412 + $0x140] sm:$0xff]
        %v665 = vld [vmem:[%s412 + $0x148] sm:$0xff]
        %v666 = vld [vmem:[%s412 + $0x150] sm:$0xff]
        %v667 = vld [vmem:[%s412 + $0x158] sm:$0xff]
        %v668 = vld [vmem:[%s412 + $0x160] sm:$0xff]
        %v669 = vld [vmem:[%s412 + $0x168] sm:$0xff]
        %v670 = vld [vmem:[%s412 + $0x170] sm:$0xff]
        %v671 = vld [vmem:[%s412 + $0x178] sm:$0xff]
        %672 = vmatprep.subr.mxu0 %v625
        %673 = vmatpush1.msra.mxu0 %v624
        %674 = vmatprep.subr.mxu0 %v628
        %675 = vmatpush1.msra.mxu0 %v627
        %676 = vmatprep.subr.mxu0 %v631
        %677 = vmatpush1.msra.mxu0 %v630
        %678 = vmatprep.subr.mxu0 %v634
        %679 = vmatpush1.msra.mxu0 %v633
        %680 = vmatprep.subr.mxu0 %v637
        %681 = vmatpush1.msra.mxu0 %v636
        %682 = vmatprep.subr.mxu0 %v640
        %683 = vmatpush1.msra.mxu0 %v639
        %684 = vmatprep.subr.mxu0 %v643
        %685 = vmatpush1.msra.mxu0 %v642
        %686 = vmatprep.subr.mxu0 %v646
        %687 = vmatpush1.msra.mxu0 %v645
        %688 = vmatprep.subr.mxu0 %v649
        %689 = vmatpush1.msra.mxu0 %v648
        %690 = vmatprep.subr.mxu0 %v652
        %691 = vmatpush1.msra.mxu0 %v651
        %692 = vmatprep.subr.mxu0 %v655
        %693 = vmatpush1.msra.mxu0 %v654
        %694 = vmatprep.subr.mxu0 %v658
        %695 = vmatpush1.msra.mxu0 %v657
        %696 = vmatprep.subr.mxu0 %v661
        %697 = vmatpush1.msra.mxu0 %v660
        %698 = vmatprep.subr.mxu0 %v664
        %699 = vmatpush1.msra.mxu0 %v663
        %700 = vmatprep.subr.mxu0 %v667
        %701 = vmatpush1.msra.mxu0 %v666
        %702 = vmatprep.subr.mxu0 %v670
        %703 = vmatpush1.msra.mxu0 %v669
        %704 = vmatprep.subr.mxu0 0.0
        %705 = vmatpush1.msra.mxu0 0.0
        %706 = vmatprep.subr.mxu0 0.0
        %707 = vmatpush1.msra.mxu0 0.0
        %708 = vmatprep.subr.mxu0 0.0
        %709 = vmatpush1.msra.mxu0 0.0
        %710 = vmatprep.subr.mxu0 0.0
        %711 = vmatpush1.msra.mxu0 0.0
        %712 = vmatprep.subr.mxu0 0.0
        %713 = vmatpush1.msra.mxu0 0.0
        %714 = vmatprep.subr.mxu0 0.0
        %715 = vmatpush1.msra.mxu0 0.0
        %716 = vmatprep.subr.mxu0 0.0
        %717 = vmatpush1.msra.mxu0 0.0
        %718 = vmatprep.subr.mxu0 0.0
        %719 = vmatpush1.msra.mxu0 0.0
        %720 = vmatprep.subr.mxu0 0.0
        %721 = vmatpush1.msra.mxu0 0.0
        %722 = vmatprep.subr.mxu0 0.0
        %723 = vmatpush1.msra.mxu0 0.0
        %724 = vmatprep.subr.mxu0 0.0
        %725 = vmatpush1.msra.mxu0 0.0
        %726 = vmatprep.subr.mxu0 0.0
        %727 = vmatpush1.msra.mxu0 0.0
        %728 = vmatprep.subr.mxu0 0.0
        %729 = vmatpush1.msra.mxu0 0.0
        %730 = vmatprep.subr.mxu0 0.0
        %731 = vmatpush1.msra.mxu0 0.0
        %732 = vmatprep.subr.mxu0 0.0
        %733 = vmatpush1.msra.mxu0 0.0
        %734 = vmatprep.subr.mxu0 0.0
        %735 = vmatpush1.msra.mxu0 0.0
        %736 = vmatprep.mubr.f32.mxu0 0.0
        %737 = vmatmul.mubr.f32.gmra.mrb[0].mxu0 %v570
        %v738 = vpop.f32.mrb[0].mxu0
        %v739 = vadd.f32 0.0, %v738
        %v740 = vpop.f32.mrb[0].mxu0
        %v741 = vadd.f32 0.0, %v740
        %742 = vmatprep.mubr.f32.mxu0 0.0
        %743 = vmatmul.mubr.f32.gmra.mrb[0].mxu0 %v571
        %v744 = vpop.f32.mrb[0].mxu0
        %v745 = vadd.f32 0.0, %v744
        %v746 = vpop.f32.mrb[0].mxu0
        %v747 = vadd.f32 0.0, %v746
        %748 = vmatprep.mubr.f32.mxu0 0.0
        %749 = vmatmul.mubr.f32.gmra.mrb[0].mxu0 %v572
        %v750 = vpop.f32.mrb[0].mxu0
        %v751 = vadd.f32 0.0, %v750
        %v752 = vpop.f32.mrb[0].mxu0
        %v753 = vadd.f32 0.0, %v752
        %754 = vmatprep.mubr.f32.mxu0 0.0
        %755 = vmatmul.mubr.f32.gmra.mrb[0].mxu0 %v573
        %v756 = vpop.f32.mrb[0].mxu0
        %v757 = vadd.f32 0.0, %v756
        %v758 = vpop.f32.mrb[0].mxu0
        %v759 = vadd.f32 0.0, %v758
        %760 = vmatprep.mubr.f32.mxu0 0.0
        %761 = vmatmul.mubr.f32.gmra.mrb[0].mxu0 %v574
        %v762 = vpop.f32.mrb[0].mxu0
        %v763 = vadd.f32 0.0, %v762
        %v764 = vpop.f32.mrb[0].mxu0
        %v765 = vadd.f32 0.0, %v764
        %766 = vmatprep.mubr.f32.mxu0 0.0
        %767 = vmatmul.mubr.f32.gmra.mrb[0].mxu0 %v575
        %v768 = vpop.f32.mrb[0].mxu0
        %v769 = vadd.f32 0.0, %v768
        %v770 = vpop.f32.mrb[0].mxu0
        %v771 = vadd.f32 0.0, %v770
        %772 = vmatprep.mubr.f32.mxu0 0.0
        %773 = vmatmul.mubr.f32.gmra.mrb[0].mxu0 %v576
        %v774 = vpop.f32.mrb[0].mxu0
        %v775 = vadd.f32 0.0, %v774
        %v776 = vpop.f32.mrb[0].mxu0
        %v777 = vadd.f32 0.0, %v776
        %778 = vmatprep.mubr.f32.mxu0 0.0
        %779 = vmatmul.mubr.f32.gmra.mrb[0].mxu0 %v577
        %v780 = vpop.f32.mrb[0].mxu0
        %v781 = vadd.f32 0.0, %v780
        %v782 = vpop.f32.mrb[0].mxu0
        %v783 = vadd.f32 0.0, %v782
        %784 = vmatprep.mubr.f32.mxu0 0.0
        %785 = vmatmul.mubr.f32.gmra.mrb[0].mxu0 %v578
        %v786 = vpop.f32.mrb[0].mxu0
        %v787 = vadd.f32 0.0, %v786
        %v788 = vpop.f32.mrb[0].mxu0
        %v789 = vadd.f32 0.0, %v788
        %790 = vmatprep.mubr.f32.mxu0 0.0
        %791 = vmatmul.mubr.f32.gmra.mrb[0].mxu0 %v579
        %v792 = vpop.f32.mrb[0].mxu0
        %v793 = vadd.f32 0.0, %v792
        %v794 = vpop.f32.mrb[0].mxu0
        %v795 = vadd.f32 0.0, %v794
        %796 = vmatprep.mubr.f32.mxu0 0.0
        %797 = vmatmul.mubr.f32.gmra.mrb[0].mxu0 %v580
        %v798 = vpop.f32.mrb[0].mxu0
        %v799 = vadd.f32 0.0, %v798
        %v800 = vpop.f32.mrb[0].mxu0
        %v801 = vadd.f32 0.0, %v800
        %802 = vmatprep.mubr.f32.mxu0 0.0
        %803 = vmatmul.mubr.f32.gmra.mrb[0].mxu0 %v581
        %v804 = vpop.f32.mrb[0].mxu0
        %v805 = vadd.f32 0.0, %v804
        %v806 = vpop.f32.mrb[0].mxu0
        %v807 = vadd.f32 0.0, %v806
        %808 = vmatprep.mubr.f32.mxu0 0.0
        %809 = vmatmul.mubr.f32.gmra.mrb[0].mxu0 %v582
        %v810 = vpop.f32.mrb[0].mxu0
        %v811 = vadd.f32 0.0, %v810
        %v812 = vpop.f32.mrb[0].mxu0
        %v813 = vadd.f32 0.0, %v812
        %814 = vmatprep.mubr.f32.mxu0 0.0
        %815 = vmatmul.mubr.f32.gmra.mrb[0].mxu0 %v583
        %v816 = vpop.f32.mrb[0].mxu0
        %v817 = vadd.f32 0.0, %v816
        %v818 = vpop.f32.mrb[0].mxu0
        %v819 = vadd.f32 0.0, %v818
        %820 = vmatprep.mubr.f32.mxu0 0.0
        %821 = vmatmul.mubr.f32.gmra.mrb[0].mxu0 %v584
        %v822 = vpop.f32.mrb[0].mxu0
        %v823 = vadd.f32 0.0, %v822
        %v824 = vpop.f32.mrb[0].mxu0
        %v825 = vadd.f32 0.0, %v824
        %826 = vmatprep.mubr.f32.mxu0 0.0
        %827 = vmatmul.mubr.f32.gmra.mrb[0].mxu0 %v585
        %v828 = vpop.f32.mrb[0].mxu0
        %v829 = vadd.f32 0.0, %v828
        %v830 = vpop.f32.mrb[0].mxu0
        %v831 = vadd.f32 0.0, %v830
        %832 = vmatprep.mubr.f32.mxu0 0.0
        %833 = vmatmul.mubr.f32.gmra.mrb[0].mxu0 %v586
        %v834 = vpop.f32.mrb[0].mxu0
        %v835 = vadd.f32 0.0, %v834
        %v836 = vpop.f32.mrb[0].mxu0
        %v837 = vadd.f32 0.0, %v836
        %838 = vmatprep.mubr.f32.mxu0 0.0
        %839 = vmatmul.mubr.f32.gmra.mrb[0].mxu0 %v587
        %v840 = vpop.f32.mrb[0].mxu0
        %v841 = vadd.f32 0.0, %v840
        %v842 = vpop.f32.mrb[0].mxu0
        %v843 = vadd.f32 0.0, %v842
        %844 = vmatprep.mubr.f32.mxu0 0.0
        %845 = vmatmul.mubr.f32.gmra.mrb[0].mxu0 %v588
        %v846 = vpop.f32.mrb[0].mxu0
        %v847 = vadd.f32 0.0, %v846
        %v848 = vpop.f32.mrb[0].mxu0
        %v849 = vadd.f32 0.0, %v848
        %850 = vmatprep.mubr.f32.mxu0 0.0
        %851 = vmatmul.mubr.f32.gmra.mrb[0].mxu0 %v589
        %v852 = vpop.f32.mrb[0].mxu0
        %v853 = vadd.f32 0.0, %v852
        %v854 = vpop.f32.mrb[0].mxu0
        %v855 = vadd.f32 0.0, %v854
        %856 = vmatprep.mubr.f32.mxu0 0.0
        %857 = vmatmul.mubr.f32.gmra.mrb[0].mxu0 %v590
        %v858 = vpop.f32.mrb[0].mxu0
        %v859 = vadd.f32 0.0, %v858
        %v860 = vpop.f32.mrb[0].mxu0
        %v861 = vadd.f32 0.0, %v860
        %862 = vmatprep.mubr.f32.mxu0 0.0
        %863 = vmatmul.mubr.f32.gmra.mrb[0].mxu0 %v591
        %v864 = vpop.f32.mrb[0].mxu0
        %v865 = vadd.f32 0.0, %v864
        %v866 = vpop.f32.mrb[0].mxu0
        %v867 = vadd.f32 0.0, %v866
        %868 = vmatprep.mubr.f32.mxu0 0.0
        %869 = vmatmul.mubr.f32.gmra.mrb[0].mxu0 %v592
        %v870 = vpop.f32.mrb[0].mxu0
        %v871 = vadd.f32 0.0, %v870
        %v872 = vpop.f32.mrb[0].mxu0
        %v873 = vadd.f32 0.0, %v872
        %874 = vmatprep.mubr.f32.mxu0 0.0
        %875 = vmatmul.mubr.f32.gmra.mrb[0].mxu0 %v593
        %v876 = vpop.f32.mrb[0].mxu0
        %v877 = vadd.f32 0.0, %v876
        %v878 = vpop.f32.mrb[0].mxu0
        %v879 = vadd.f32 0.0, %v878
        %880 = vmatprep.mubr.f32.mxu0 0.0
        %881 = vmatmul.mubr.f32.gmra.mrb[0].mxu0 %v594
        %v882 = vpop.f32.mrb[0].mxu0
        %v883 = vadd.f32 0.0, %v882
        %v884 = vpop.f32.mrb[0].mxu0
        %v885 = vadd.f32 0.0, %v884
        %886 = vmatprep.mubr.f32.mxu0 0.0
        %887 = vmatmul.mubr.f32.gmra.mrb[0].mxu0 %v595
        %v888 = vpop.f32.mrb[0].mxu0
        %v889 = vadd.f32 0.0, %v888
        %v890 = vpop.f32.mrb[0].mxu0
        %v891 = vadd.f32 0.0, %v890
        %892 = vmatprep.mubr.f32.mxu0 0.0
        %893 = vmatmul.mubr.f32.gmra.mrb[0].mxu0 %v596
        %v894 = vpop.f32.mrb[0].mxu0
        %v895 = vadd.f32 0.0, %v894
        %v896 = vpop.f32.mrb[0].mxu0
        %v897 = vadd.f32 0.0, %v896
        %898 = vmatprep.mubr.f32.mxu0 0.0
        %899 = vmatmul.mubr.f32.gmra.mrb[0].mxu0 %v597
        %v900 = vpop.f32.mrb[0].mxu0
        %v901 = vadd.f32 0.0, %v900
        %v902 = vpop.f32.mrb[0].mxu0
        %v903 = vadd.f32 0.0, %v902
        %904 = vmatprep.mubr.f32.mxu0 0.0
        %905 = vmatmul.mubr.f32.gmra.mrb[0].mxu0 %v598
        %v906 = vpop.f32.mrb[0].mxu0
        %v907 = vadd.f32 0.0, %v906
        %v908 = vpop.f32.mrb[0].mxu0
        %v909 = vadd.f32 0.0, %v908
        %910 = vmatprep.mubr.f32.mxu0 0.0
        %911 = vmatmul.mubr.f32.gmra.mrb[0].mxu0 %v599
        %v912 = vpop.f32.mrb[0].mxu0
        %v913 = vadd.f32 0.0, %v912
        %v914 = vpop.f32.mrb[0].mxu0
        %v915 = vadd.f32 0.0, %v914
        %916 = vmatprep.mubr.f32.mxu0 0.0
        %917 = vmatmul.mubr.f32.gmra.mrb[0].mxu0 %v600
        %v918 = vpop.f32.mrb[0].mxu0
        %v919 = vadd.f32 0.0, %v918
        %v920 = vpop.f32.mrb[0].mxu0
        %v921 = vadd.f32 0.0, %v920
        %922 = vmatprep.mubr.f32.mxu0 0.0
        %923 = vmatmul.mubr.f32.gmra.mrb[0].mxu0 %v601
        %v924 = vpop.f32.mrb[0].mxu0
        %v925 = vadd.f32 0.0, %v924
        %v926 = vpop.f32.mrb[0].mxu0
        %v927 = vadd.f32 0.0, %v926
        %928 = vmatprep.mubr.f32.mxu0 0.0
        %929 = vmatmul.mubr.f32.gmra.mrb[0].mxu0 %v602
        %v930 = vpop.f32.mrb[0].mxu0
        %v931 = vadd.f32 0.0, %v930
        %v932 = vpop.f32.mrb[0].mxu0
        %v933 = vadd.f32 0.0, %v932
        %934 = vmatprep.mubr.f32.mxu0 0.0
        %935 = vmatmul.mubr.f32.gmra.mrb[0].mxu0 %v603
        %v936 = vpop.f32.mrb[0].mxu0
        %v937 = vadd.f32 0.0, %v936
        %v938 = vpop.f32.mrb[0].mxu0
        %v939 = vadd.f32 0.0, %v938
        %940 = vmatprep.mubr.f32.mxu0 0.0
        %941 = vmatmul.mubr.f32.gmra.mrb[0].mxu0 %v604
        %v942 = vpop.f32.mrb[0].mxu0
        %v943 = vadd.f32 0.0, %v942
        %v944 = vpop.f32.mrb[0].mxu0
        %v945 = vadd.f32 0.0, %v944
        %946 = vmatprep.mubr.f32.mxu0 0.0
        %947 = vmatmul.mubr.f32.gmra.mrb[0].mxu0 %v605
        %v948 = vpop.f32.mrb[0].mxu0
        %v949 = vadd.f32 0.0, %v948
        %v950 = vpop.f32.mrb[0].mxu0
        %v951 = vadd.f32 0.0, %v950
        %952 = vmatprep.mubr.f32.mxu0 0.0
        %953 = vmatmul.mubr.f32.gmra.mrb[0].mxu0 %v606
        %v954 = vpop.f32.mrb[0].mxu0
        %v955 = vadd.f32 0.0, %v954
        %v956 = vpop.f32.mrb[0].mxu0
        %v957 = vadd.f32 0.0, %v956
        %958 = vmatprep.mubr.f32.mxu0 0.0
        %959 = vmatmul.mubr.f32.gmra.mrb[0].mxu0 %v607
        %v960 = vpop.f32.mrb[0].mxu0
        %v961 = vadd.f32 0.0, %v960
        %v962 = vpop.f32.mrb[0].mxu0
        %v963 = vadd.f32 0.0, %v962
        %964 = vmatprep.mubr.f32.mxu0 0.0
        %965 = vmatmul.mubr.f32.gmra.mrb[0].mxu0 %v608
        %v966 = vpop.f32.mrb[0].mxu0
        %v967 = vadd.f32 0.0, %v966
        %v968 = vpop.f32.mrb[0].mxu0
        %v969 = vadd.f32 0.0, %v968
        %970 = vmatprep.mubr.f32.mxu0 0.0
        %971 = vmatmul.mubr.f32.gmra.mrb[0].mxu0 %v609
        %v972 = vpop.f32.mrb[0].mxu0
        %v973 = vadd.f32 0.0, %v972
        %v974 = vpop.f32.mrb[0].mxu0
        %v975 = vadd.f32 0.0, %v974
        %976 = vmatprep.mubr.f32.mxu0 0.0
        %977 = vmatmul.mubr.f32.gmra.mrb[0].mxu0 %v610
        %v978 = vpop.f32.mrb[0].mxu0
        %v979 = vadd.f32 0.0, %v978
        %v980 = vpop.f32.mrb[0].mxu0
        %v981 = vadd.f32 0.0, %v980
        %982 = vmatprep.mubr.f32.mxu0 0.0
        %983 = vmatmul.mubr.f32.gmra.mrb[0].mxu0 %v611
        %v984 = vpop.f32.mrb[0].mxu0
        %v985 = vadd.f32 0.0, %v984
        %v986 = vpop.f32.mrb[0].mxu0
        %v987 = vadd.f32 0.0, %v986
        %988 = vmatprep.mubr.f32.mxu0 0.0
        %989 = vmatmul.mubr.f32.gmra.mrb[0].mxu0 %v612
        %v990 = vpop.f32.mrb[0].mxu0
        %v991 = vadd.f32 0.0, %v990
        %v992 = vpop.f32.mrb[0].mxu0
        %v993 = vadd.f32 0.0, %v992
        %994 = vmatprep.mubr.f32.mxu0 0.0
        %995 = vmatmul.mubr.f32.gmra.mrb[0].mxu0 %v613
        %v996 = vpop.f32.mrb[0].mxu0
        %v997 = vadd.f32 0.0, %v996
        %v998 = vpop.f32.mrb[0].mxu0
        %v999 = vadd.f32 0.0, %v998
        %1000 = vmatprep.mubr.f32.mxu0 0.0
        %1001 = vmatmul.mubr.f32.gmra.mrb[0].mxu0 %v614
        %v1002 = vpop.f32.mrb[0].mxu0
        %v1003 = vadd.f32 0.0, %v1002
        %v1004 = vpop.f32.mrb[0].mxu0
        %v1005 = vadd.f32 0.0, %v1004
        %1006 = vmatprep.mubr.f32.mxu0 0.0
        %1007 = vmatmul.mubr.f32.gmra.mrb[0].mxu0 %v615
        %v1008 = vpop.f32.mrb[0].mxu0
        %v1009 = vadd.f32 0.0, %v1008
        %v1010 = vpop.f32.mrb[0].mxu0
        %v1011 = vadd.f32 0.0, %v1010
        %1012 = vmatprep.mubr.f32.mxu0 0.0
        %1013 = vmatmul.mubr.f32.gmra.mrb[0].mxu0 %v616
        %v1014 = vpop.f32.mrb[0].mxu0
        %v1015 = vadd.f32 0.0, %v1014
        %v1016 = vpop.f32.mrb[0].mxu0
        %v1017 = vadd.f32 0.0, %v1016
        %1018 = vmatprep.mubr.f32.mxu0 0.0
        %1019 = vmatmul.mubr.f32.gmra.mrb[0].mxu0 %v617
        %v1020 = vpop.f32.mrb[0].mxu0
        %v1021 = vadd.f32 0.0, %v1020
        %v1022 = vpop.f32.mrb[0].mxu0
        %v1023 = vadd.f32 0.0, %v1022
        %1024 = vdwg.mxu0
        %1025 = vmatprep.subr.mxu0 0.0
        %1026 = vmatpush1.msra.mxu0 %v626
        %1027 = vmatprep.subr.mxu0 0.0
        %1028 = vmatpush1.msra.mxu0 %v629
        %1029 = vmatprep.subr.mxu0 0.0
        %1030 = vmatpush1.msra.mxu0 %v632
        %1031 = vmatprep.subr.mxu0 0.0
        %1032 = vmatpush1.msra.mxu0 %v635
        %1033 = vmatprep.subr.mxu0 0.0
        %1034 = vmatpush1.msra.mxu0 %v638
        %1035 = vmatprep.subr.mxu0 0.0
        %1036 = vmatpush1.msra.mxu0 %v641
        %1037 = vmatprep.subr.mxu0 0.0
        %1038 = vmatpush1.msra.mxu0 %v644
        %1039 = vmatprep.subr.mxu0 0.0
        %1040 = vmatpush1.msra.mxu0 %v647
        %1041 = vmatprep.subr.mxu0 0.0
        %1042 = vmatpush1.msra.mxu0 %v650
        %1043 = vmatprep.subr.mxu0 0.0
        %1044 = vmatpush1.msra.mxu0 %v653
        %1045 = vmatprep.subr.mxu0 0.0
        %1046 = vmatpush1.msra.mxu0 %v656
        %1047 = vmatprep.subr.mxu0 0.0
        %1048 = vmatpush1.msra.mxu0 %v659
        %1049 = vmatprep.subr.mxu0 0.0
        %1050 = vmatpush1.msra.mxu0 %v662
        %1051 = vmatprep.subr.mxu0 0.0
        %1052 = vmatpush1.msra.mxu0 %v665
        %1053 = vmatprep.subr.mxu0 0.0
        %1054 = vmatpush1.msra.mxu0 %v668
        %1055 = vmatprep.subr.mxu0 0.0
        %1056 = vmatpush1.msra.mxu0 %v671
        %1057 = vmatprep.subr.mxu0 0.0
        %1058 = vmatpush1.msra.mxu0 0.0
        %1059 = vmatprep.subr.mxu0 0.0
        %1060 = vmatpush1.msra.mxu0 0.0
        %1061 = vmatprep.subr.mxu0 0.0
        %1062 = vmatpush1.msra.mxu0 0.0
        %1063 = vmatprep.subr.mxu0 0.0
        %1064 = vmatpush1.msra.mxu0 0.0
        %1065 = vmatprep.subr.mxu0 0.0
        %1066 = vmatpush1.msra.mxu0 0.0
        %1067 = vmatprep.subr.mxu0 0.0
        %1068 = vmatpush1.msra.mxu0 0.0
        %1069 = vmatprep.subr.mxu0 0.0
        %1070 = vmatpush1.msra.mxu0 0.0
        %1071 = vmatprep.subr.mxu0 0.0
        %1072 = vmatpush1.msra.mxu0 0.0
        %1073 = vmatprep.subr.mxu0 0.0
        %1074 = vmatpush1.msra.mxu0 0.0
        %1075 = vmatprep.subr.mxu0 0.0
        %1076 = vmatpush1.msra.mxu0 0.0
        %1077 = vmatprep.subr.mxu0 0.0
        %1078 = vmatpush1.msra.mxu0 0.0
        %1079 = vmatprep.subr.mxu0 0.0
        %1080 = vmatpush1.msra.mxu0 0.0
        %1081 = vmatprep.subr.mxu0 0.0
        %1082 = vmatpush1.msra.mxu0 0.0
        %1083 = vmatprep.subr.mxu0 0.0
        %1084 = vmatpush1.msra.mxu0 0.0
        %1085 = vmatprep.subr.mxu0 0.0
        %1086 = vmatpush1.msra.mxu0 0.0
        %1087 = vmatprep.subr.mxu0 0.0
        %1088 = vmatpush1.msra.mxu0 0.0
        %1089 = vmatprep.mubr.f32.mxu0 0.0
        %1090 = vmatmul.mubr.f32.gmra.mrb[0].mxu0 %v570
        %v1091 = vpop.f32.mrb[0].mxu0
        %v1092 = vadd.f32 0.0, %v1091
        %v1093 = vpop.f32.mrb[0].mxu0
        %1094 = vmatprep.mubr.f32.mxu0 0.0
        %1095 = vmatmul.mubr.f32.gmra.mrb[0].mxu0 %v571
        %v1096 = vpop.f32.mrb[0].mxu0
        %v1097 = vadd.f32 0.0, %v1096
        %v1098 = vpop.f32.mrb[0].mxu0
        %1099 = vmatprep.mubr.f32.mxu0 0.0
        %1100 = vmatmul.mubr.f32.gmra.mrb[0].mxu0 %v572
        %v1101 = vpop.f32.mrb[0].mxu0
        %v1102 = vadd.f32 0.0, %v1101
        %v1103 = vpop.f32.mrb[0].mxu0
        %1104 = vmatprep.mubr.f32.mxu0 0.0
        %1105 = vmatmul.mubr.f32.gmra.mrb[0].mxu0 %v573
        %v1106 = vpop.f32.mrb[0].mxu0
        %v1107 = vadd.f32 0.0, %v1106
        %v1108 = vpop.f32.mrb[0].mxu0
        %1109 = vmatprep.mubr.f32.mxu0 0.0
        %1110 = vmatmul.mubr.f32.gmra.mrb[0].mxu0 %v574
        %v1111 = vpop.f32.mrb[0].mxu0
        %v1112 = vadd.f32 0.0, %v1111
        %v1113 = vpop.f32.mrb[0].mxu0
        %1114 = vmatprep.mubr.f32.mxu0 0.0
        %1115 = vmatmul.mubr.f32.gmra.mrb[0].mxu0 %v575
        %v1116 = vpop.f32.mrb[0].mxu0
        %v1117 = vadd.f32 0.0, %v1116
        %v1118 = vpop.f32.mrb[0].mxu0
        %1119 = vmatprep.mubr.f32.mxu0 0.0
        %1120 = vmatmul.mubr.f32.gmra.mrb[0].mxu0 %v576
        %v1121 = vpop.f32.mrb[0].mxu0
        %v1122 = vadd.f32 0.0, %v1121
        %v1123 = vpop.f32.mrb[0].mxu0
        %1124 = vmatprep.mubr.f32.mxu0 0.0
        %1125 = vmatmul.mubr.f32.gmra.mrb[0].mxu0 %v577
        %v1126 = vpop.f32.mrb[0].mxu0
        %v1127 = vadd.f32 0.0, %v1126
        %v1128 = vpop.f32.mrb[0].mxu0
        %1129 = vmatprep.mubr.f32.mxu0 0.0
        %1130 = vmatmul.mubr.f32.gmra.mrb[0].mxu0 %v578
        %v1131 = vpop.f32.mrb[0].mxu0
        %v1132 = vadd.f32 0.0, %v1131
        %v1133 = vpop.f32.mrb[0].mxu0
        %1134 = vmatprep.mubr.f32.mxu0 0.0
        %1135 = vmatmul.mubr.f32.gmra.mrb[0].mxu0 %v579
        %v1136 = vpop.f32.mrb[0].mxu0
        %v1137 = vadd.f32 0.0, %v1136
        %v1138 = vpop.f32.mrb[0].mxu0
        %1139 = vmatprep.mubr.f32.mxu0 0.0
        %1140 = vmatmul.mubr.f32.gmra.mrb[0].mxu0 %v580
        %v1141 = vpop.f32.mrb[0].mxu0
        %v1142 = vadd.f32 0.0, %v1141
        %v1143 = vpop.f32.mrb[0].mxu0
        %1144 = vmatprep.mubr.f32.mxu0 0.0
        %1145 = vmatmul.mubr.f32.gmra.mrb[0].mxu0 %v581
        %v1146 = vpop.f32.mrb[0].mxu0
        %v1147 = vadd.f32 0.0, %v1146
        %v1148 = vpop.f32.mrb[0].mxu0
        %1149 = vmatprep.mubr.f32.mxu0 0.0
        %1150 = vmatmul.mubr.f32.gmra.mrb[0].mxu0 %v582
        %v1151 = vpop.f32.mrb[0].mxu0
        %v1152 = vadd.f32 0.0, %v1151
        %v1153 = vpop.f32.mrb[0].mxu0
        %1154 = vmatprep.mubr.f32.mxu0 0.0
        %1155 = vmatmul.mubr.f32.gmra.mrb[0].mxu0 %v583
        %v1156 = vpop.f32.mrb[0].mxu0
        %v1157 = vadd.f32 0.0, %v1156
        %v1158 = vpop.f32.mrb[0].mxu0
        %1159 = vmatprep.mubr.f32.mxu0 0.0
        %1160 = vmatmul.mubr.f32.gmra.mrb[0].mxu0 %v584
        %v1161 = vpop.f32.mrb[0].mxu0
        %v1162 = vadd.f32 0.0, %v1161
        %v1163 = vpop.f32.mrb[0].mxu0
        %1164 = vmatprep.mubr.f32.mxu0 0.0
        %1165 = vmatmul.mubr.f32.gmra.mrb[0].mxu0 %v585
        %v1166 = vpop.f32.mrb[0].mxu0
        %v1167 = vadd.f32 0.0, %v1166
        %v1168 = vpop.f32.mrb[0].mxu0
        %1169 = vmatprep.mubr.f32.mxu0 0.0
        %1170 = vmatmul.mubr.f32.gmra.mrb[0].mxu0 %v586
        %v1171 = vpop.f32.mrb[0].mxu0
        %v1172 = vadd.f32 0.0, %v1171
        %v1173 = vpop.f32.mrb[0].mxu0
        %1174 = vmatprep.mubr.f32.mxu0 0.0
        %1175 = vmatmul.mubr.f32.gmra.mrb[0].mxu0 %v587
        %v1176 = vpop.f32.mrb[0].mxu0
        %v1177 = vadd.f32 0.0, %v1176
        %v1178 = vpop.f32.mrb[0].mxu0
        %1179 = vmatprep.mubr.f32.mxu0 0.0
        %1180 = vmatmul.mubr.f32.gmra.mrb[0].mxu0 %v588
        %v1181 = vpop.f32.mrb[0].mxu0
        %v1182 = vadd.f32 0.0, %v1181
        %v1183 = vpop.f32.mrb[0].mxu0
        %1184 = vmatprep.mubr.f32.mxu0 0.0
        %1185 = vmatmul.mubr.f32.gmra.mrb[0].mxu0 %v589
        %v1186 = vpop.f32.mrb[0].mxu0
        %v1187 = vadd.f32 0.0, %v1186
        %v1188 = vpop.f32.mrb[0].mxu0
        %1189 = vmatprep.mubr.f32.mxu0 0.0
        %1190 = vmatmul.mubr.f32.gmra.mrb[0].mxu0 %v590
        %v1191 = vpop.f32.mrb[0].mxu0
        %v1192 = vadd.f32 0.0, %v1191
        %v1193 = vpop.f32.mrb[0].mxu0
        %1194 = vmatprep.mubr.f32.mxu0 0.0
        %1195 = vmatmul.mubr.f32.gmra.mrb[0].mxu0 %v591
        %v1196 = vpop.f32.mrb[0].mxu0
        %v1197 = vadd.f32 0.0, %v1196
        %v1198 = vpop.f32.mrb[0].mxu0
        %1199 = vmatprep.mubr.f32.mxu0 0.0
        %1200 = vmatmul.mubr.f32.gmra.mrb[0].mxu0 %v592
        %v1201 = vpop.f32.mrb[0].mxu0
        %v1202 = vadd.f32 0.0, %v1201
        %v1203 = vpop.f32.mrb[0].mxu0
        %1204 = vmatprep.mubr.f32.mxu0 0.0
        %1205 = vmatmul.mubr.f32.gmra.mrb[0].mxu0 %v593
        %v1206 = vpop.f32.mrb[0].mxu0
        %v1207 = vadd.f32 0.0, %v1206
        %v1208 = vpop.f32.mrb[0].mxu0
        %1209 = vmatprep.mubr.f32.mxu0 0.0
        %1210 = vmatmul.mubr.f32.gmra.mrb[0].mxu0 %v594
        %v1211 = vpop.f32.mrb[0].mxu0
        %v1212 = vadd.f32 0.0, %v1211
        %v1213 = vpop.f32.mrb[0].mxu0
        %1214 = vmatprep.mubr.f32.mxu0 0.0
        %1215 = vmatmul.mubr.f32.gmra.mrb[0].mxu0 %v595
        %v1216 = vpop.f32.mrb[0].mxu0
        %v1217 = vadd.f32 0.0, %v1216
        %v1218 = vpop.f32.mrb[0].mxu0
        %1219 = vmatprep.mubr.f32.mxu0 0.0
        %1220 = vmatmul.mubr.f32.gmra.mrb[0].mxu0 %v596
        %v1221 = vpop.f32.mrb[0].mxu0
        %v1222 = vadd.f32 0.0, %v1221
        %v1223 = vpop.f32.mrb[0].mxu0
        %1224 = vmatprep.mubr.f32.mxu0 0.0
        %1225 = vmatmul.mubr.f32.gmra.mrb[0].mxu0 %v597
        %v1226 = vpop.f32.mrb[0].mxu0
        %v1227 = vadd.f32 0.0, %v1226
        %v1228 = vpop.f32.mrb[0].mxu0
        %1229 = vmatprep.mubr.f32.mxu0 0.0
        %1230 = vmatmul.mubr.f32.gmra.mrb[0].mxu0 %v598
        %v1231 = vpop.f32.mrb[0].mxu0
        %v1232 = vadd.f32 0.0, %v1231
        %v1233 = vpop.f32.mrb[0].mxu0
        %1234 = vmatprep.mubr.f32.mxu0 0.0
        %1235 = vmatmul.mubr.f32.gmra.mrb[0].mxu0 %v599
        %v1236 = vpop.f32.mrb[0].mxu0
        %v1237 = vadd.f32 0.0, %v1236
        %v1238 = vpop.f32.mrb[0].mxu0
        %1239 = vmatprep.mubr.f32.mxu0 0.0
        %1240 = vmatmul.mubr.f32.gmra.mrb[0].mxu0 %v600
        %v1241 = vpop.f32.mrb[0].mxu0
        %v1242 = vadd.f32 0.0, %v1241
        %v1243 = vpop.f32.mrb[0].mxu0
        %1244 = vmatprep.mubr.f32.mxu0 0.0
        %1245 = vmatmul.mubr.f32.gmra.mrb[0].mxu0 %v601
        %v1246 = vpop.f32.mrb[0].mxu0
        %v1247 = vadd.f32 0.0, %v1246
        %v1248 = vpop.f32.mrb[0].mxu0
        %1249 = vmatprep.mubr.f32.mxu0 0.0
        %1250 = vmatmul.mubr.f32.gmra.mrb[0].mxu0 %v602
        %v1251 = vpop.f32.mrb[0].mxu0
        %v1252 = vadd.f32 0.0, %v1251
        %v1253 = vpop.f32.mrb[0].mxu0
        %1254 = vmatprep.mubr.f32.mxu0 0.0
        %1255 = vmatmul.mubr.f32.gmra.mrb[0].mxu0 %v603
        %v1256 = vpop.f32.mrb[0].mxu0
        %v1257 = vadd.f32 0.0, %v1256
        %v1258 = vpop.f32.mrb[0].mxu0
        %1259 = vmatprep.mubr.f32.mxu0 0.0
        %1260 = vmatmul.mubr.f32.gmra.mrb[0].mxu0 %v604
        %v1261 = vpop.f32.mrb[0].mxu0
        %v1262 = vadd.f32 0.0, %v1261
        %v1263 = vpop.f32.mrb[0].mxu0
        %1264 = vmatprep.mubr.f32.mxu0 0.0
        %1265 = vmatmul.mubr.f32.gmra.mrb[0].mxu0 %v605
        %v1266 = vpop.f32.mrb[0].mxu0
        %v1267 = vadd.f32 0.0, %v1266
        %v1268 = vpop.f32.mrb[0].mxu0
        %1269 = vmatprep.mubr.f32.mxu0 0.0
        %1270 = vmatmul.mubr.f32.gmra.mrb[0].mxu0 %v606
        %v1271 = vpop.f32.mrb[0].mxu0
        %v1272 = vadd.f32 0.0, %v1271
        %v1273 = vpop.f32.mrb[0].mxu0
        %1274 = vmatprep.mubr.f32.mxu0 0.0
        %1275 = vmatmul.mubr.f32.gmra.mrb[0].mxu0 %v607
        %v1276 = vpop.f32.mrb[0].mxu0
        %v1277 = vadd.f32 0.0, %v1276
        %v1278 = vpop.f32.mrb[0].mxu0
        %1279 = vmatprep.mubr.f32.mxu0 0.0
        %1280 = vmatmul.mubr.f32.gmra.mrb[0].mxu0 %v608
        %v1281 = vpop.f32.mrb[0].mxu0
        %v1282 = vadd.f32 0.0, %v1281
        %v1283 = vpop.f32.mrb[0].mxu0
        %1284 = vmatprep.mubr.f32.mxu0 0.0
        %1285 = vmatmul.mubr.f32.gmra.mrb[0].mxu0 %v609
        %v1286 = vpop.f32.mrb[0].mxu0
        %v1287 = vadd.f32 0.0, %v1286
        %v1288 = vpop.f32.mrb[0].mxu0
        %1289 = vmatprep.mubr.f32.mxu0 0.0
        %1290 = vmatmul.mubr.f32.gmra.mrb[0].mxu0 %v610
        %v1291 = vpop.f32.mrb[0].mxu0
        %v1292 = vadd.f32 0.0, %v1291
        %v1293 = vpop.f32.mrb[0].mxu0
        %1294 = vmatprep.mubr.f32.mxu0 0.0
        %1295 = vmatmul.mubr.f32.gmra.mrb[0].mxu0 %v611
        %v1296 = vpop.f32.mrb[0].mxu0
        %v1297 = vadd.f32 0.0, %v1296
        %v1298 = vpop.f32.mrb[0].mxu0
        %1299 = vmatprep.mubr.f32.mxu0 0.0
        %1300 = vmatmul.mubr.f32.gmra.mrb[0].mxu0 %v612
        %v1301 = vpop.f32.mrb[0].mxu0
        %v1302 = vadd.f32 0.0, %v1301
        %v1303 = vpop.f32.mrb[0].mxu0
        %1304 = vmatprep.mubr.f32.mxu0 0.0
        %1305 = vmatmul.mubr.f32.gmra.mrb[0].mxu0 %v613
        %v1306 = vpop.f32.mrb[0].mxu0
        %v1307 = vadd.f32 0.0, %v1306
        %v1308 = vpop.f32.mrb[0].mxu0
        %1309 = vmatprep.mubr.f32.mxu0 0.0
        %1310 = vmatmul.mubr.f32.gmra.mrb[0].mxu0 %v614
        %v1311 = vpop.f32.mrb[0].mxu0
        %v1312 = vadd.f32 0.0, %v1311
        %v1313 = vpop.f32.mrb[0].mxu0
        %1314 = vmatprep.mubr.f32.mxu0 0.0
        %1315 = vmatmul.mubr.f32.gmra.mrb[0].mxu0 %v615
        %v1316 = vpop.f32.mrb[0].mxu0
        %v1317 = vadd.f32 0.0, %v1316
        %v1318 = vpop.f32.mrb[0].mxu0
        %1319 = vmatprep.mubr.f32.mxu0 0.0
        %1320 = vmatmul.mubr.f32.gmra.mrb[0].mxu0 %v616
        %v1321 = vpop.f32.mrb[0].mxu0
        %v1322 = vadd.f32 0.0, %v1321
        %v1323 = vpop.f32.mrb[0].mxu0
        %1324 = vmatprep.mubr.f32.mxu0 0.0
        %1325 = vmatmul.mubr.f32.gmra.mrb[0].mxu0 %v617
        %v1326 = vpop.f32.mrb[0].mxu0
        %v1327 = vadd.f32 0.0, %v1326
        %v1328 = vpop.f32.mrb[0].mxu0
        %1329 = vdwg.mxu0
        %v1330 = vrot.slane %v741, 1
        %v1331 = vrot.slane %v747, 1
        %v1332 = vrot.slane %v753, 1
        %v1333 = vrot.slane %v759, 1
        %v1334 = vrot.slane %v765, 1
        %v1335 = vrot.slane %v771, 1
        %v1336 = vrot.slane %v777, 1
        %v1337 = vrot.slane %v783, 1
        %v1338 = vrot.slane %v789, 1
        %v1339 = vrot.slane %v795, 1
        %v1340 = vrot.slane %v801, 1
        %v1341 = vrot.slane %v807, 1
        %v1342 = vrot.slane %v813, 1
        %v1343 = vrot.slane %v819, 1
        %v1344 = vrot.slane %v825, 1
        %v1345 = vrot.slane %v831, 1
        %v1346 = vrot.slane %v837, 1
        %v1347 = vrot.slane %v843, 1
        %v1348 = vrot.slane %v849, 1
        %v1349 = vrot.slane %v855, 1
        %v1350 = vrot.slane %v861, 1
        %v1351 = vrot.slane %v867, 1
        %v1352 = vrot.slane %v873, 1
        %v1353 = vrot.slane %v879, 1
        %v1354 = vrot.slane %v885, 1
        %v1355 = vrot.slane %v891, 1
        %v1356 = vrot.slane %v897, 1
        %v1357 = vrot.slane %v903, 1
        %v1358 = vrot.slane %v909, 1
        %v1359 = vrot.slane %v915, 1
        %v1360 = vrot.slane %v921, 1
        %v1361 = vrot.slane %v927, 1
        %v1362 = vrot.slane %v933, 1
        %v1363 = vrot.slane %v939, 1
        %v1364 = vrot.slane %v945, 1
        %v1365 = vrot.slane %v951, 1
        %v1366 = vrot.slane %v957, 1
        %v1367 = vrot.slane %v963, 1
        %v1368 = vrot.slane %v969, 1
        %v1369 = vrot.slane %v975, 1
        %v1370 = vrot.slane %v981, 1
        %v1371 = vrot.slane %v987, 1
        %v1372 = vrot.slane %v993, 1
        %v1373 = vrot.slane %v999, 1
        %v1374 = vrot.slane %v1005, 1
        %v1375 = vrot.slane %v1011, 1
        %v1376 = vrot.slane %v1017, 1
        %v1377 = vrot.slane %v1023, 1
        %v1378 = vlaneseq
        %v1379 = vshrl.u32 %v1378, 7
        %vm1380 = vcmp.lt.s32.totalorder %v1379, 7
        %v1381 = vsel %vm1380, %v1376, %v1377
        %v1382 = vsel %vm1380, %v1375, %v1376
        %v1383 = vsel %vm1380, %v1374, %v1375
        %v1384 = vsel %vm1380, %v1373, %v1374
        %v1385 = vsel %vm1380, %v1372, %v1373
        %v1386 = vsel %vm1380, %v1371, %v1372
        %v1387 = vsel %vm1380, %v1370, %v1371
        %v1388 = vsel %vm1380, %v1369, %v1370
        %v1389 = vsel %vm1380, %v1368, %v1369
        %v1390 = vsel %vm1380, %v1367, %v1368
        %v1391 = vsel %vm1380, %v1366, %v1367
        %v1392 = vsel %vm1380, %v1365, %v1366
        %v1393 = vsel %vm1380, %v1364, %v1365
        %v1394 = vsel %vm1380, %v1363, %v1364
        %v1395 = vsel %vm1380, %v1362, %v1363
        %v1396 = vsel %vm1380, %v1361, %v1362
        %v1397 = vsel %vm1380, %v1360, %v1361
        %v1398 = vsel %vm1380, %v1359, %v1360
        %v1399 = vsel %vm1380, %v1358, %v1359
        %v1400 = vsel %vm1380, %v1357, %v1358
        %v1401 = vsel %vm1380, %v1356, %v1357
        %v1402 = vsel %vm1380, %v1355, %v1356
        %v1403 = vsel %vm1380, %v1354, %v1355
        %v1404 = vsel %vm1380, %v1353, %v1354
        %v1405 = vsel %vm1380, %v1352, %v1353
        %v1406 = vsel %vm1380, %v1351, %v1352
        %v1407 = vsel %vm1380, %v1350, %v1351
        %v1408 = vsel %vm1380, %v1349, %v1350
        %v1409 = vsel %vm1380, %v1348, %v1349
        %v1410 = vsel %vm1380, %v1347, %v1348
        %v1411 = vsel %vm1380, %v1346, %v1347
        %v1412 = vsel %vm1380, %v1345, %v1346
        %v1413 = vsel %vm1380, %v1344, %v1345
        %v1414 = vsel %vm1380, %v1343, %v1344
        %v1415 = vsel %vm1380, %v1342, %v1343
        %v1416 = vsel %vm1380, %v1341, %v1342
        %v1417 = vsel %vm1380, %v1340, %v1341
        %v1418 = vsel %vm1380, %v1339, %v1340
        %v1419 = vsel %vm1380, %v1338, %v1339
        %v1420 = vsel %vm1380, %v1337, %v1338
        %v1421 = vsel %vm1380, %v1336, %v1337
        %v1422 = vsel %vm1380, %v1335, %v1336
        %v1423 = vsel %vm1380, %v1334, %v1335
        %v1424 = vsel %vm1380, %v1333, %v1334
        %v1425 = vsel %vm1380, %v1332, %v1333
        %v1426 = vsel %vm1380, %v1331, %v1332
        %v1427 = vsel %vm1380, %v1330, %v1331
        %v1428 = vsel %vm1380, %v1377, %v1330
        %v1429 = vadd.f32 %v739, %v1427
        %v1430 = vadd.f32 %v745, %v1426
        %v1431 = vadd.f32 %v751, %v1425
        %v1432 = vadd.f32 %v757, %v1424
        %v1433 = vadd.f32 %v763, %v1423
        %v1434 = vadd.f32 %v769, %v1422
        %v1435 = vadd.f32 %v775, %v1421
        %v1436 = vadd.f32 %v781, %v1420
        %v1437 = vadd.f32 %v787, %v1419
        %v1438 = vadd.f32 %v793, %v1418
        %v1439 = vadd.f32 %v799, %v1417
        %v1440 = vadd.f32 %v805, %v1416
        %v1441 = vadd.f32 %v811, %v1415
        %v1442 = vadd.f32 %v817, %v1414
        %v1443 = vadd.f32 %v823, %v1413
        %v1444 = vadd.f32 %v829, %v1412
        %v1445 = vadd.f32 %v835, %v1411
        %v1446 = vadd.f32 %v841, %v1410
        %v1447 = vadd.f32 %v847, %v1409
        %v1448 = vadd.f32 %v853, %v1408
        %v1449 = vadd.f32 %v859, %v1407
        %v1450 = vadd.f32 %v865, %v1406
        %v1451 = vadd.f32 %v871, %v1405
        %v1452 = vadd.f32 %v877, %v1404
        %v1453 = vadd.f32 %v883, %v1403
        %v1454 = vadd.f32 %v889, %v1402
        %v1455 = vadd.f32 %v895, %v1401
        %v1456 = vadd.f32 %v901, %v1400
        %v1457 = vadd.f32 %v907, %v1399
        %v1458 = vadd.f32 %v913, %v1398
        %v1459 = vadd.f32 %v919, %v1397
        %v1460 = vadd.f32 %v925, %v1396
        %v1461 = vadd.f32 %v931, %v1395
        %v1462 = vadd.f32 %v937, %v1394
        %v1463 = vadd.f32 %v943, %v1393
        %v1464 = vadd.f32 %v949, %v1392
        %v1465 = vadd.f32 %v955, %v1391
        %v1466 = vadd.f32 %v961, %v1390
        %v1467 = vadd.f32 %v967, %v1389
        %v1468 = vadd.f32 %v973, %v1388
        %v1469 = vadd.f32 %v979, %v1387
        %v1470 = vadd.f32 %v985, %v1386
        %v1471 = vadd.f32 %v991, %v1385
        %v1472 = vadd.f32 %v997, %v1384
        %v1473 = vadd.f32 %v1003, %v1383
        %v1474 = vadd.f32 %v1009, %v1382
        %v1475 = vadd.f32 %v1015, %v1381
        %v1476 = vadd.f32 %v1021, %v1428
        %v1477 = vrot.slane %v1092, 2
        %v1478 = vrot.slane %v1097, 2
        %v1479 = vrot.slane %v1102, 2
        %v1480 = vrot.slane %v1107, 2
        %v1481 = vrot.slane %v1112, 2
        %v1482 = vrot.slane %v1117, 2
        %v1483 = vrot.slane %v1122, 2
        %v1484 = vrot.slane %v1127, 2
        %v1485 = vrot.slane %v1132, 2
        %v1486 = vrot.slane %v1137, 2
        %v1487 = vrot.slane %v1142, 2
        %v1488 = vrot.slane %v1147, 2
        %v1489 = vrot.slane %v1152, 2
        %v1490 = vrot.slane %v1157, 2
        %v1491 = vrot.slane %v1162, 2
        %v1492 = vrot.slane %v1167, 2
        %v1493 = vrot.slane %v1172, 2
        %v1494 = vrot.slane %v1177, 2
        %v1495 = vrot.slane %v1182, 2
        %v1496 = vrot.slane %v1187, 2
        %v1497 = vrot.slane %v1192, 2
        %v1498 = vrot.slane %v1197, 2
        %v1499 = vrot.slane %v1202, 2
        %v1500 = vrot.slane %v1207, 2
        %v1501 = vrot.slane %v1212, 2
        %v1502 = vrot.slane %v1217, 2
        %v1503 = vrot.slane %v1222, 2
        %v1504 = vrot.slane %v1227, 2
        %v1505 = vrot.slane %v1232, 2
        %v1506 = vrot.slane %v1237, 2
        %v1507 = vrot.slane %v1242, 2
        %v1508 = vrot.slane %v1247, 2
        %v1509 = vrot.slane %v1252, 2
        %v1510 = vrot.slane %v1257, 2
        %v1511 = vrot.slane %v1262, 2
        %v1512 = vrot.slane %v1267, 2
        %v1513 = vrot.slane %v1272, 2
        %v1514 = vrot.slane %v1277, 2
        %v1515 = vrot.slane %v1282, 2
        %v1516 = vrot.slane %v1287, 2
        %v1517 = vrot.slane %v1292, 2
        %v1518 = vrot.slane %v1297, 2
        %v1519 = vrot.slane %v1302, 2
        %v1520 = vrot.slane %v1307, 2
        %v1521 = vrot.slane %v1312, 2
        %v1522 = vrot.slane %v1317, 2
        %v1523 = vrot.slane %v1322, 2
        %v1524 = vrot.slane %v1327, 2
        %vm1525 = vcmp.lt.s32.totalorder %v1379, 6
        %v1526 = vsel %vm1525, %v1523, %v1524
        %v1527 = vsel %vm1525, %v1522, %v1523
        %v1528 = vsel %vm1525, %v1521, %v1522
        %v1529 = vsel %vm1525, %v1520, %v1521
        %v1530 = vsel %vm1525, %v1519, %v1520
        %v1531 = vsel %vm1525, %v1518, %v1519
        %v1532 = vsel %vm1525, %v1517, %v1518
        %v1533 = vsel %vm1525, %v1516, %v1517
        %v1534 = vsel %vm1525, %v1515, %v1516
        %v1535 = vsel %vm1525, %v1514, %v1515
        %v1536 = vsel %vm1525, %v1513, %v1514
        %v1537 = vsel %vm1525, %v1512, %v1513
        %v1538 = vsel %vm1525, %v1511, %v1512
        %v1539 = vsel %vm1525, %v1510, %v1511
        %v1540 = vsel %vm1525, %v1509, %v1510
        %v1541 = vsel %vm1525, %v1508, %v1509
        %v1542 = vsel %vm1525, %v1507, %v1508
        %v1543 = vsel %vm1525, %v1506, %v1507
        %v1544 = vsel %vm1525, %v1505, %v1506
        %v1545 = vsel %vm1525, %v1504, %v1505
        %v1546 = vsel %vm1525, %v1503, %v1504
        %v1547 = vsel %vm1525, %v1502, %v1503
        %v1548 = vsel %vm1525, %v1501, %v1502
        %v1549 = vsel %vm1525, %v1500, %v1501
        %v1550 = vsel %vm1525, %v1499, %v1500
        %v1551 = vsel %vm1525, %v1498, %v1499
        %v1552 = vsel %vm1525, %v1497, %v1498
        %v1553 = vsel %vm1525, %v1496, %v1497
        %v1554 = vsel %vm1525, %v1495, %v1496
        %v1555 = vsel %vm1525, %v1494, %v1495
        %v1556 = vsel %vm1525, %v1493, %v1494
        %v1557 = vsel %vm1525, %v1492, %v1493
        %v1558 = vsel %vm1525, %v1491, %v1492
        %v1559 = vsel %vm1525, %v1490, %v1491
        %v1560 = vsel %vm1525, %v1489, %v1490
        %v1561 = vsel %vm1525, %v1488, %v1489
        %v1562 = vsel %vm1525, %v1487, %v1488
        %v1563 = vsel %vm1525, %v1486, %v1487
        %v1564 = vsel %vm1525, %v1485, %v1486
        %v1565 = vsel %vm1525, %v1484, %v1485
        %v1566 = vsel %vm1525, %v1483, %v1484
        %v1567 = vsel %vm1525, %v1482, %v1483
        %v1568 = vsel %vm1525, %v1481, %v1482
        %v1569 = vsel %vm1525, %v1480, %v1481
        %v1570 = vsel %vm1525, %v1479, %v1480
        %v1571 = vsel %vm1525, %v1478, %v1479
        %v1572 = vsel %vm1525, %v1477, %v1478
        %v1573 = vsel %vm1525, %v1524, %v1477
        %v1574 = vadd.f32 %v1429, %v1572
        %v1575 = vadd.f32 %v1430, %v1571
        %v1576 = vadd.f32 %v1431, %v1570
        %v1577 = vadd.f32 %v1432, %v1569
        %v1578 = vadd.f32 %v1433, %v1568
        %v1579 = vadd.f32 %v1434, %v1567
        %v1580 = vadd.f32 %v1435, %v1566
        %v1581 = vadd.f32 %v1436, %v1565
        %v1582 = vadd.f32 %v1437, %v1564
        %v1583 = vadd.f32 %v1438, %v1563
        %v1584 = vadd.f32 %v1439, %v1562
        %v1585 = vadd.f32 %v1440, %v1561
        %v1586 = vadd.f32 %v1441, %v1560
        %v1587 = vadd.f32 %v1442, %v1559
        %v1588 = vadd.f32 %v1443, %v1558
        %v1589 = vadd.f32 %v1444, %v1557
        %v1590 = vadd.f32 %v1445, %v1556
        %v1591 = vadd.f32 %v1446, %v1555
        %v1592 = vadd.f32 %v1447, %v1554
        %v1593 = vadd.f32 %v1448, %v1553
        %v1594 = vadd.f32 %v1449, %v1552
        %v1595 = vadd.f32 %v1450, %v1551
        %v1596 = vadd.f32 %v1451, %v1550
        %v1597 = vadd.f32 %v1452, %v1549
        %v1598 = vadd.f32 %v1453, %v1548
        %v1599 = vadd.f32 %v1454, %v1547
        %v1600 = vadd.f32 %v1455, %v1546
        %v1601 = vadd.f32 %v1456, %v1545
        %v1602 = vadd.f32 %v1457, %v1544
        %v1603 = vadd.f32 %v1458, %v1543
        %v1604 = vadd.f32 %v1459, %v1542
        %v1605 = vadd.f32 %v1460, %v1541
        %v1606 = vadd.f32 %v1461, %v1540
        %v1607 = vadd.f32 %v1462, %v1539
        %v1608 = vadd.f32 %v1463, %v1538
        %v1609 = vadd.f32 %v1464, %v1537
        %v1610 = vadd.f32 %v1465, %v1536
        %v1611 = vadd.f32 %v1466, %v1535
        %v1612 = vadd.f32 %v1467, %v1534
        %v1613 = vadd.f32 %v1468, %v1533
        %v1614 = vadd.f32 %v1469, %v1532
        %v1615 = vadd.f32 %v1470, %v1531
        %v1616 = vadd.f32 %v1471, %v1530
        %v1617 = vadd.f32 %v1472, %v1529
        %v1618 = vadd.f32 %v1473, %v1528
        %v1619 = vadd.f32 %v1474, %v1527
        %v1620 = vadd.f32 %v1475, %v1526
        %v1621 = vadd.f32 %v1476, %v1573
        %v1622 = vld [vmem:[#allocation2] sm:$0xff]
        %v1623 = vld [vmem:[#allocation2 + $0x8] sm:$0xff]
        %v1624 = vld [vmem:[#allocation2 + $0x10] sm:$0xff]
        %v1625 = vld [vmem:[#allocation2 + $0x18] sm:$0xff]
        %v1626 = vld [vmem:[#allocation2 + $0x20] sm:$0xff]
        %v1627 = vld [vmem:[#allocation2 + $0x28] sm:$0xff]
        %v1628 = vld [vmem:[#allocation2 + $0x30] sm:$0xff]
        %v1629 = vld [vmem:[#allocation2 + $0x38] sm:$0xff]
        %v1630 = vld [vmem:[#allocation2 + $0x40] sm:$0xff]
        %v1631 = vld [vmem:[#allocation2 + $0x48] sm:$0xff]
        %v1632 = vld [vmem:[#allocation2 + $0x50] sm:$0xff]
        %v1633 = vld [vmem:[#allocation2 + $0x58] sm:$0xff]
        %v1634 = vld [vmem:[#allocation2 + $0x60] sm:$0xff]
        %v1635 = vld [vmem:[#allocation2 + $0x68] sm:$0xff]
        %v1636 = vld [vmem:[#allocation2 + $0x70] sm:$0xff]
        %v1637 = vld [vmem:[#allocation2 + $0x78] sm:$0xff]
        %v1638 = vld [vmem:[#allocation2 + $0x80] sm:$0xff]
        %v1639 = vld [vmem:[#allocation2 + $0x88] sm:$0xff]
        %v1640 = vld [vmem:[#allocation2 + $0x90] sm:$0xff]
        %v1641 = vld [vmem:[#allocation2 + $0x98] sm:$0xff]
        %v1642 = vld [vmem:[#allocation2 + $0xa0] sm:$0xff]
        %v1643 = vld [vmem:[#allocation2 + $0xa8] sm:$0xff]
        %v1644 = vld [vmem:[#allocation2 + $0xb0] sm:$0xff]
        %v1645 = vld [vmem:[#allocation2 + $0xb8] sm:$0xff]
        %v1646 = vld [vmem:[#allocation2 + $0xc0] sm:$0xff]
        %v1647 = vld [vmem:[#allocation2 + $0xc8] sm:$0xff]
        %v1648 = vld [vmem:[#allocation2 + $0xd0] sm:$0xff]
        %v1649 = vld [vmem:[#allocation2 + $0xd8] sm:$0xff]
        %v1650 = vld [vmem:[#allocation2 + $0xe0] sm:$0xff]
        %v1651 = vld [vmem:[#allocation2 + $0xe8] sm:$0xff]
        %v1652 = vld [vmem:[#allocation2 + $0xf0] sm:$0xff]
        %v1653 = vld [vmem:[#allocation2 + $0xf8] sm:$0xff]
        %v1654 = vld [vmem:[#allocation2 + $0x100] sm:$0xff]
        %v1655 = vld [vmem:[#allocation2 + $0x108] sm:$0xff]
        %v1656 = vld [vmem:[#allocation2 + $0x110] sm:$0xff]
        %v1657 = vld [vmem:[#allocation2 + $0x118] sm:$0xff]
        %v1658 = vld [vmem:[#allocation2 + $0x120] sm:$0xff]
        %v1659 = vld [vmem:[#allocation2 + $0x128] sm:$0xff]
        %v1660 = vld [vmem:[#allocation2 + $0x130] sm:$0xff]
        %v1661 = vld [vmem:[#allocation2 + $0x138] sm:$0xff]
        %v1662 = vld [vmem:[#allocation2 + $0x140] sm:$0xff]
        %v1663 = vld [vmem:[#allocation2 + $0x148] sm:$0xff]
        %v1664 = vld [vmem:[#allocation2 + $0x150] sm:$0xff]
        %v1665 = vld [vmem:[#allocation2 + $0x158] sm:$0xff]
        %v1666 = vld [vmem:[#allocation2 + $0x160] sm:$0xff]
        %v1667 = vld [vmem:[#allocation2 + $0x168] sm:$0xff]
        %v1668 = vld [vmem:[#allocation2 + $0x170] sm:$0xff]
        %v1669 = vld [vmem:[#allocation2 + $0x178] sm:$0xff]
        %v1670 = vadd.f32 %v1622, %v1574
        %v1671 = vadd.f32 %v1623, %v1575
        %v1672 = vadd.f32 %v1624, %v1576
        %v1673 = vadd.f32 %v1625, %v1577
        %v1674 = vadd.f32 %v1626, %v1578
        %v1675 = vadd.f32 %v1627, %v1579
        %v1676 = vadd.f32 %v1628, %v1580
        %v1677 = vadd.f32 %v1629, %v1581
        %v1678 = vadd.f32 %v1630, %v1582
        %v1679 = vadd.f32 %v1631, %v1583
        %v1680 = vadd.f32 %v1632, %v1584
        %v1681 = vadd.f32 %v1633, %v1585
        %v1682 = vadd.f32 %v1634, %v1586
        %v1683 = vadd.f32 %v1635, %v1587
        %v1684 = vadd.f32 %v1636, %v1588
        %v1685 = vadd.f32 %v1637, %v1589
        %v1686 = vadd.f32 %v1638, %v1590
        %v1687 = vadd.f32 %v1639, %v1591
        %v1688 = vadd.f32 %v1640, %v1592
        %v1689 = vadd.f32 %v1641, %v1593
        %v1690 = vadd.f32 %v1642, %v1594
        %v1691 = vadd.f32 %v1643, %v1595
        %v1692 = vadd.f32 %v1644, %v1596
        %v1693 = vadd.f32 %v1645, %v1597
        %v1694 = vadd.f32 %v1646, %v1598
        %v1695 = vadd.f32 %v1647, %v1599
        %v1696 = vadd.f32 %v1648, %v1600
        %v1697 = vadd.f32 %v1649, %v1601
        %v1698 = vadd.f32 %v1650, %v1602
        %v1699 = vadd.f32 %v1651, %v1603
        %v1700 = vadd.f32 %v1652, %v1604
        %v1701 = vadd.f32 %v1653, %v1605
        %v1702 = vadd.f32 %v1654, %v1606
        %v1703 = vadd.f32 %v1655, %v1607
        %v1704 = vadd.f32 %v1656, %v1608
        %v1705 = vadd.f32 %v1657, %v1609
        %v1706 = vadd.f32 %v1658, %v1610
        %v1707 = vadd.f32 %v1659, %v1611
        %v1708 = vadd.f32 %v1660, %v1612
        %v1709 = vadd.f32 %v1661, %v1613
        %v1710 = vadd.f32 %v1662, %v1614
        %v1711 = vadd.f32 %v1663, %v1615
        %v1712 = vadd.f32 %v1664, %v1616
        %v1713 = vadd.f32 %v1665, %v1617
        %v1714 = vadd.f32 %v1666, %v1618
        %v1715 = vadd.f32 %v1667, %v1619
        %v1716 = vadd.f32 %v1668, %v1620
        %v1717 = vadd.f32 %v1669, %v1621
        %1718 = vst [vmem:[#allocation2] sm:$0xff] %v1670
        %1719 = vst [vmem:[#allocation2 + $0x8] sm:$0xff] %v1671
        %1720 = vst [vmem:[#allocation2 + $0x10] sm:$0xff] %v1672
        %1721 = vst [vmem:[#allocation2 + $0x18] sm:$0xff] %v1673
        %1722 = vst [vmem:[#allocation2 + $0x20] sm:$0xff] %v1674
        %1723 = vst [vmem:[#allocation2 + $0x28] sm:$0xff] %v1675
        %1724 = vst [vmem:[#allocation2 + $0x30] sm:$0xff] %v1676
        %1725 = vst [vmem:[#allocation2 + $0x38] sm:$0xff] %v1677
        %1726 = vst [vmem:[#allocation2 + $0x40] sm:$0xff] %v1678
        %1727 = vst [vmem:[#allocation2 + $0x48] sm:$0xff] %v1679
        %1728 = vst [vmem:[#allocation2 + $0x50] sm:$0xff] %v1680
        %1729 = vst [vmem:[#allocation2 + $0x58] sm:$0xff] %v1681
        %1730 = vst [vmem:[#allocation2 + $0x60] sm:$0xff] %v1682
        %1731 = vst [vmem:[#allocation2 + $0x68] sm:$0xff] %v1683
        %1732 = vst [vmem:[#allocation2 + $0x70] sm:$0xff] %v1684
        %1733 = vst [vmem:[#allocation2 + $0x78] sm:$0xff] %v1685
        %1734 = vst [vmem:[#allocation2 + $0x80] sm:$0xff] %v1686
        %1735 = vst [vmem:[#allocation2 + $0x88] sm:$0xff] %v1687
        %1736 = vst [vmem:[#allocation2 + $0x90] sm:$0xff] %v1688
        %1737 = vst [vmem:[#allocation2 + $0x98] sm:$0xff] %v1689
        %1738 = vst [vmem:[#allocation2 + $0xa0] sm:$0xff] %v1690
        %1739 = vst [vmem:[#allocation2 + $0xa8] sm:$0xff] %v1691
        %1740 = vst [vmem:[#allocation2 + $0xb0] sm:$0xff] %v1692
        %1741 = vst [vmem:[#allocation2 + $0xb8] sm:$0xff] %v1693
        %1742 = vst [vmem:[#allocation2 + $0xc0] sm:$0xff] %v1694
        %1743 = vst [vmem:[#allocation2 + $0xc8] sm:$0xff] %v1695
        %1744 = vst [vmem:[#allocation2 + $0xd0] sm:$0xff] %v1696
        %1745 = vst [vmem:[#allocation2 + $0xd8] sm:$0xff] %v1697
        %1746 = vst [vmem:[#allocation2 + $0xe0] sm:$0xff] %v1698
        %1747 = vst [vmem:[#allocation2 + $0xe8] sm:$0xff] %v1699
        %1748 = vst [vmem:[#allocation2 + $0xf0] sm:$0xff] %v1700
        %1749 = vst [vmem:[#allocation2 + $0xf8] sm:$0xff] %v1701
        %1750 = vst [vmem:[#allocation2 + $0x100] sm:$0xff] %v1702
        %1751 = vst [vmem:[#allocation2 + $0x108] sm:$0xff] %v1703
        %1752 = vst [vmem:[#allocation2 + $0x110] sm:$0xff] %v1704
        %1753 = vst [vmem:[#allocation2 + $0x118] sm:$0xff] %v1705
        %1754 = vst [vmem:[#allocation2 + $0x120] sm:$0xff] %v1706
        %1755 = vst [vmem:[#allocation2 + $0x128] sm:$0xff] %v1707
        %1756 = vst [vmem:[#allocation2 + $0x130] sm:$0xff] %v1708
        %1757 = vst [vmem:[#allocation2 + $0x138] sm:$0xff] %v1709
        %1758 = vst [vmem:[#allocation2 + $0x140] sm:$0xff] %v1710
        %1759 = vst [vmem:[#allocation2 + $0x148] sm:$0xff] %v1711
        %1760 = vst [vmem:[#allocation2 + $0x150] sm:$0xff] %v1712
        %1761 = vst [vmem:[#allocation2 + $0x158] sm:$0xff] %v1713
        %1762 = vst [vmem:[#allocation2 + $0x160] sm:$0xff] %v1714
        %1763 = vst [vmem:[#allocation2 + $0x168] sm:$0xff] %v1715
        %1764 = vst [vmem:[#allocation2 + $0x170] sm:$0xff] %v1716
        %1765 = vst [vmem:[#allocation2 + $0x178] sm:$0xff] %v1717
        %s1766 = scalar_lea.vmem %s412, 384 [#allocation8]
        %v1767 = vld [vmem:[%s1766] sm:$0xff]
        %v1768 = vld [vmem:[%s1766 + $0x8] sm:$0xff]
        %v1769 = vld [vmem:[%s1766 + $0x10] sm:$0xff]
        %v1770 = vld [vmem:[%s1766 + $0x18] sm:$0xff]
        %v1771 = vld [vmem:[%s1766 + $0x20] sm:$0xff]
        %v1772 = vld [vmem:[%s1766 + $0x28] sm:$0xff]
        %v1773 = vld [vmem:[%s1766 + $0x30] sm:$0xff]
        %v1774 = vld [vmem:[%s1766 + $0x38] sm:$0xff]
        %v1775 = vld [vmem:[%s1766 + $0x40] sm:$0xff]
        %v1776 = vld [vmem:[%s1766 + $0x48] sm:$0xff]
        %v1777 = vld [vmem:[%s1766 + $0x50] sm:$0xff]
        %v1778 = vld [vmem:[%s1766 + $0x58] sm:$0xff]
        %v1779 = vld [vmem:[%s1766 + $0x60] sm:$0xff]
        %v1780 = vld [vmem:[%s1766 + $0x68] sm:$0xff]
        %v1781 = vld [vmem:[%s1766 + $0x70] sm:$0xff]
        %v1782 = vld [vmem:[%s1766 + $0x78] sm:$0xff]
        %v1783 = vld [vmem:[%s1766 + $0x80] sm:$0xff]
        %v1784 = vld [vmem:[%s1766 + $0x88] sm:$0xff]
        %v1785 = vld [vmem:[%s1766 + $0x90] sm:$0xff]
        %v1786 = vld [vmem:[%s1766 + $0x98] sm:$0xff]
        %v1787 = vld [vmem:[%s1766 + $0xa0] sm:$0xff]
        %v1788 = vld [vmem:[%s1766 + $0xa8] sm:$0xff]
        %v1789 = vld [vmem:[%s1766 + $0xb0] sm:$0xff]
        %v1790 = vld [vmem:[%s1766 + $0xb8] sm:$0xff]
        %v1791 = vld [vmem:[%s1766 + $0xc0] sm:$0xff]
        %v1792 = vld [vmem:[%s1766 + $0xc8] sm:$0xff]
        %v1793 = vld [vmem:[%s1766 + $0xd0] sm:$0xff]
        %v1794 = vld [vmem:[%s1766 + $0xd8] sm:$0xff]
        %v1795 = vld [vmem:[%s1766 + $0xe0] sm:$0xff]
        %v1796 = vld [vmem:[%s1766 + $0xe8] sm:$0xff]
        %v1797 = vld [vmem:[%s1766 + $0xf0] sm:$0xff]
        %v1798 = vld [vmem:[%s1766 + $0xf8] sm:$0xff]
        %v1799 = vld [vmem:[%s1766 + $0x100] sm:$0xff]
        %v1800 = vld [vmem:[%s1766 + $0x108] sm:$0xff]
        %v1801 = vld [vmem:[%s1766 + $0x110] sm:$0xff]
        %v1802 = vld [vmem:[%s1766 + $0x118] sm:$0xff]
        %v1803 = vld [vmem:[%s1766 + $0x120] sm:$0xff]
        %v1804 = vld [vmem:[%s1766 + $0x128] sm:$0xff]
        %v1805 = vld [vmem:[%s1766 + $0x130] sm:$0xff]
        %v1806 = vld [vmem:[%s1766 + $0x138] sm:$0xff]
        %v1807 = vld [vmem:[%s1766 + $0x140] sm:$0xff]
        %v1808 = vld [vmem:[%s1766 + $0x148] sm:$0xff]
        %v1809 = vld [vmem:[%s1766 + $0x150] sm:$0xff]
        %v1810 = vld [vmem:[%s1766 + $0x158] sm:$0xff]
        %v1811 = vld [vmem:[%s1766 + $0x160] sm:$0xff]
        %v1812 = vld [vmem:[%s1766 + $0x168] sm:$0xff]
        %v1813 = vld [vmem:[%s1766 + $0x170] sm:$0xff]
        %v1814 = vld [vmem:[%s1766 + $0x178] sm:$0xff]
        %1815 = vmatprep.subr.mxu0 %v1768
        %1816 = vmatpush1.msra.mxu0 %v1767
        %1817 = vmatprep.subr.mxu0 %v1771
        %1818 = vmatpush1.msra.mxu0 %v1770
        %1819 = vmatprep.subr.mxu0 %v1774
        %1820 = vmatpush1.msra.mxu0 %v1773
        %1821 = vmatprep.subr.mxu0 %v1777
        %1822 = vmatpush1.msra.mxu0 %v1776
        %1823 = vmatprep.subr.mxu0 %v1780
        %1824 = vmatpush1.msra.mxu0 %v1779
        %1825 = vmatprep.subr.mxu0 %v1783
        %1826 = vmatpush1.msra.mxu0 %v1782
        %1827 = vmatprep.subr.mxu0 %v1786
        %1828 = vmatpush1.msra.mxu0 %v1785
        %1829 = vmatprep.subr.mxu0 %v1789
        %1830 = vmatpush1.msra.mxu0 %v1788
        %1831 = vmatprep.subr.mxu0 %v1792
        %1832 = vmatpush1.msra.mxu0 %v1791
        %1833 = vmatprep.subr.mxu0 %v1795
        %1834 = vmatpush1.msra.mxu0 %v1794
        %1835 = vmatprep.subr.mxu0 %v1798
        %1836 = vmatpush1.msra.mxu0 %v1797
        %1837 = vmatprep.subr.mxu0 %v1801
        %1838 = vmatpush1.msra.mxu0 %v1800
        %1839 = vmatprep.subr.mxu0 %v1804
        %1840 = vmatpush1.msra.mxu0 %v1803
        %1841 = vmatprep.subr.mxu0 %v1807
        %1842 = vmatpush1.msra.mxu0 %v1806
        %1843 = vmatprep.subr.mxu0 %v1810
        %1844 = vmatpush1.msra.mxu0 %v1809
        %1845 = vmatprep.subr.mxu0 %v1813
        %1846 = vmatpush1.msra.mxu0 %v1812
        %1847 = vmatprep.subr.mxu0 0.0
        %1848 = vmatpush1.msra.mxu0 0.0
        %1849 = vmatprep.subr.mxu0 0.0
        %1850 = vmatpush1.msra.mxu0 0.0
        %1851 = vmatprep.subr.mxu0 0.0
        %1852 = vmatpush1.msra.mxu0 0.0
        %1853 = vmatprep.subr.mxu0 0.0
        %1854 = vmatpush1.msra.mxu0 0.0
        %1855 = vmatprep.subr.mxu0 0.0
        %1856 = vmatpush1.msra.mxu0 0.0
        %1857 = vmatprep.subr.mxu0 0.0
        %1858 = vmatpush1.msra.mxu0 0.0
        %1859 = vmatprep.subr.mxu0 0.0
        %1860 = vmatpush1.msra.mxu0 0.0
        %1861 = vmatprep.subr.mxu0 0.0
        %1862 = vmatpush1.msra.mxu0 0.0
        %1863 = vmatprep.subr.mxu0 0.0
        %1864 = vmatpush1.msra.mxu0 0.0
        %1865 = vmatprep.subr.mxu0 0.0
        %1866 = vmatpush1.msra.mxu0 0.0
        %1867 = vmatprep.subr.mxu0 0.0
        %1868 = vmatpush1.msra.mxu0 0.0
        %1869 = vmatprep.subr.mxu0 0.0
        %1870 = vmatpush1.msra.mxu0 0.0
        %1871 = vmatprep.subr.mxu0 0.0
        %1872 = vmatpush1.msra.mxu0 0.0
        %1873 = vmatprep.subr.mxu0 0.0
        %1874 = vmatpush1.msra.mxu0 0.0
        %1875 = vmatprep.subr.mxu0 0.0
        %1876 = vmatpush1.msra.mxu0 0.0
        %1877 = vmatprep.subr.mxu0 0.0
        %1878 = vmatpush1.msra.mxu0 0.0
        %1879 = vmatprep.mubr.f32.mxu0 0.0
        %1880 = vmatmul.mubr.f32.gmra.mrb[0].mxu0 %v573
        %v1881 = vpop.f32.mrb[0].mxu0
        %v1882 = vadd.f32 0.0, %v1881
        %v1883 = vpop.f32.mrb[0].mxu0
        %v1884 = vadd.f32 0.0, %v1883
        %1885 = vmatprep.mubr.f32.mxu0 0.0
        %1886 = vmatmul.mubr.f32.gmra.mrb[0].mxu0 %v574
        %v1887 = vpop.f32.mrb[0].mxu0
        %v1888 = vadd.f32 0.0, %v1887
        %v1889 = vpop.f32.mrb[0].mxu0
        %v1890 = vadd.f32 0.0, %v1889
        %1891 = vmatprep.mubr.f32.mxu0 0.0
        %1892 = vmatmul.mubr.f32.gmra.mrb[0].mxu0 %v575
        %v1893 = vpop.f32.mrb[0].mxu0
        %v1894 = vadd.f32 0.0, %v1893
        %v1895 = vpop.f32.mrb[0].mxu0
        %v1896 = vadd.f32 0.0, %v1895
        %1897 = vmatprep.mubr.f32.mxu0 0.0
        %1898 = vmatmul.mubr.f32.gmra.mrb[0].mxu0 %v576
        %v1899 = vpop.f32.mrb[0].mxu0
        %v1900 = vadd.f32 0.0, %v1899
        %v1901 = vpop.f32.mrb[0].mxu0
        %v1902 = vadd.f32 0.0, %v1901
        %1903 = vmatprep.mubr.f32.mxu0 0.0
        %1904 = vmatmul.mubr.f32.gmra.mrb[0].mxu0 %v577
        %v1905 = vpop.f32.mrb[0].mxu0
        %v1906 = vadd.f32 0.0, %v1905
        %v1907 = vpop.f32.mrb[0].mxu0
        %v1908 = vadd.f32 0.0, %v1907
        %1909 = vmatprep.mubr.f32.mxu0 0.0
        %1910 = vmatmul.mubr.f32.gmra.mrb[0].mxu0 %v578
        %v1911 = vpop.f32.mrb[0].mxu0
        %v1912 = vadd.f32 0.0, %v1911
        %v1913 = vpop.f32.mrb[0].mxu0
        %v1914 = vadd.f32 0.0, %v1913
        %1915 = vmatprep.mubr.f32.mxu0 0.0
        %1916 = vmatmul.mubr.f32.gmra.mrb[0].mxu0 %v579
        %v1917 = vpop.f32.mrb[0].mxu0
        %v1918 = vadd.f32 0.0, %v1917
        %v1919 = vpop.f32.mrb[0].mxu0
        %v1920 = vadd.f32 0.0, %v1919
        %1921 = vmatprep.mubr.f32.mxu0 0.0
        %1922 = vmatmul.mubr.f32.gmra.mrb[0].mxu0 %v580
        %v1923 = vpop.f32.mrb[0].mxu0
        %v1924 = vadd.f32 0.0, %v1923
        %v1925 = vpop.f32.mrb[0].mxu0
        %v1926 = vadd.f32 0.0, %v1925
        %1927 = vmatprep.mubr.f32.mxu0 0.0
        %1928 = vmatmul.mubr.f32.gmra.mrb[0].mxu0 %v581
        %v1929 = vpop.f32.mrb[0].mxu0
        %v1930 = vadd.f32 0.0, %v1929
        %v1931 = vpop.f32.mrb[0].mxu0
        %v1932 = vadd.f32 0.0, %v1931
        %1933 = vmatprep.mubr.f32.mxu0 0.0
        %1934 = vmatmul.mubr.f32.gmra.mrb[0].mxu0 %v582
        %v1935 = vpop.f32.mrb[0].mxu0
        %v1936 = vadd.f32 0.0, %v1935
        %v1937 = vpop.f32.mrb[0].mxu0
        %v1938 = vadd.f32 0.0, %v1937
        %1939 = vmatprep.mubr.f32.mxu0 0.0
        %1940 = vmatmul.mubr.f32.gmra.mrb[0].mxu0 %v583
        %v1941 = vpop.f32.mrb[0].mxu0
        %v1942 = vadd.f32 0.0, %v1941
        %v1943 = vpop.f32.mrb[0].mxu0
        %v1944 = vadd.f32 0.0, %v1943
        %1945 = vmatprep.mubr.f32.mxu0 0.0
        %1946 = vmatmul.mubr.f32.gmra.mrb[0].mxu0 %v584
        %v1947 = vpop.f32.mrb[0].mxu0
        %v1948 = vadd.f32 0.0, %v1947
        %v1949 = vpop.f32.mrb[0].mxu0
        %v1950 = vadd.f32 0.0, %v1949
        %1951 = vmatprep.mubr.f32.mxu0 0.0
        %1952 = vmatmul.mubr.f32.gmra.mrb[0].mxu0 %v585
        %v1953 = vpop.f32.mrb[0].mxu0
        %v1954 = vadd.f32 0.0, %v1953
        %v1955 = vpop.f32.mrb[0].mxu0
        %v1956 = vadd.f32 0.0, %v1955
        %1957 = vmatprep.mubr.f32.mxu0 0.0
        %1958 = vmatmul.mubr.f32.gmra.mrb[0].mxu0 %v586
        %v1959 = vpop.f32.mrb[0].mxu0
        %v1960 = vadd.f32 0.0, %v1959
        %v1961 = vpop.f32.mrb[0].mxu0
        %v1962 = vadd.f32 0.0, %v1961
        %1963 = vmatprep.mubr.f32.mxu0 0.0
        %1964 = vmatmul.mubr.f32.gmra.mrb[0].mxu0 %v587
        %v1965 = vpop.f32.mrb[0].mxu0
        %v1966 = vadd.f32 0.0, %v1965
        %v1967 = vpop.f32.mrb[0].mxu0
        %v1968 = vadd.f32 0.0, %v1967
        %1969 = vmatprep.mubr.f32.mxu0 0.0
        %1970 = vmatmul.mubr.f32.gmra.mrb[0].mxu0 %v588
        %v1971 = vpop.f32.mrb[0].mxu0
        %v1972 = vadd.f32 0.0, %v1971
        %v1973 = vpop.f32.mrb[0].mxu0
        %v1974 = vadd.f32 0.0, %v1973
        %1975 = vmatprep.mubr.f32.mxu0 0.0
        %1976 = vmatmul.mubr.f32.gmra.mrb[0].mxu0 %v589
        %v1977 = vpop.f32.mrb[0].mxu0
        %v1978 = vadd.f32 0.0, %v1977
        %v1979 = vpop.f32.mrb[0].mxu0
        %v1980 = vadd.f32 0.0, %v1979
        %1981 = vmatprep.mubr.f32.mxu0 0.0
        %1982 = vmatmul.mubr.f32.gmra.mrb[0].mxu0 %v590
        %v1983 = vpop.f32.mrb[0].mxu0
        %v1984 = vadd.f32 0.0, %v1983
        %v1985 = vpop.f32.mrb[0].mxu0
        %v1986 = vadd.f32 0.0, %v1985
        %1987 = vmatprep.mubr.f32.mxu0 0.0
        %1988 = vmatmul.mubr.f32.gmra.mrb[0].mxu0 %v591
        %v1989 = vpop.f32.mrb[0].mxu0
        %v1990 = vadd.f32 0.0, %v1989
        %v1991 = vpop.f32.mrb[0].mxu0
        %v1992 = vadd.f32 0.0, %v1991
        %1993 = vmatprep.mubr.f32.mxu0 0.0
        %1994 = vmatmul.mubr.f32.gmra.mrb[0].mxu0 %v592
        %v1995 = vpop.f32.mrb[0].mxu0
        %v1996 = vadd.f32 0.0, %v1995
        %v1997 = vpop.f32.mrb[0].mxu0
        %v1998 = vadd.f32 0.0, %v1997
        %1999 = vmatprep.mubr.f32.mxu0 0.0
        %2000 = vmatmul.mubr.f32.gmra.mrb[0].mxu0 %v593
        %v2001 = vpop.f32.mrb[0].mxu0
        %v2002 = vadd.f32 0.0, %v2001
        %v2003 = vpop.f32.mrb[0].mxu0
        %v2004 = vadd.f32 0.0, %v2003
        %2005 = vmatprep.mubr.f32.mxu0 0.0
        %2006 = vmatmul.mubr.f32.gmra.mrb[0].mxu0 %v594
        %v2007 = vpop.f32.mrb[0].mxu0
        %v2008 = vadd.f32 0.0, %v2007
        %v2009 = vpop.f32.mrb[0].mxu0
        %v2010 = vadd.f32 0.0, %v2009
        %2011 = vmatprep.mubr.f32.mxu0 0.0
        %2012 = vmatmul.mubr.f32.gmra.mrb[0].mxu0 %v595
        %v2013 = vpop.f32.mrb[0].mxu0
        %v2014 = vadd.f32 0.0, %v2013
        %v2015 = vpop.f32.mrb[0].mxu0
        %v2016 = vadd.f32 0.0, %v2015
        %2017 = vmatprep.mubr.f32.mxu0 0.0
        %2018 = vmatmul.mubr.f32.gmra.mrb[0].mxu0 %v596
        %v2019 = vpop.f32.mrb[0].mxu0
        %v2020 = vadd.f32 0.0, %v2019
        %v2021 = vpop.f32.mrb[0].mxu0
        %v2022 = vadd.f32 0.0, %v2021
        %2023 = vmatprep.mubr.f32.mxu0 0.0
        %2024 = vmatmul.mubr.f32.gmra.mrb[0].mxu0 %v597
        %v2025 = vpop.f32.mrb[0].mxu0
        %v2026 = vadd.f32 0.0, %v2025
        %v2027 = vpop.f32.mrb[0].mxu0
        %v2028 = vadd.f32 0.0, %v2027
        %2029 = vmatprep.mubr.f32.mxu0 0.0
        %2030 = vmatmul.mubr.f32.gmra.mrb[0].mxu0 %v598
        %v2031 = vpop.f32.mrb[0].mxu0
        %v2032 = vadd.f32 0.0, %v2031
        %v2033 = vpop.f32.mrb[0].mxu0
        %v2034 = vadd.f32 0.0, %v2033
        %2035 = vmatprep.mubr.f32.mxu0 0.0
        %2036 = vmatmul.mubr.f32.gmra.mrb[0].mxu0 %v599
        %v2037 = vpop.f32.mrb[0].mxu0
        %v2038 = vadd.f32 0.0, %v2037
        %v2039 = vpop.f32.mrb[0].mxu0
        %v2040 = vadd.f32 0.0, %v2039
        %2041 = vmatprep.mubr.f32.mxu0 0.0
        %2042 = vmatmul.mubr.f32.gmra.mrb[0].mxu0 %v600
        %v2043 = vpop.f32.mrb[0].mxu0
        %v2044 = vadd.f32 0.0, %v2043
        %v2045 = vpop.f32.mrb[0].mxu0
        %v2046 = vadd.f32 0.0, %v2045
        %2047 = vmatprep.mubr.f32.mxu0 0.0
        %2048 = vmatmul.mubr.f32.gmra.mrb[0].mxu0 %v601
        %v2049 = vpop.f32.mrb[0].mxu0
        %v2050 = vadd.f32 0.0, %v2049
        %v2051 = vpop.f32.mrb[0].mxu0
        %v2052 = vadd.f32 0.0, %v2051
        %2053 = vmatprep.mubr.f32.mxu0 0.0
        %2054 = vmatmul.mubr.f32.gmra.mrb[0].mxu0 %v602
        %v2055 = vpop.f32.mrb[0].mxu0
        %v2056 = vadd.f32 0.0, %v2055
        %v2057 = vpop.f32.mrb[0].mxu0
        %v2058 = vadd.f32 0.0, %v2057
        %2059 = vmatprep.mubr.f32.mxu0 0.0
        %2060 = vmatmul.mubr.f32.gmra.mrb[0].mxu0 %v603
        %v2061 = vpop.f32.mrb[0].mxu0
        %v2062 = vadd.f32 0.0, %v2061
        %v2063 = vpop.f32.mrb[0].mxu0
        %v2064 = vadd.f32 0.0, %v2063
        %2065 = vmatprep.mubr.f32.mxu0 0.0
        %2066 = vmatmul.mubr.f32.gmra.mrb[0].mxu0 %v604
        %v2067 = vpop.f32.mrb[0].mxu0
        %v2068 = vadd.f32 0.0, %v2067
        %v2069 = vpop.f32.mrb[0].mxu0
        %v2070 = vadd.f32 0.0, %v2069
        %2071 = vmatprep.mubr.f32.mxu0 0.0
        %2072 = vmatmul.mubr.f32.gmra.mrb[0].mxu0 %v605
        %v2073 = vpop.f32.mrb[0].mxu0
        %v2074 = vadd.f32 0.0, %v2073
        %v2075 = vpop.f32.mrb[0].mxu0
        %v2076 = vadd.f32 0.0, %v2075
        %2077 = vmatprep.mubr.f32.mxu0 0.0
        %2078 = vmatmul.mubr.f32.gmra.mrb[0].mxu0 %v606
        %v2079 = vpop.f32.mrb[0].mxu0
        %v2080 = vadd.f32 0.0, %v2079
        %v2081 = vpop.f32.mrb[0].mxu0
        %v2082 = vadd.f32 0.0, %v2081
        %2083 = vmatprep.mubr.f32.mxu0 0.0
        %2084 = vmatmul.mubr.f32.gmra.mrb[0].mxu0 %v607
        %v2085 = vpop.f32.mrb[0].mxu0
        %v2086 = vadd.f32 0.0, %v2085
        %v2087 = vpop.f32.mrb[0].mxu0
        %v2088 = vadd.f32 0.0, %v2087
        %2089 = vmatprep.mubr.f32.mxu0 0.0
        %2090 = vmatmul.mubr.f32.gmra.mrb[0].mxu0 %v608
        %v2091 = vpop.f32.mrb[0].mxu0
        %v2092 = vadd.f32 0.0, %v2091
        %v2093 = vpop.f32.mrb[0].mxu0
        %v2094 = vadd.f32 0.0, %v2093
        %2095 = vmatprep.mubr.f32.mxu0 0.0
        %2096 = vmatmul.mubr.f32.gmra.mrb[0].mxu0 %v609
        %v2097 = vpop.f32.mrb[0].mxu0
        %v2098 = vadd.f32 0.0, %v2097
        %v2099 = vpop.f32.mrb[0].mxu0
        %v2100 = vadd.f32 0.0, %v2099
        %2101 = vmatprep.mubr.f32.mxu0 0.0
        %2102 = vmatmul.mubr.f32.gmra.mrb[0].mxu0 %v610
        %v2103 = vpop.f32.mrb[0].mxu0
        %v2104 = vadd.f32 0.0, %v2103
        %v2105 = vpop.f32.mrb[0].mxu0
        %v2106 = vadd.f32 0.0, %v2105
        %2107 = vmatprep.mubr.f32.mxu0 0.0
        %2108 = vmatmul.mubr.f32.gmra.mrb[0].mxu0 %v611
        %v2109 = vpop.f32.mrb[0].mxu0
        %v2110 = vadd.f32 0.0, %v2109
        %v2111 = vpop.f32.mrb[0].mxu0
        %v2112 = vadd.f32 0.0, %v2111
        %2113 = vmatprep.mubr.f32.mxu0 0.0
        %2114 = vmatmul.mubr.f32.gmra.mrb[0].mxu0 %v612
        %v2115 = vpop.f32.mrb[0].mxu0
        %v2116 = vadd.f32 0.0, %v2115
        %v2117 = vpop.f32.mrb[0].mxu0
        %v2118 = vadd.f32 0.0, %v2117
        %2119 = vmatprep.mubr.f32.mxu0 0.0
        %2120 = vmatmul.mubr.f32.gmra.mrb[0].mxu0 %v613
        %v2121 = vpop.f32.mrb[0].mxu0
        %v2122 = vadd.f32 0.0, %v2121
        %v2123 = vpop.f32.mrb[0].mxu0
        %v2124 = vadd.f32 0.0, %v2123
        %2125 = vmatprep.mubr.f32.mxu0 0.0
        %2126 = vmatmul.mubr.f32.gmra.mrb[0].mxu0 %v614
        %v2127 = vpop.f32.mrb[0].mxu0
        %v2128 = vadd.f32 0.0, %v2127
        %v2129 = vpop.f32.mrb[0].mxu0
        %v2130 = vadd.f32 0.0, %v2129
        %2131 = vmatprep.mubr.f32.mxu0 0.0
        %2132 = vmatmul.mubr.f32.gmra.mrb[0].mxu0 %v615
        %v2133 = vpop.f32.mrb[0].mxu0
        %v2134 = vadd.f32 0.0, %v2133
        %v2135 = vpop.f32.mrb[0].mxu0
        %v2136 = vadd.f32 0.0, %v2135
        %2137 = vmatprep.mubr.f32.mxu0 0.0
        %2138 = vmatmul.mubr.f32.gmra.mrb[0].mxu0 %v616
        %v2139 = vpop.f32.mrb[0].mxu0
        %v2140 = vadd.f32 0.0, %v2139
        %v2141 = vpop.f32.mrb[0].mxu0
        %v2142 = vadd.f32 0.0, %v2141
        %2143 = vmatprep.mubr.f32.mxu0 0.0
        %2144 = vmatmul.mubr.f32.gmra.mrb[0].mxu0 %v617
        %v2145 = vpop.f32.mrb[0].mxu0
        %v2146 = vadd.f32 0.0, %v2145
        %v2147 = vpop.f32.mrb[0].mxu0
        %v2148 = vadd.f32 0.0, %v2147
        %2149 = vmatprep.mubr.f32.mxu0 0.0
        %2150 = vmatmul.mubr.f32.gmra.mrb[0].mxu0 %v618
        %v2151 = vpop.f32.mrb[0].mxu0
        %v2152 = vadd.f32 0.0, %v2151
        %v2153 = vpop.f32.mrb[0].mxu0
        %v2154 = vadd.f32 0.0, %v2153
        %2155 = vmatprep.mubr.f32.mxu0 0.0
        %2156 = vmatmul.mubr.f32.gmra.mrb[0].mxu0 %v619
        %v2157 = vpop.f32.mrb[0].mxu0
        %v2158 = vadd.f32 0.0, %v2157
        %v2159 = vpop.f32.mrb[0].mxu0
        %v2160 = vadd.f32 0.0, %v2159
        %2161 = vmatprep.mubr.f32.mxu0 0.0
        %2162 = vmatmul.mubr.f32.gmra.mrb[0].mxu0 %v620
        %v2163 = vpop.f32.mrb[0].mxu0
        %v2164 = vadd.f32 0.0, %v2163
        %v2165 = vpop.f32.mrb[0].mxu0
        %v2166 = vadd.f32 0.0, %v2165
        %2167 = vdwg.mxu0
        %2168 = vmatprep.subr.mxu0 0.0
        %2169 = vmatpush1.msra.mxu0 %v1769
        %2170 = vmatprep.subr.mxu0 0.0
        %2171 = vmatpush1.msra.mxu0 %v1772
        %2172 = vmatprep.subr.mxu0 0.0
        %2173 = vmatpush1.msra.mxu0 %v1775
        %2174 = vmatprep.subr.mxu0 0.0
        %2175 = vmatpush1.msra.mxu0 %v1778
        %2176 = vmatprep.subr.mxu0 0.0
        %2177 = vmatpush1.msra.mxu0 %v1781
        %2178 = vmatprep.subr.mxu0 0.0
        %2179 = vmatpush1.msra.mxu0 %v1784
        %2180 = vmatprep.subr.mxu0 0.0
        %2181 = vmatpush1.msra.mxu0 %v1787
        %2182 = vmatprep.subr.mxu0 0.0
        %2183 = vmatpush1.msra.mxu0 %v1790
        %2184 = vmatprep.subr.mxu0 0.0
        %2185 = vmatpush1.msra.mxu0 %v1793
        %2186 = vmatprep.subr.mxu0 0.0
        %2187 = vmatpush1.msra.mxu0 %v1796
        %2188 = vmatprep.subr.mxu0 0.0
        %2189 = vmatpush1.msra.mxu0 %v1799
        %2190 = vmatprep.subr.mxu0 0.0
        %2191 = vmatpush1.msra.mxu0 %v1802
        %2192 = vmatprep.subr.mxu0 0.0
        %2193 = vmatpush1.msra.mxu0 %v1805
        %2194 = vmatprep.subr.mxu0 0.0
        %2195 = vmatpush1.msra.mxu0 %v1808
        %2196 = vmatprep.subr.mxu0 0.0
        %2197 = vmatpush1.msra.mxu0 %v1811
        %2198 = vmatprep.subr.mxu0 0.0
        %2199 = vmatpush1.msra.mxu0 %v1814
        %2200 = vmatprep.subr.mxu0 0.0
        %2201 = vmatpush1.msra.mxu0 0.0
        %2202 = vmatprep.subr.mxu0 0.0
        %2203 = vmatpush1.msra.mxu0 0.0
        %2204 = vmatprep.subr.mxu0 0.0
        %2205 = vmatpush1.msra.mxu0 0.0
        %2206 = vmatprep.subr.mxu0 0.0
        %2207 = vmatpush1.msra.mxu0 0.0
        %2208 = vmatprep.subr.mxu0 0.0
        %2209 = vmatpush1.msra.mxu0 0.0
        %2210 = vmatprep.subr.mxu0 0.0
        %2211 = vmatpush1.msra.mxu0 0.0
        %2212 = vmatprep.subr.mxu0 0.0
        %2213 = vmatpush1.msra.mxu0 0.0
        %2214 = vmatprep.subr.mxu0 0.0
        %2215 = vmatpush1.msra.mxu0 0.0
        %2216 = vmatprep.subr.mxu0 0.0
        %2217 = vmatpush1.msra.mxu0 0.0
        %2218 = vmatprep.subr.mxu0 0.0
        %2219 = vmatpush1.msra.mxu0 0.0
        %2220 = vmatprep.subr.mxu0 0.0
        %2221 = vmatpush1.msra.mxu0 0.0
        %2222 = vmatprep.subr.mxu0 0.0
        %2223 = vmatpush1.msra.mxu0 0.0
        %2224 = vmatprep.subr.mxu0 0.0
        %2225 = vmatpush1.msra.mxu0 0.0
        %2226 = vmatprep.subr.mxu0 0.0
        %2227 = vmatpush1.msra.mxu0 0.0
        %2228 = vmatprep.subr.mxu0 0.0
        %2229 = vmatpush1.msra.mxu0 0.0
        %2230 = vmatprep.subr.mxu0 0.0
        %2231 = vmatpush1.msra.mxu0 0.0
        %2232 = vmatprep.mubr.f32.mxu0 0.0
        %2233 = vmatmul.mubr.f32.gmra.mrb[0].mxu0 %v573
        %v2234 = vpop.f32.mrb[0].mxu0
        %v2235 = vadd.f32 0.0, %v2234
        %v2236 = vpop.f32.mrb[0].mxu0
        %2237 = vmatprep.mubr.f32.mxu0 0.0
        %2238 = vmatmul.mubr.f32.gmra.mrb[0].mxu0 %v574
        %v2239 = vpop.f32.mrb[0].mxu0
        %v2240 = vadd.f32 0.0, %v2239
        %v2241 = vpop.f32.mrb[0].mxu0
        %2242 = vmatprep.mubr.f32.mxu0 0.0
        %2243 = vmatmul.mubr.f32.gmra.mrb[0].mxu0 %v575
        %v2244 = vpop.f32.mrb[0].mxu0
        %v2245 = vadd.f32 0.0, %v2244
        %v2246 = vpop.f32.mrb[0].mxu0
        %2247 = vmatprep.mubr.f32.mxu0 0.0
        %2248 = vmatmul.mubr.f32.gmra.mrb[0].mxu0 %v576
        %v2249 = vpop.f32.mrb[0].mxu0
        %v2250 = vadd.f32 0.0, %v2249
        %v2251 = vpop.f32.mrb[0].mxu0
        %2252 = vmatprep.mubr.f32.mxu0 0.0
        %2253 = vmatmul.mubr.f32.gmra.mrb[0].mxu0 %v577
        %v2254 = vpop.f32.mrb[0].mxu0
        %v2255 = vadd.f32 0.0, %v2254
        %v2256 = vpop.f32.mrb[0].mxu0
        %2257 = vmatprep.mubr.f32.mxu0 0.0
        %2258 = vmatmul.mubr.f32.gmra.mrb[0].mxu0 %v578
        %v2259 = vpop.f32.mrb[0].mxu0
        %v2260 = vadd.f32 0.0, %v2259
        %v2261 = vpop.f32.mrb[0].mxu0
        %2262 = vmatprep.mubr.f32.mxu0 0.0
        %2263 = vmatmul.mubr.f32.gmra.mrb[0].mxu0 %v579
        %v2264 = vpop.f32.mrb[0].mxu0
        %v2265 = vadd.f32 0.0, %v2264
        %v2266 = vpop.f32.mrb[0].mxu0
        %2267 = vmatprep.mubr.f32.mxu0 0.0
        %2268 = vmatmul.mubr.f32.gmra.mrb[0].mxu0 %v580
        %v2269 = vpop.f32.mrb[0].mxu0
        %v2270 = vadd.f32 0.0, %v2269
        %v2271 = vpop.f32.mrb[0].mxu0
        %2272 = vmatprep.mubr.f32.mxu0 0.0
        %2273 = vmatmul.mubr.f32.gmra.mrb[0].mxu0 %v581
        %v2274 = vpop.f32.mrb[0].mxu0
        %v2275 = vadd.f32 0.0, %v2274
        %v2276 = vpop.f32.mrb[0].mxu0
        %2277 = vmatprep.mubr.f32.mxu0 0.0
        %2278 = vmatmul.mubr.f32.gmra.mrb[0].mxu0 %v582
        %v2279 = vpop.f32.mrb[0].mxu0
        %v2280 = vadd.f32 0.0, %v2279
        %v2281 = vpop.f32.mrb[0].mxu0
        %2282 = vmatprep.mubr.f32.mxu0 0.0
        %2283 = vmatmul.mubr.f32.gmra.mrb[0].mxu0 %v583
        %v2284 = vpop.f32.mrb[0].mxu0
        %v2285 = vadd.f32 0.0, %v2284
        %v2286 = vpop.f32.mrb[0].mxu0
        %2287 = vmatprep.mubr.f32.mxu0 0.0
        %2288 = vmatmul.mubr.f32.gmra.mrb[0].mxu0 %v584
        %v2289 = vpop.f32.mrb[0].mxu0
        %v2290 = vadd.f32 0.0, %v2289
        %v2291 = vpop.f32.mrb[0].mxu0
        %2292 = vmatprep.mubr.f32.mxu0 0.0
        %2293 = vmatmul.mubr.f32.gmra.mrb[0].mxu0 %v585
        %v2294 = vpop.f32.mrb[0].mxu0
        %v2295 = vadd.f32 0.0, %v2294
        %v2296 = vpop.f32.mrb[0].mxu0
        %2297 = vmatprep.mubr.f32.mxu0 0.0
        %2298 = vmatmul.mubr.f32.gmra.mrb[0].mxu0 %v586
        %v2299 = vpop.f32.mrb[0].mxu0
        %v2300 = vadd.f32 0.0, %v2299
        %v2301 = vpop.f32.mrb[0].mxu0
        %2302 = vmatprep.mubr.f32.mxu0 0.0
        %2303 = vmatmul.mubr.f32.gmra.mrb[0].mxu0 %v587
        %v2304 = vpop.f32.mrb[0].mxu0
        %v2305 = vadd.f32 0.0, %v2304
        %v2306 = vpop.f32.mrb[0].mxu0
        %2307 = vmatprep.mubr.f32.mxu0 0.0
        %2308 = vmatmul.mubr.f32.gmra.mrb[0].mxu0 %v588
        %v2309 = vpop.f32.mrb[0].mxu0
        %v2310 = vadd.f32 0.0, %v2309
        %v2311 = vpop.f32.mrb[0].mxu0
        %2312 = vmatprep.mubr.f32.mxu0 0.0
        %2313 = vmatmul.mubr.f32.gmra.mrb[0].mxu0 %v589
        %v2314 = vpop.f32.mrb[0].mxu0
        %v2315 = vadd.f32 0.0, %v2314
        %v2316 = vpop.f32.mrb[0].mxu0
        %2317 = vmatprep.mubr.f32.mxu0 0.0
        %2318 = vmatmul.mubr.f32.gmra.mrb[0].mxu0 %v590
        %v2319 = vpop.f32.mrb[0].mxu0
        %v2320 = vadd.f32 0.0, %v2319
        %v2321 = vpop.f32.mrb[0].mxu0
        %2322 = vmatprep.mubr.f32.mxu0 0.0
        %2323 = vmatmul.mubr.f32.gmra.mrb[0].mxu0 %v591
        %v2324 = vpop.f32.mrb[0].mxu0
        %v2325 = vadd.f32 0.0, %v2324
        %v2326 = vpop.f32.mrb[0].mxu0
        %2327 = vmatprep.mubr.f32.mxu0 0.0
        %2328 = vmatmul.mubr.f32.gmra.mrb[0].mxu0 %v592
        %v2329 = vpop.f32.mrb[0].mxu0
        %v2330 = vadd.f32 0.0, %v2329
        %v2331 = vpop.f32.mrb[0].mxu0
        %2332 = vmatprep.mubr.f32.mxu0 0.0
        %2333 = vmatmul.mubr.f32.gmra.mrb[0].mxu0 %v593
        %v2334 = vpop.f32.mrb[0].mxu0
        %v2335 = vadd.f32 0.0, %v2334
        %v2336 = vpop.f32.mrb[0].mxu0
        %2337 = vmatprep.mubr.f32.mxu0 0.0
        %2338 = vmatmul.mubr.f32.gmra.mrb[0].mxu0 %v594
        %v2339 = vpop.f32.mrb[0].mxu0
        %v2340 = vadd.f32 0.0, %v2339
        %v2341 = vpop.f32.mrb[0].mxu0
        %2342 = vmatprep.mubr.f32.mxu0 0.0
        %2343 = vmatmul.mubr.f32.gmra.mrb[0].mxu0 %v595
        %v2344 = vpop.f32.mrb[0].mxu0
        %v2345 = vadd.f32 0.0, %v2344
        %v2346 = vpop.f32.mrb[0].mxu0
        %2347 = vmatprep.mubr.f32.mxu0 0.0
        %2348 = vmatmul.mubr.f32.gmra.mrb[0].mxu0 %v596
        %v2349 = vpop.f32.mrb[0].mxu0
        %v2350 = vadd.f32 0.0, %v2349
        %v2351 = vpop.f32.mrb[0].mxu0
        %2352 = vmatprep.mubr.f32.mxu0 0.0
        %2353 = vmatmul.mubr.f32.gmra.mrb[0].mxu0 %v597
        %v2354 = vpop.f32.mrb[0].mxu0
        %v2355 = vadd.f32 0.0, %v2354
        %v2356 = vpop.f32.mrb[0].mxu0
        %2357 = vmatprep.mubr.f32.mxu0 0.0
        %2358 = vmatmul.mubr.f32.gmra.mrb[0].mxu0 %v598
        %v2359 = vpop.f32.mrb[0].mxu0
        %v2360 = vadd.f32 0.0, %v2359
        %v2361 = vpop.f32.mrb[0].mxu0
        %2362 = vmatprep.mubr.f32.mxu0 0.0
        %2363 = vmatmul.mubr.f32.gmra.mrb[0].mxu0 %v599
        %v2364 = vpop.f32.mrb[0].mxu0
        %v2365 = vadd.f32 0.0, %v2364
        %v2366 = vpop.f32.mrb[0].mxu0
        %2367 = vmatprep.mubr.f32.mxu0 0.0
        %2368 = vmatmul.mubr.f32.gmra.mrb[0].mxu0 %v600
        %v2369 = vpop.f32.mrb[0].mxu0
        %v2370 = vadd.f32 0.0, %v2369
        %v2371 = vpop.f32.mrb[0].mxu0
        %2372 = vmatprep.mubr.f32.mxu0 0.0
        %2373 = vmatmul.mubr.f32.gmra.mrb[0].mxu0 %v601
        %v2374 = vpop.f32.mrb[0].mxu0
        %v2375 = vadd.f32 0.0, %v2374
        %v2376 = vpop.f32.mrb[0].mxu0
        %2377 = vmatprep.mubr.f32.mxu0 0.0
        %2378 = vmatmul.mubr.f32.gmra.mrb[0].mxu0 %v602
        %v2379 = vpop.f32.mrb[0].mxu0
        %v2380 = vadd.f32 0.0, %v2379
        %v2381 = vpop.f32.mrb[0].mxu0
        %2382 = vmatprep.mubr.f32.mxu0 0.0
        %2383 = vmatmul.mubr.f32.gmra.mrb[0].mxu0 %v603
        %v2384 = vpop.f32.mrb[0].mxu0
        %v2385 = vadd.f32 0.0, %v2384
        %v2386 = vpop.f32.mrb[0].mxu0
        %2387 = vmatprep.mubr.f32.mxu0 0.0
        %2388 = vmatmul.mubr.f32.gmra.mrb[0].mxu0 %v604
        %v2389 = vpop.f32.mrb[0].mxu0
        %v2390 = vadd.f32 0.0, %v2389
        %v2391 = vpop.f32.mrb[0].mxu0
        %2392 = vmatprep.mubr.f32.mxu0 0.0
        %2393 = vmatmul.mubr.f32.gmra.mrb[0].mxu0 %v605
        %v2394 = vpop.f32.mrb[0].mxu0
        %v2395 = vadd.f32 0.0, %v2394
        %v2396 = vpop.f32.mrb[0].mxu0
        %2397 = vmatprep.mubr.f32.mxu0 0.0
        %2398 = vmatmul.mubr.f32.gmra.mrb[0].mxu0 %v606
        %v2399 = vpop.f32.mrb[0].mxu0
        %v2400 = vadd.f32 0.0, %v2399
        %v2401 = vpop.f32.mrb[0].mxu0
        %2402 = vmatprep.mubr.f32.mxu0 0.0
        %2403 = vmatmul.mubr.f32.gmra.mrb[0].mxu0 %v607
        %v2404 = vpop.f32.mrb[0].mxu0
        %v2405 = vadd.f32 0.0, %v2404
        %v2406 = vpop.f32.mrb[0].mxu0
        %2407 = vmatprep.mubr.f32.mxu0 0.0
        %2408 = vmatmul.mubr.f32.gmra.mrb[0].mxu0 %v608
        %v2409 = vpop.f32.mrb[0].mxu0
        %v2410 = vadd.f32 0.0, %v2409
        %v2411 = vpop.f32.mrb[0].mxu0
        %2412 = vmatprep.mubr.f32.mxu0 0.0
        %2413 = vmatmul.mubr.f32.gmra.mrb[0].mxu0 %v609
        %v2414 = vpop.f32.mrb[0].mxu0
        %v2415 = vadd.f32 0.0, %v2414
        %v2416 = vpop.f32.mrb[0].mxu0
        %2417 = vmatprep.mubr.f32.mxu0 0.0
        %2418 = vmatmul.mubr.f32.gmra.mrb[0].mxu0 %v610
        %v2419 = vpop.f32.mrb[0].mxu0
        %v2420 = vadd.f32 0.0, %v2419
        %v2421 = vpop.f32.mrb[0].mxu0
        %2422 = vmatprep.mubr.f32.mxu0 0.0
        %2423 = vmatmul.mubr.f32.gmra.mrb[0].mxu0 %v611
        %v2424 = vpop.f32.mrb[0].mxu0
        %v2425 = vadd.f32 0.0, %v2424
        %v2426 = vpop.f32.mrb[0].mxu0
        %2427 = vmatprep.mubr.f32.mxu0 0.0
        %2428 = vmatmul.mubr.f32.gmra.mrb[0].mxu0 %v612
        %v2429 = vpop.f32.mrb[0].mxu0
        %v2430 = vadd.f32 0.0, %v2429
        %v2431 = vpop.f32.mrb[0].mxu0
        %2432 = vmatprep.mubr.f32.mxu0 0.0
        %2433 = vmatmul.mubr.f32.gmra.mrb[0].mxu0 %v613
        %v2434 = vpop.f32.mrb[0].mxu0
        %v2435 = vadd.f32 0.0, %v2434
        %v2436 = vpop.f32.mrb[0].mxu0
        %2437 = vmatprep.mubr.f32.mxu0 0.0
        %2438 = vmatmul.mubr.f32.gmra.mrb[0].mxu0 %v614
        %v2439 = vpop.f32.mrb[0].mxu0
        %v2440 = vadd.f32 0.0, %v2439
        %v2441 = vpop.f32.mrb[0].mxu0
        %2442 = vmatprep.mubr.f32.mxu0 0.0
        %2443 = vmatmul.mubr.f32.gmra.mrb[0].mxu0 %v615
        %v2444 = vpop.f32.mrb[0].mxu0
        %v2445 = vadd.f32 0.0, %v2444
        %v2446 = vpop.f32.mrb[0].mxu0
        %2447 = vmatprep.mubr.f32.mxu0 0.0
        %2448 = vmatmul.mubr.f32.gmra.mrb[0].mxu0 %v616
        %v2449 = vpop.f32.mrb[0].mxu0
        %v2450 = vadd.f32 0.0, %v2449
        %v2451 = vpop.f32.mrb[0].mxu0
        %2452 = vmatprep.mubr.f32.mxu0 0.0
        %2453 = vmatmul.mubr.f32.gmra.mrb[0].mxu0 %v617
        %v2454 = vpop.f32.mrb[0].mxu0
        %v2455 = vadd.f32 0.0, %v2454
        %v2456 = vpop.f32.mrb[0].mxu0
        %2457 = vmatprep.mubr.f32.mxu0 0.0
        %2458 = vmatmul.mubr.f32.gmra.mrb[0].mxu0 %v618
        %v2459 = vpop.f32.mrb[0].mxu0
        %v2460 = vadd.f32 0.0, %v2459
        %v2461 = vpop.f32.mrb[0].mxu0
        %2462 = vmatprep.mubr.f32.mxu0 0.0
        %2463 = vmatmul.mubr.f32.gmra.mrb[0].mxu0 %v619
        %v2464 = vpop.f32.mrb[0].mxu0
        %v2465 = vadd.f32 0.0, %v2464
        %v2466 = vpop.f32.mrb[0].mxu0
        %2467 = vmatprep.mubr.f32.mxu0 0.0
        %2468 = vmatmul.mubr.f32.gmra.mrb[0].mxu0 %v620
        %v2469 = vpop.f32.mrb[0].mxu0
        %v2470 = vadd.f32 0.0, %v2469
        %v2471 = vpop.f32.mrb[0].mxu0
        %2472 = vdwg.mxu0
        %v2473 = vrot.slane %v1884, 1
        %v2474 = vrot.slane %v1890, 1
        %v2475 = vrot.slane %v1896, 1
        %v2476 = vrot.slane %v1902, 1
        %v2477 = vrot.slane %v1908, 1
        %v2478 = vrot.slane %v1914, 1
        %v2479 = vrot.slane %v1920, 1
        %v2480 = vrot.slane %v1926, 1
        %v2481 = vrot.slane %v1932, 1
        %v2482 = vrot.slane %v1938, 1
        %v2483 = vrot.slane %v1944, 1
        %v2484 = vrot.slane %v1950, 1
        %v2485 = vrot.slane %v1956, 1
        %v2486 = vrot.slane %v1962, 1
        %v2487 = vrot.slane %v1968, 1
        %v2488 = vrot.slane %v1974, 1
        %v2489 = vrot.slane %v1980, 1
        %v2490 = vrot.slane %v1986, 1
        %v2491 = vrot.slane %v1992, 1
        %v2492 = vrot.slane %v1998, 1
        %v2493 = vrot.slane %v2004, 1
        %v2494 = vrot.slane %v2010, 1
        %v2495 = vrot.slane %v2016, 1
        %v2496 = vrot.slane %v2022, 1
        %v2497 = vrot.slane %v2028, 1
        %v2498 = vrot.slane %v2034, 1
        %v2499 = vrot.slane %v2040, 1
        %v2500 = vrot.slane %v2046, 1
        %v2501 = vrot.slane %v2052, 1
        %v2502 = vrot.slane %v2058, 1
        %v2503 = vrot.slane %v2064, 1
        %v2504 = vrot.slane %v2070, 1
        %v2505 = vrot.slane %v2076, 1
        %v2506 = vrot.slane %v2082, 1
        %v2507 = vrot.slane %v2088, 1
        %v2508 = vrot.slane %v2094, 1
        %v2509 = vrot.slane %v2100, 1
        %v2510 = vrot.slane %v2106, 1
        %v2511 = vrot.slane %v2112, 1
        %v2512 = vrot.slane %v2118, 1
        %v2513 = vrot.slane %v2124, 1
        %v2514 = vrot.slane %v2130, 1
        %v2515 = vrot.slane %v2136, 1
        %v2516 = vrot.slane %v2142, 1
        %v2517 = vrot.slane %v2148, 1
        %v2518 = vrot.slane %v2154, 1
        %v2519 = vrot.slane %v2160, 1
        %v2520 = vrot.slane %v2166, 1
        %v2521 = vsel %vm1380, %v2519, %v2520
        %v2522 = vsel %vm1380, %v2518, %v2519
        %v2523 = vsel %vm1380, %v2517, %v2518
        %v2524 = vsel %vm1380, %v2516, %v2517
        %v2525 = vsel %vm1380, %v2515, %v2516
        %v2526 = vsel %vm1380, %v2514, %v2515
        %v2527 = vsel %vm1380, %v2513, %v2514
        %v2528 = vsel %vm1380, %v2512, %v2513
        %v2529 = vsel %vm1380, %v2511, %v2512
        %v2530 = vsel %vm1380, %v2510, %v2511
        %v2531 = vsel %vm1380, %v2509, %v2510
        %v2532 = vsel %vm1380, %v2508, %v2509
        %v2533 = vsel %vm1380, %v2507, %v2508
        %v2534 = vsel %vm1380, %v2506, %v2507
        %v2535 = vsel %vm1380, %v2505, %v2506
        %v2536 = vsel %vm1380, %v2504, %v2505
        %v2537 = vsel %vm1380, %v2503, %v2504
        %v2538 = vsel %vm1380, %v2502, %v2503
        %v2539 = vsel %vm1380, %v2501, %v2502
        %v2540 = vsel %vm1380, %v2500, %v2501
        %v2541 = vsel %vm1380, %v2499, %v2500
        %v2542 = vsel %vm1380, %v2498, %v2499
        %v2543 = vsel %vm1380, %v2497, %v2498
        %v2544 = vsel %vm1380, %v2496, %v2497
        %v2545 = vsel %vm1380, %v2495, %v2496
        %v2546 = vsel %vm1380, %v2494, %v2495
        %v2547 = vsel %vm1380, %v2493, %v2494
        %v2548 = vsel %vm1380, %v2492, %v2493
        %v2549 = vsel %vm1380, %v2491, %v2492
        %v2550 = vsel %vm1380, %v2490, %v2491
        %v2551 = vsel %vm1380, %v2489, %v2490
        %v2552 = vsel %vm1380, %v2488, %v2489
        %v2553 = vsel %vm1380, %v2487, %v2488
        %v2554 = vsel %vm1380, %v2486, %v2487
        %v2555 = vsel %vm1380, %v2485, %v2486
        %v2556 = vsel %vm1380, %v2484, %v2485
        %v2557 = vsel %vm1380, %v2483, %v2484
        %v2558 = vsel %vm1380, %v2482, %v2483
        %v2559 = vsel %vm1380, %v2481, %v2482
        %v2560 = vsel %vm1380, %v2480, %v2481
        %v2561 = vsel %vm1380, %v2479, %v2480
        %v2562 = vsel %vm1380, %v2478, %v2479
        %v2563 = vsel %vm1380, %v2477, %v2478
        %v2564 = vsel %vm1380, %v2476, %v2477
        %v2565 = vsel %vm1380, %v2475, %v2476
        %v2566 = vsel %vm1380, %v2474, %v2475
        %v2567 = vsel %vm1380, %v2473, %v2474
        %v2568 = vsel %vm1380, %v2520, %v2473
        %v2569 = vadd.f32 %v1882, %v2567
        %v2570 = vadd.f32 %v1888, %v2566
        %v2571 = vadd.f32 %v1894, %v2565
        %v2572 = vadd.f32 %v1900, %v2564
        %v2573 = vadd.f32 %v1906, %v2563
        %v2574 = vadd.f32 %v1912, %v2562
        %v2575 = vadd.f32 %v1918, %v2561
        %v2576 = vadd.f32 %v1924, %v2560
        %v2577 = vadd.f32 %v1930, %v2559
        %v2578 = vadd.f32 %v1936, %v2558
        %v2579 = vadd.f32 %v1942, %v2557
        %v2580 = vadd.f32 %v1948, %v2556
        %v2581 = vadd.f32 %v1954, %v2555
        %v2582 = vadd.f32 %v1960, %v2554
        %v2583 = vadd.f32 %v1966, %v2553
        %v2584 = vadd.f32 %v1972, %v2552
        %v2585 = vadd.f32 %v1978, %v2551
        %v2586 = vadd.f32 %v1984, %v2550
        %v2587 = vadd.f32 %v1990, %v2549
        %v2588 = vadd.f32 %v1996, %v2548
        %v2589 = vadd.f32 %v2002, %v2547
        %v2590 = vadd.f32 %v2008, %v2546
        %v2591 = vadd.f32 %v2014, %v2545
        %v2592 = vadd.f32 %v2020, %v2544
        %v2593 = vadd.f32 %v2026, %v2543
        %v2594 = vadd.f32 %v2032, %v2542
        %v2595 = vadd.f32 %v2038, %v2541
        %v2596 = vadd.f32 %v2044, %v2540
        %v2597 = vadd.f32 %v2050, %v2539
        %v2598 = vadd.f32 %v2056, %v2538
        %v2599 = vadd.f32 %v2062, %v2537
        %v2600 = vadd.f32 %v2068, %v2536
        %v2601 = vadd.f32 %v2074, %v2535
        %v2602 = vadd.f32 %v2080, %v2534
        %v2603 = vadd.f32 %v2086, %v2533
        %v2604 = vadd.f32 %v2092, %v2532
        %v2605 = vadd.f32 %v2098, %v2531
        %v2606 = vadd.f32 %v2104, %v2530
        %v2607 = vadd.f32 %v2110, %v2529
        %v2608 = vadd.f32 %v2116, %v2528
        %v2609 = vadd.f32 %v2122, %v2527
        %v2610 = vadd.f32 %v2128, %v2526
        %v2611 = vadd.f32 %v2134, %v2525
        %v2612 = vadd.f32 %v2140, %v2524
        %v2613 = vadd.f32 %v2146, %v2523
        %v2614 = vadd.f32 %v2152, %v2522
        %v2615 = vadd.f32 %v2158, %v2521
        %v2616 = vadd.f32 %v2164, %v2568
        %v2617 = vrot.slane %v2235, 2
        %v2618 = vrot.slane %v2240, 2
        %v2619 = vrot.slane %v2245, 2
        %v2620 = vrot.slane %v2250, 2
        %v2621 = vrot.slane %v2255, 2
        %v2622 = vrot.slane %v2260, 2
        %v2623 = vrot.slane %v2265, 2
        %v2624 = vrot.slane %v2270, 2
        %v2625 = vrot.slane %v2275, 2
        %v2626 = vrot.slane %v2280, 2
        %v2627 = vrot.slane %v2285, 2
        %v2628 = vrot.slane %v2290, 2
        %v2629 = vrot.slane %v2295, 2
        %v2630 = vrot.slane %v2300, 2
        %v2631 = vrot.slane %v2305, 2
        %v2632 = vrot.slane %v2310, 2
        %v2633 = vrot.slane %v2315, 2
        %v2634 = vrot.slane %v2320, 2
        %v2635 = vrot.slane %v2325, 2
        %v2636 = vrot.slane %v2330, 2
        %v2637 = vrot.slane %v2335, 2
        %v2638 = vrot.slane %v2340, 2
        %v2639 = vrot.slane %v2345, 2
        %v2640 = vrot.slane %v2350, 2
        %v2641 = vrot.slane %v2355, 2
        %v2642 = vrot.slane %v2360, 2
        %v2643 = vrot.slane %v2365, 2
        %v2644 = vrot.slane %v2370, 2
        %v2645 = vrot.slane %v2375, 2
        %v2646 = vrot.slane %v2380, 2
        %v2647 = vrot.slane %v2385, 2
        %v2648 = vrot.slane %v2390, 2
        %v2649 = vrot.slane %v2395, 2
        %v2650 = vrot.slane %v2400, 2
        %v2651 = vrot.slane %v2405, 2
        %v2652 = vrot.slane %v2410, 2
        %v2653 = vrot.slane %v2415, 2
        %v2654 = vrot.slane %v2420, 2
        %v2655 = vrot.slane %v2425, 2
        %v2656 = vrot.slane %v2430, 2
        %v2657 = vrot.slane %v2435, 2
        %v2658 = vrot.slane %v2440, 2
        %v2659 = vrot.slane %v2445, 2
        %v2660 = vrot.slane %v2450, 2
        %v2661 = vrot.slane %v2455, 2
        %v2662 = vrot.slane %v2460, 2
        %v2663 = vrot.slane %v2465, 2
        %v2664 = vrot.slane %v2470, 2
        %v2665 = vsel %vm1525, %v2663, %v2664
        %v2666 = vsel %vm1525, %v2662, %v2663
        %v2667 = vsel %vm1525, %v2661, %v2662
        %v2668 = vsel %vm1525, %v2660, %v2661
        %v2669 = vsel %vm1525, %v2659, %v2660
        %v2670 = vsel %vm1525, %v2658, %v2659
        %v2671 = vsel %vm1525, %v2657, %v2658
        %v2672 = vsel %vm1525, %v2656, %v2657
        %v2673 = vsel %vm1525, %v2655, %v2656
        %v2674 = vsel %vm1525, %v2654, %v2655
        %v2675 = vsel %vm1525, %v2653, %v2654
        %v2676 = vsel %vm1525, %v2652, %v2653
        %v2677 = vsel %vm1525, %v2651, %v2652
        %v2678 = vsel %vm1525, %v2650, %v2651
        %v2679 = vsel %vm1525, %v2649, %v2650
        %v2680 = vsel %vm1525, %v2648, %v2649
        %v2681 = vsel %vm1525, %v2647, %v2648
        %v2682 = vsel %vm1525, %v2646, %v2647
        %v2683 = vsel %vm1525, %v2645, %v2646
        %v2684 = vsel %vm1525, %v2644, %v2645
        %v2685 = vsel %vm1525, %v2643, %v2644
        %v2686 = vsel %vm1525, %v2642, %v2643
        %v2687 = vsel %vm1525, %v2641, %v2642
        %v2688 = vsel %vm1525, %v2640, %v2641
        %v2689 = vsel %vm1525, %v2639, %v2640
        %v2690 = vsel %vm1525, %v2638, %v2639
        %v2691 = vsel %vm1525, %v2637, %v2638
        %v2692 = vsel %vm1525, %v2636, %v2637
        %v2693 = vsel %vm1525, %v2635, %v2636
        %v2694 = vsel %vm1525, %v2634, %v2635
        %v2695 = vsel %vm1525, %v2633, %v2634
        %v2696 = vsel %vm1525, %v2632, %v2633
        %v2697 = vsel %vm1525, %v2631, %v2632
        %v2698 = vsel %vm1525, %v2630, %v2631
        %v2699 = vsel %vm1525, %v2629, %v2630
        %v2700 = vsel %vm1525, %v2628, %v2629
        %v2701 = vsel %vm1525, %v2627, %v2628
        %v2702 = vsel %vm1525, %v2626, %v2627
        %v2703 = vsel %vm1525, %v2625, %v2626
        %v2704 = vsel %vm1525, %v2624, %v2625
        %v2705 = vsel %vm1525, %v2623, %v2624
        %v2706 = vsel %vm1525, %v2622, %v2623
        %v2707 = vsel %vm1525, %v2621, %v2622
        %v2708 = vsel %vm1525, %v2620, %v2621
        %v2709 = vsel %vm1525, %v2619, %v2620
        %v2710 = vsel %vm1525, %v2618, %v2619
        %v2711 = vsel %vm1525, %v2617, %v2618
        %v2712 = vsel %vm1525, %v2664, %v2617
        %v2713 = vadd.f32 %v2569, %v2711
        %v2714 = vadd.f32 %v2570, %v2710
        %v2715 = vadd.f32 %v2571, %v2709
        %v2716 = vadd.f32 %v2572, %v2708
        %v2717 = vadd.f32 %v2573, %v2707
        %v2718 = vadd.f32 %v2574, %v2706
        %v2719 = vadd.f32 %v2575, %v2705
        %v2720 = vadd.f32 %v2576, %v2704
        %v2721 = vadd.f32 %v2577, %v2703
        %v2722 = vadd.f32 %v2578, %v2702
        %v2723 = vadd.f32 %v2579, %v2701
        %v2724 = vadd.f32 %v2580, %v2700
        %v2725 = vadd.f32 %v2581, %v2699
        %v2726 = vadd.f32 %v2582, %v2698
        %v2727 = vadd.f32 %v2583, %v2697
        %v2728 = vadd.f32 %v2584, %v2696
        %v2729 = vadd.f32 %v2585, %v2695
        %v2730 = vadd.f32 %v2586, %v2694
        %v2731 = vadd.f32 %v2587, %v2693
        %v2732 = vadd.f32 %v2588, %v2692
        %v2733 = vadd.f32 %v2589, %v2691
        %v2734 = vadd.f32 %v2590, %v2690
        %v2735 = vadd.f32 %v2591, %v2689
        %v2736 = vadd.f32 %v2592, %v2688
        %v2737 = vadd.f32 %v2593, %v2687
        %v2738 = vadd.f32 %v2594, %v2686
        %v2739 = vadd.f32 %v2595, %v2685
        %v2740 = vadd.f32 %v2596, %v2684
        %v2741 = vadd.f32 %v2597, %v2683
        %v2742 = vadd.f32 %v2598, %v2682
        %v2743 = vadd.f32 %v2599, %v2681
        %v2744 = vadd.f32 %v2600, %v2680
        %v2745 = vadd.f32 %v2601, %v2679
        %v2746 = vadd.f32 %v2602, %v2678
        %v2747 = vadd.f32 %v2603, %v2677
        %v2748 = vadd.f32 %v2604, %v2676
        %v2749 = vadd.f32 %v2605, %v2675
        %v2750 = vadd.f32 %v2606, %v2674
        %v2751 = vadd.f32 %v2607, %v2673
        %v2752 = vadd.f32 %v2608, %v2672
        %v2753 = vadd.f32 %v2609, %v2671
        %v2754 = vadd.f32 %v2610, %v2670
        %v2755 = vadd.f32 %v2611, %v2669
        %v2756 = vadd.f32 %v2612, %v2668
        %v2757 = vadd.f32 %v2613, %v2667
        %v2758 = vadd.f32 %v2614, %v2666
        %v2759 = vadd.f32 %v2615, %v2665
        %v2760 = vadd.f32 %v2616, %v2712
        %v2761 = vld [vmem:[#allocation2] sm:$0xff]
        %v2762 = vld [vmem:[#allocation2 + $0x8] sm:$0xff]
        %v2763 = vld [vmem:[#allocation2 + $0x10] sm:$0xff]
        %v2764 = vld [vmem:[#allocation2 + $0x18] sm:$0xff]
        %v2765 = vld [vmem:[#allocation2 + $0x20] sm:$0xff]
        %v2766 = vld [vmem:[#allocation2 + $0x28] sm:$0xff]
        %v2767 = vld [vmem:[#allocation2 + $0x30] sm:$0xff]
        %v2768 = vld [vmem:[#allocation2 + $0x38] sm:$0xff]
        %v2769 = vld [vmem:[#allocation2 + $0x40] sm:$0xff]
        %v2770 = vld [vmem:[#allocation2 + $0x48] sm:$0xff]
        %v2771 = vld [vmem:[#allocation2 + $0x50] sm:$0xff]
        %v2772 = vld [vmem:[#allocation2 + $0x58] sm:$0xff]
        %v2773 = vld [vmem:[#allocation2 + $0x60] sm:$0xff]
        %v2774 = vld [vmem:[#allocation2 + $0x68] sm:$0xff]
        %v2775 = vld [vmem:[#allocation2 + $0x70] sm:$0xff]
        %v2776 = vld [vmem:[#allocation2 + $0x78] sm:$0xff]
        %v2777 = vld [vmem:[#allocation2 + $0x80] sm:$0xff]
        %v2778 = vld [vmem:[#allocation2 + $0x88] sm:$0xff]
        %v2779 = vld [vmem:[#allocation2 + $0x90] sm:$0xff]
        %v2780 = vld [vmem:[#allocation2 + $0x98] sm:$0xff]
        %v2781 = vld [vmem:[#allocation2 + $0xa0] sm:$0xff]
        %v2782 = vld [vmem:[#allocation2 + $0xa8] sm:$0xff]
        %v2783 = vld [vmem:[#allocation2 + $0xb0] sm:$0xff]
        %v2784 = vld [vmem:[#allocation2 + $0xb8] sm:$0xff]
        %v2785 = vld [vmem:[#allocation2 + $0xc0] sm:$0xff]
        %v2786 = vld [vmem:[#allocation2 + $0xc8] sm:$0xff]
        %v2787 = vld [vmem:[#allocation2 + $0xd0] sm:$0xff]
        %v2788 = vld [vmem:[#allocation2 + $0xd8] sm:$0xff]
        %v2789 = vld [vmem:[#allocation2 + $0xe0] sm:$0xff]
        %v2790 = vld [vmem:[#allocation2 + $0xe8] sm:$0xff]
        %v2791 = vld [vmem:[#allocation2 + $0xf0] sm:$0xff]
        %v2792 = vld [vmem:[#allocation2 + $0xf8] sm:$0xff]
        %v2793 = vld [vmem:[#allocation2 + $0x100] sm:$0xff]
        %v2794 = vld [vmem:[#allocation2 + $0x108] sm:$0xff]
        %v2795 = vld [vmem:[#allocation2 + $0x110] sm:$0xff]
        %v2796 = vld [vmem:[#allocation2 + $0x118] sm:$0xff]
        %v2797 = vld [vmem:[#allocation2 + $0x120] sm:$0xff]
        %v2798 = vld [vmem:[#allocation2 + $0x128] sm:$0xff]
        %v2799 = vld [vmem:[#allocation2 + $0x130] sm:$0xff]
        %v2800 = vld [vmem:[#allocation2 + $0x138] sm:$0xff]
        %v2801 = vld [vmem:[#allocation2 + $0x140] sm:$0xff]
        %v2802 = vld [vmem:[#allocation2 + $0x148] sm:$0xff]
        %v2803 = vld [vmem:[#allocation2 + $0x150] sm:$0xff]
        %v2804 = vld [vmem:[#allocation2 + $0x158] sm:$0xff]
        %v2805 = vld [vmem:[#allocation2 + $0x160] sm:$0xff]
        %v2806 = vld [vmem:[#allocation2 + $0x168] sm:$0xff]
        %v2807 = vld [vmem:[#allocation2 + $0x170] sm:$0xff]
        %v2808 = vld [vmem:[#allocation2 + $0x178] sm:$0xff]
        %v2809 = vadd.f32 %v2761, %v2713
        %v2810 = vadd.f32 %v2762, %v2714
        %v2811 = vadd.f32 %v2763, %v2715
        %v2812 = vadd.f32 %v2764, %v2716
        %v2813 = vadd.f32 %v2765, %v2717
        %v2814 = vadd.f32 %v2766, %v2718
        %v2815 = vadd.f32 %v2767, %v2719
        %v2816 = vadd.f32 %v2768, %v2720
        %v2817 = vadd.f32 %v2769, %v2721
        %v2818 = vadd.f32 %v2770, %v2722
        %v2819 = vadd.f32 %v2771, %v2723
        %v2820 = vadd.f32 %v2772, %v2724
        %v2821 = vadd.f32 %v2773, %v2725
        %v2822 = vadd.f32 %v2774, %v2726
        %v2823 = vadd.f32 %v2775, %v2727
        %v2824 = vadd.f32 %v2776, %v2728
        %v2825 = vadd.f32 %v2777, %v2729
        %v2826 = vadd.f32 %v2778, %v2730
        %v2827 = vadd.f32 %v2779, %v2731
        %v2828 = vadd.f32 %v2780, %v2732
        %v2829 = vadd.f32 %v2781, %v2733
        %v2830 = vadd.f32 %v2782, %v2734
        %v2831 = vadd.f32 %v2783, %v2735
        %v2832 = vadd.f32 %v2784, %v2736
        %v2833 = vadd.f32 %v2785, %v2737
        %v2834 = vadd.f32 %v2786, %v2738
        %v2835 = vadd.f32 %v2787, %v2739
        %v2836 = vadd.f32 %v2788, %v2740
        %v2837 = vadd.f32 %v2789, %v2741
        %v2838 = vadd.f32 %v2790, %v2742
        %v2839 = vadd.f32 %v2791, %v2743
        %v2840 = vadd.f32 %v2792, %v2744
        %v2841 = vadd.f32 %v2793, %v2745
        %v2842 = vadd.f32 %v2794, %v2746
        %v2843 = vadd.f32 %v2795, %v2747
        %v2844 = vadd.f32 %v2796, %v2748
        %v2845 = vadd.f32 %v2797, %v2749
        %v2846 = vadd.f32 %v2798, %v2750
        %v2847 = vadd.f32 %v2799, %v2751
        %v2848 = vadd.f32 %v2800, %v2752
        %v2849 = vadd.f32 %v2801, %v2753
        %v2850 = vadd.f32 %v2802, %v2754
        %v2851 = vadd.f32 %v2803, %v2755
        %v2852 = vadd.f32 %v2804, %v2756
        %v2853 = vadd.f32 %v2805, %v2757
        %v2854 = vadd.f32 %v2806, %v2758
        %v2855 = vadd.f32 %v2807, %v2759
        %v2856 = vadd.f32 %v2808, %v2760
        %2857 = vst [vmem:[#allocation2] sm:$0xff] %v2809
        %2858 = vst [vmem:[#allocation2 + $0x8] sm:$0xff] %v2810
        %2859 = vst [vmem:[#allocation2 + $0x10] sm:$0xff] %v2811
        %2860 = vst [vmem:[#allocation2 + $0x18] sm:$0xff] %v2812
        %2861 = vst [vmem:[#allocation2 + $0x20] sm:$0xff] %v2813
        %2862 = vst [vmem:[#allocation2 + $0x28] sm:$0xff] %v2814
        %2863 = vst [vmem:[#allocation2 + $0x30] sm:$0xff] %v2815
        %2864 = vst [vmem:[#allocation2 + $0x38] sm:$0xff] %v2816
        %2865 = vst [vmem:[#allocation2 + $0x40] sm:$0xff] %v2817
        %2866 = vst [vmem:[#allocation2 + $0x48] sm:$0xff] %v2818
        %2867 = vst [vmem:[#allocation2 + $0x50] sm:$0xff] %v2819
        %2868 = vst [vmem:[#allocation2 + $0x58] sm:$0xff] %v2820
        %2869 = vst [vmem:[#allocation2 + $0x60] sm:$0xff] %v2821
        %2870 = vst [vmem:[#allocation2 + $0x68] sm:$0xff] %v2822
        %2871 = vst [vmem:[#allocation2 + $0x70] sm:$0xff] %v2823
        %2872 = vst [vmem:[#allocation2 + $0x78] sm:$0xff] %v2824
        %2873 = vst [vmem:[#allocation2 + $0x80] sm:$0xff] %v2825
        %2874 = vst [vmem:[#allocation2 + $0x88] sm:$0xff] %v2826
        %2875 = vst [vmem:[#allocation2 + $0x90] sm:$0xff] %v2827
        %2876 = vst [vmem:[#allocation2 + $0x98] sm:$0xff] %v2828
        %2877 = vst [vmem:[#allocation2 + $0xa0] sm:$0xff] %v2829
        %2878 = vst [vmem:[#allocation2 + $0xa8] sm:$0xff] %v2830
        %2879 = vst [vmem:[#allocation2 + $0xb0] sm:$0xff] %v2831
        %2880 = vst [vmem:[#allocation2 + $0xb8] sm:$0xff] %v2832
        %2881 = vst [vmem:[#allocation2 + $0xc0] sm:$0xff] %v2833
        %2882 = vst [vmem:[#allocation2 + $0xc8] sm:$0xff] %v2834
        %2883 = vst [vmem:[#allocation2 + $0xd0] sm:$0xff] %v2835
        %2884 = vst [vmem:[#allocation2 + $0xd8] sm:$0xff] %v2836
        %2885 = vst [vmem:[#allocation2 + $0xe0] sm:$0xff] %v2837
        %2886 = vst [vmem:[#allocation2 + $0xe8] sm:$0xff] %v2838
        %2887 = vst [vmem:[#allocation2 + $0xf0] sm:$0xff] %v2839
        %2888 = vst [vmem:[#allocation2 + $0xf8] sm:$0xff] %v2840
        %2889 = vst [vmem:[#allocation2 + $0x100] sm:$0xff] %v2841
        %2890 = vst [vmem:[#allocation2 + $0x108] sm:$0xff] %v2842
        %2891 = vst [vmem:[#allocation2 + $0x110] sm:$0xff] %v2843
        %2892 = vst [vmem:[#allocation2 + $0x118] sm:$0xff] %v2844
        %2893 = vst [vmem:[#allocation2 + $0x120] sm:$0xff] %v2845
        %2894 = vst [vmem:[#allocation2 + $0x128] sm:$0xff] %v2846
        %2895 = vst [vmem:[#allocation2 + $0x130] sm:$0xff] %v2847
        %2896 = vst [vmem:[#allocation2 + $0x138] sm:$0xff] %v2848
        %2897 = vst [vmem:[#allocation2 + $0x140] sm:$0xff] %v2849
        %2898 = vst [vmem:[#allocation2 + $0x148] sm:$0xff] %v2850
        %2899 = vst [vmem:[#allocation2 + $0x150] sm:$0xff] %v2851
        %2900 = vst [vmem:[#allocation2 + $0x158] sm:$0xff] %v2852
        %2901 = vst [vmem:[#allocation2 + $0x160] sm:$0xff] %v2853
        %2902 = vst [vmem:[#allocation2 + $0x168] sm:$0xff] %v2854
        %2903 = vst [vmem:[#allocation2 + $0x170] sm:$0xff] %v2855
        %2904 = vst [vmem:[#allocation2 + $0x178] sm:$0xff] %v2856
        %s2905 = scalar_lea.vmem %s412, 768 [#allocation8]
        %v2906 = vld [vmem:[%s2905] sm:$0xff]
        %v2907 = vld [vmem:[%s2905 + $0x8] sm:$0xff]
        %v2908 = vld [vmem:[%s2905 + $0x10] sm:$0xff]
        %v2909 = vld [vmem:[%s2905 + $0x18] sm:$0xff]
        %v2910 = vld [vmem:[%s2905 + $0x20] sm:$0xff]
        %v2911 = vld [vmem:[%s2905 + $0x28] sm:$0xff]
        %v2912 = vld [vmem:[%s2905 + $0x30] sm:$0xff]
        %v2913 = vld [vmem:[%s2905 + $0x38] sm:$0xff]
        %v2914 = vld [vmem:[%s2905 + $0x40] sm:$0xff]
        %v2915 = vld [vmem:[%s2905 + $0x48] sm:$0xff]
        %v2916 = vld [vmem:[%s2905 + $0x50] sm:$0xff]
        %v2917 = vld [vmem:[%s2905 + $0x58] sm:$0xff]
        %v2918 = vld [vmem:[%s2905 + $0x60] sm:$0xff]
        %v2919 = vld [vmem:[%s2905 + $0x68] sm:$0xff]
        %v2920 = vld [vmem:[%s2905 + $0x70] sm:$0xff]
        %v2921 = vld [vmem:[%s2905 + $0x78] sm:$0xff]
        %v2922 = vld [vmem:[%s2905 + $0x80] sm:$0xff]
        %v2923 = vld [vmem:[%s2905 + $0x88] sm:$0xff]
        %v2924 = vld [vmem:[%s2905 + $0x90] sm:$0xff]
        %v2925 = vld [vmem:[%s2905 + $0x98] sm:$0xff]
        %v2926 = vld [vmem:[%s2905 + $0xa0] sm:$0xff]
        %v2927 = vld [vmem:[%s2905 + $0xa8] sm:$0xff]
        %v2928 = vld [vmem:[%s2905 + $0xb0] sm:$0xff]
        %v2929 = vld [vmem:[%s2905 + $0xb8] sm:$0xff]
        %v2930 = vld [vmem:[%s2905 + $0xc0] sm:$0xff]
        %v2931 = vld [vmem:[%s2905 + $0xc8] sm:$0xff]
        %v2932 = vld [vmem:[%s2905 + $0xd0] sm:$0xff]
        %v2933 = vld [vmem:[%s2905 + $0xd8] sm:$0xff]
        %v2934 = vld [vmem:[%s2905 + $0xe0] sm:$0xff]
        %v2935 = vld [vmem:[%s2905 + $0xe8] sm:$0xff]
        %v2936 = vld [vmem:[%s2905 + $0xf0] sm:$0xff]
        %v2937 = vld [vmem:[%s2905 + $0xf8] sm:$0xff]
        %v2938 = vld [vmem:[%s2905 + $0x100] sm:$0xff]
        %v2939 = vld [vmem:[%s2905 + $0x108] sm:$0xff]
        %v2940 = vld [vmem:[%s2905 + $0x110] sm:$0xff]
        %v2941 = vld [vmem:[%s2905 + $0x118] sm:$0xff]
        %v2942 = vld [vmem:[%s2905 + $0x120] sm:$0xff]
        %v2943 = vld [vmem:[%s2905 + $0x128] sm:$0xff]
        %v2944 = vld [vmem:[%s2905 + $0x130] sm:$0xff]
        %v2945 = vld [vmem:[%s2905 + $0x138] sm:$0xff]
        %v2946 = vld [vmem:[%s2905 + $0x140] sm:$0xff]
        %v2947 = vld [vmem:[%s2905 + $0x148] sm:$0xff]
        %v2948 = vld [vmem:[%s2905 + $0x150] sm:$0xff]
        %v2949 = vld [vmem:[%s2905 + $0x158] sm:$0xff]
        %v2950 = vld [vmem:[%s2905 + $0x160] sm:$0xff]
        %v2951 = vld [vmem:[%s2905 + $0x168] sm:$0xff]
        %v2952 = vld [vmem:[%s2905 + $0x170] sm:$0xff]
        %v2953 = vld [vmem:[%s2905 + $0x178] sm:$0xff]
        %2954 = vmatprep.subr.mxu0 %v2907
        %2955 = vmatpush1.msra.mxu0 %v2906
        %2956 = vmatprep.subr.mxu0 %v2910
        %2957 = vmatpush1.msra.mxu0 %v2909
        %2958 = vmatprep.subr.mxu0 %v2913
        %2959 = vmatpush1.msra.mxu0 %v2912
        %2960 = vmatprep.subr.mxu0 %v2916
        %2961 = vmatpush1.msra.mxu0 %v2915
        %2962 = vmatprep.subr.mxu0 %v2919
        %2963 = vmatpush1.msra.mxu0 %v2918
        %2964 = vmatprep.subr.mxu0 %v2922
        %2965 = vmatpush1.msra.mxu0 %v2921
        %2966 = vmatprep.subr.mxu0 %v2925
        %2967 = vmatpush1.msra.mxu0 %v2924
        %2968 = vmatprep.subr.mxu0 %v2928
        %2969 = vmatpush1.msra.mxu0 %v2927
        %2970 = vmatprep.subr.mxu0 %v2931
        %2971 = vmatpush1.msra.mxu0 %v2930
        %2972 = vmatprep.subr.mxu0 %v2934
        %2973 = vmatpush1.msra.mxu0 %v2933
        %2974 = vmatprep.subr.mxu0 %v2937
        %2975 = vmatpush1.msra.mxu0 %v2936
        %2976 = vmatprep.subr.mxu0 %v2940
        %2977 = vmatpush1.msra.mxu0 %v2939
        %2978 = vmatprep.subr.mxu0 %v2943
        %2979 = vmatpush1.msra.mxu0 %v2942
        %2980 = vmatprep.subr.mxu0 %v2946
        %2981 = vmatpush1.msra.mxu0 %v2945
        %2982 = vmatprep.subr.mxu0 %v2949
        %2983 = vmatpush1.msra.mxu0 %v2948
        %2984 = vmatprep.subr.mxu0 %v2952
        %2985 = vmatpush1.msra.mxu0 %v2951
        %2986 = vmatprep.subr.mxu0 0.0
        %2987 = vmatpush1.msra.mxu0 0.0
        %2988 = vmatprep.subr.mxu0 0.0
        %2989 = vmatpush1.msra.mxu0 0.0
        %2990 = vmatprep.subr.mxu0 0.0
        %2991 = vmatpush1.msra.mxu0 0.0
        %2992 = vmatprep.subr.mxu0 0.0
        %2993 = vmatpush1.msra.mxu0 0.0
        %2994 = vmatprep.subr.mxu0 0.0
        %2995 = vmatpush1.msra.mxu0 0.0
        %2996 = vmatprep.subr.mxu0 0.0
        %2997 = vmatpush1.msra.mxu0 0.0
        %2998 = vmatprep.subr.mxu0 0.0
        %2999 = vmatpush1.msra.mxu0 0.0
        %3000 = vmatprep.subr.mxu0 0.0
        %3001 = vmatpush1.msra.mxu0 0.0
        %3002 = vmatprep.subr.mxu0 0.0
        %3003 = vmatpush1.msra.mxu0 0.0
        %3004 = vmatprep.subr.mxu0 0.0
        %3005 = vmatpush1.msra.mxu0 0.0
        %3006 = vmatprep.subr.mxu0 0.0
        %3007 = vmatpush1.msra.mxu0 0.0
        %3008 = vmatprep.subr.mxu0 0.0
        %3009 = vmatpush1.msra.mxu0 0.0
        %3010 = vmatprep.subr.mxu0 0.0
        %3011 = vmatpush1.msra.mxu0 0.0
        %3012 = vmatprep.subr.mxu0 0.0
        %3013 = vmatpush1.msra.mxu0 0.0
        %3014 = vmatprep.subr.mxu0 0.0
        %3015 = vmatpush1.msra.mxu0 0.0
        %3016 = vmatprep.subr.mxu0 0.0
        %3017 = vmatpush1.msra.mxu0 0.0
        %3018 = vmatprep.mubr.f32.mxu0 0.0
        %3019 = vmatmul.mubr.f32.gmra.mrb[0].mxu0 %v576
        %v3020 = vpop.f32.mrb[0].mxu0
        %v3021 = vadd.f32 0.0, %v3020
        %v3022 = vpop.f32.mrb[0].mxu0
        %v3023 = vadd.f32 0.0, %v3022
        %3024 = vmatprep.mubr.f32.mxu0 0.0
        %3025 = vmatmul.mubr.f32.gmra.mrb[0].mxu0 %v577
        %v3026 = vpop.f32.mrb[0].mxu0
        %v3027 = vadd.f32 0.0, %v3026
        %v3028 = vpop.f32.mrb[0].mxu0
        %v3029 = vadd.f32 0.0, %v3028
        %3030 = vmatprep.mubr.f32.mxu0 0.0
        %3031 = vmatmul.mubr.f32.gmra.mrb[0].mxu0 %v578
        %v3032 = vpop.f32.mrb[0].mxu0
        %v3033 = vadd.f32 0.0, %v3032
        %v3034 = vpop.f32.mrb[0].mxu0
        %v3035 = vadd.f32 0.0, %v3034
        %3036 = vmatprep.mubr.f32.mxu0 0.0
        %3037 = vmatmul.mubr.f32.gmra.mrb[0].mxu0 %v579
        %v3038 = vpop.f32.mrb[0].mxu0
        %v3039 = vadd.f32 0.0, %v3038
        %v3040 = vpop.f32.mrb[0].mxu0
        %v3041 = vadd.f32 0.0, %v3040
        %3042 = vmatprep.mubr.f32.mxu0 0.0
        %3043 = vmatmul.mubr.f32.gmra.mrb[0].mxu0 %v580
        %v3044 = vpop.f32.mrb[0].mxu0
        %v3045 = vadd.f32 0.0, %v3044
        %v3046 = vpop.f32.mrb[0].mxu0
        %v3047 = vadd.f32 0.0, %v3046
        %3048 = vmatprep.mubr.f32.mxu0 0.0
        %3049 = vmatmul.mubr.f32.gmra.mrb[0].mxu0 %v581
        %v3050 = vpop.f32.mrb[0].mxu0
        %v3051 = vadd.f32 0.0, %v3050
        %v3052 = vpop.f32.mrb[0].mxu0
        %v3053 = vadd.f32 0.0, %v3052
        %3054 = vmatprep.mubr.f32.mxu0 0.0
        %3055 = vmatmul.mubr.f32.gmra.mrb[0].mxu0 %v582
        %v3056 = vpop.f32.mrb[0].mxu0
        %v3057 = vadd.f32 0.0, %v3056
        %v3058 = vpop.f32.mrb[0].mxu0
        %v3059 = vadd.f32 0.0, %v3058
        %3060 = vmatprep.mubr.f32.mxu0 0.0
        %3061 = vmatmul.mubr.f32.gmra.mrb[0].mxu0 %v583
        %v3062 = vpop.f32.mrb[0].mxu0
        %v3063 = vadd.f32 0.0, %v3062
        %v3064 = vpop.f32.mrb[0].mxu0
        %v3065 = vadd.f32 0.0, %v3064
        %3066 = vmatprep.mubr.f32.mxu0 0.0
        %3067 = vmatmul.mubr.f32.gmra.mrb[0].mxu0 %v584
        %v3068 = vpop.f32.mrb[0].mxu0
        %v3069 = vadd.f32 0.0, %v3068
        %v3070 = vpop.f32.mrb[0].mxu0
        %v3071 = vadd.f32 0.0, %v3070
        %3072 = vmatprep.mubr.f32.mxu0 0.0
        %3073 = vmatmul.mubr.f32.gmra.mrb[0].mxu0 %v585
        %v3074 = vpop.f32.mrb[0].mxu0
        %v3075 = vadd.f32 0.0, %v3074
        %v3076 = vpop.f32.mrb[0].mxu0
        %v3077 = vadd.f32 0.0, %v3076
        %3078 = vmatprep.mubr.f32.mxu0 0.0
        %3079 = vmatmul.mubr.f32.gmra.mrb[0].mxu0 %v586
        %v3080 = vpop.f32.mrb[0].mxu0
        %v3081 = vadd.f32 0.0, %v3080
        %v3082 = vpop.f32.mrb[0].mxu0
        %v3083 = vadd.f32 0.0, %v3082
        %3084 = vmatprep.mubr.f32.mxu0 0.0
        %3085 = vmatmul.mubr.f32.gmra.mrb[0].mxu0 %v587
        %v3086 = vpop.f32.mrb[0].mxu0
        %v3087 = vadd.f32 0.0, %v3086
        %v3088 = vpop.f32.mrb[0].mxu0
        %v3089 = vadd.f32 0.0, %v3088
        %3090 = vmatprep.mubr.f32.mxu0 0.0
        %3091 = vmatmul.mubr.f32.gmra.mrb[0].mxu0 %v588
        %v3092 = vpop.f32.mrb[0].mxu0
        %v3093 = vadd.f32 0.0, %v3092
        %v3094 = vpop.f32.mrb[0].mxu0
        %v3095 = vadd.f32 0.0, %v3094
        %3096 = vmatprep.mubr.f32.mxu0 0.0
        %3097 = vmatmul.mubr.f32.gmra.mrb[0].mxu0 %v589
        %v3098 = vpop.f32.mrb[0].mxu0
        %v3099 = vadd.f32 0.0, %v3098
        %v3100 = vpop.f32.mrb[0].mxu0
        %v3101 = vadd.f32 0.0, %v3100
        %3102 = vmatprep.mubr.f32.mxu0 0.0
        %3103 = vmatmul.mubr.f32.gmra.mrb[0].mxu0 %v590
        %v3104 = vpop.f32.mrb[0].mxu0
        %v3105 = vadd.f32 0.0, %v3104
        %v3106 = vpop.f32.mrb[0].mxu0
        %v3107 = vadd.f32 0.0, %v3106
        %3108 = vmatprep.mubr.f32.mxu0 0.0
        %3109 = vmatmul.mubr.f32.gmra.mrb[0].mxu0 %v591
        %v3110 = vpop.f32.mrb[0].mxu0
        %v3111 = vadd.f32 0.0, %v3110
        %v3112 = vpop.f32.mrb[0].mxu0
        %v3113 = vadd.f32 0.0, %v3112
        %3114 = vmatprep.mubr.f32.mxu0 0.0
        %3115 = vmatmul.mubr.f32.gmra.mrb[0].mxu0 %v592
        %v3116 = vpop.f32.mrb[0].mxu0
        %v3117 = vadd.f32 0.0, %v3116
        %v3118 = vpop.f32.mrb[0].mxu0
        %v3119 = vadd.f32 0.0, %v3118
        %3120 = vmatprep.mubr.f32.mxu0 0.0
        %3121 = vmatmul.mubr.f32.gmra.mrb[0].mxu0 %v593
        %v3122 = vpop.f32.mrb[0].mxu0
        %v3123 = vadd.f32 0.0, %v3122
        %v3124 = vpop.f32.mrb[0].mxu0
        %v3125 = vadd.f32 0.0, %v3124
        %3126 = vmatprep.mubr.f32.mxu0 0.0
        %3127 = vmatmul.mubr.f32.gmra.mrb[0].mxu0 %v594
        %v3128 = vpop.f32.mrb[0].mxu0
        %v3129 = vadd.f32 0.0, %v3128
        %v3130 = vpop.f32.mrb[0].mxu0
        %v3131 = vadd.f32 0.0, %v3130
        %3132 = vmatprep.mubr.f32.mxu0 0.0
        %3133 = vmatmul.mubr.f32.gmra.mrb[0].mxu0 %v595
        %v3134 = vpop.f32.mrb[0].mxu0
        %v3135 = vadd.f32 0.0, %v3134
        %v3136 = vpop.f32.mrb[0].mxu0
        %v3137 = vadd.f32 0.0, %v3136
        %3138 = vmatprep.mubr.f32.mxu0 0.0
        %3139 = vmatmul.mubr.f32.gmra.mrb[0].mxu0 %v596
        %v3140 = vpop.f32.mrb[0].mxu0
        %v3141 = vadd.f32 0.0, %v3140
        %v3142 = vpop.f32.mrb[0].mxu0
        %v3143 = vadd.f32 0.0, %v3142
        %3144 = vmatprep.mubr.f32.mxu0 0.0
        %3145 = vmatmul.mubr.f32.gmra.mrb[0].mxu0 %v597
        %v3146 = vpop.f32.mrb[0].mxu0
        %v3147 = vadd.f32 0.0, %v3146
        %v3148 = vpop.f32.mrb[0].mxu0
        %v3149 = vadd.f32 0.0, %v3148
        %3150 = vmatprep.mubr.f32.mxu0 0.0
        %3151 = vmatmul.mubr.f32.gmra.mrb[0].mxu0 %v598
        %v3152 = vpop.f32.mrb[0].mxu0
        %v3153 = vadd.f32 0.0, %v3152
        %v3154 = vpop.f32.mrb[0].mxu0
        %v3155 = vadd.f32 0.0, %v3154
        %3156 = vmatprep.mubr.f32.mxu0 0.0
        %3157 = vmatmul.mubr.f32.gmra.mrb[0].mxu0 %v599
        %v3158 = vpop.f32.mrb[0].mxu0
        %v3159 = vadd.f32 0.0, %v3158
        %v3160 = vpop.f32.mrb[0].mxu0
        %v3161 = vadd.f32 0.0, %v3160
        %3162 = vmatprep.mubr.f32.mxu0 0.0
        %3163 = vmatmul.mubr.f32.gmra.mrb[0].mxu0 %v600
        %v3164 = vpop.f32.mrb[0].mxu0
        %v3165 = vadd.f32 0.0, %v3164
        %v3166 = vpop.f32.mrb[0].mxu0
        %v3167 = vadd.f32 0.0, %v3166
        %3168 = vmatprep.mubr.f32.mxu0 0.0
        %3169 = vmatmul.mubr.f32.gmra.mrb[0].mxu0 %v601
        %v3170 = vpop.f32.mrb[0].mxu0
        %v3171 = vadd.f32 0.0, %v3170
        %v3172 = vpop.f32.mrb[0].mxu0
        %v3173 = vadd.f32 0.0, %v3172
        %3174 = vmatprep.mubr.f32.mxu0 0.0
        %3175 = vmatmul.mubr.f32.gmra.mrb[0].mxu0 %v602
        %v3176 = vpop.f32.mrb[0].mxu0
        %v3177 = vadd.f32 0.0, %v3176
        %v3178 = vpop.f32.mrb[0].mxu0
        %v3179 = vadd.f32 0.0, %v3178
        %3180 = vmatprep.mubr.f32.mxu0 0.0
        %3181 = vmatmul.mubr.f32.gmra.mrb[0].mxu0 %v603
        %v3182 = vpop.f32.mrb[0].mxu0
        %v3183 = vadd.f32 0.0, %v3182
        %v3184 = vpop.f32.mrb[0].mxu0
        %v3185 = vadd.f32 0.0, %v3184
        %3186 = vmatprep.mubr.f32.mxu0 0.0
        %3187 = vmatmul.mubr.f32.gmra.mrb[0].mxu0 %v604
        %v3188 = vpop.f32.mrb[0].mxu0
        %v3189 = vadd.f32 0.0, %v3188
        %v3190 = vpop.f32.mrb[0].mxu0
        %v3191 = vadd.f32 0.0, %v3190
        %3192 = vmatprep.mubr.f32.mxu0 0.0
        %3193 = vmatmul.mubr.f32.gmra.mrb[0].mxu0 %v605
        %v3194 = vpop.f32.mrb[0].mxu0
        %v3195 = vadd.f32 0.0, %v3194
        %v3196 = vpop.f32.mrb[0].mxu0
        %v3197 = vadd.f32 0.0, %v3196
        %3198 = vmatprep.mubr.f32.mxu0 0.0
        %3199 = vmatmul.mubr.f32.gmra.mrb[0].mxu0 %v606
        %v3200 = vpop.f32.mrb[0].mxu0
        %v3201 = vadd.f32 0.0, %v3200
        %v3202 = vpop.f32.mrb[0].mxu0
        %v3203 = vadd.f32 0.0, %v3202
        %3204 = vmatprep.mubr.f32.mxu0 0.0
        %3205 = vmatmul.mubr.f32.gmra.mrb[0].mxu0 %v607
        %v3206 = vpop.f32.mrb[0].mxu0
        %v3207 = vadd.f32 0.0, %v3206
        %v3208 = vpop.f32.mrb[0].mxu0
        %v3209 = vadd.f32 0.0, %v3208
        %3210 = vmatprep.mubr.f32.mxu0 0.0
        %3211 = vmatmul.mubr.f32.gmra.mrb[0].mxu0 %v608
        %v3212 = vpop.f32.mrb[0].mxu0
        %v3213 = vadd.f32 0.0, %v3212
        %v3214 = vpop.f32.mrb[0].mxu0
        %v3215 = vadd.f32 0.0, %v3214
        %3216 = vmatprep.mubr.f32.mxu0 0.0
        %3217 = vmatmul.mubr.f32.gmra.mrb[0].mxu0 %v609
        %v3218 = vpop.f32.mrb[0].mxu0
        %v3219 = vadd.f32 0.0, %v3218
        %v3220 = vpop.f32.mrb[0].mxu0
        %v3221 = vadd.f32 0.0, %v3220
        %3222 = vmatprep.mubr.f32.mxu0 0.0
        %3223 = vmatmul.mubr.f32.gmra.mrb[0].mxu0 %v610
        %v3224 = vpop.f32.mrb[0].mxu0
        %v3225 = vadd.f32 0.0, %v3224
        %v3226 = vpop.f32.mrb[0].mxu0
        %v3227 = vadd.f32 0.0, %v3226
        %3228 = vmatprep.mubr.f32.mxu0 0.0
        %3229 = vmatmul.mubr.f32.gmra.mrb[0].mxu0 %v611
        %v3230 = vpop.f32.mrb[0].mxu0
        %v3231 = vadd.f32 0.0, %v3230
        %v3232 = vpop.f32.mrb[0].mxu0
        %v3233 = vadd.f32 0.0, %v3232
        %3234 = vmatprep.mubr.f32.mxu0 0.0
        %3235 = vmatmul.mubr.f32.gmra.mrb[0].mxu0 %v612
        %v3236 = vpop.f32.mrb[0].mxu0
        %v3237 = vadd.f32 0.0, %v3236
        %v3238 = vpop.f32.mrb[0].mxu0
        %v3239 = vadd.f32 0.0, %v3238
        %3240 = vmatprep.mubr.f32.mxu0 0.0
        %3241 = vmatmul.mubr.f32.gmra.mrb[0].mxu0 %v613
        %v3242 = vpop.f32.mrb[0].mxu0
        %v3243 = vadd.f32 0.0, %v3242
        %v3244 = vpop.f32.mrb[0].mxu0
        %v3245 = vadd.f32 0.0, %v3244
        %3246 = vmatprep.mubr.f32.mxu0 0.0
        %3247 = vmatmul.mubr.f32.gmra.mrb[0].mxu0 %v614
        %v3248 = vpop.f32.mrb[0].mxu0
        %v3249 = vadd.f32 0.0, %v3248
        %v3250 = vpop.f32.mrb[0].mxu0
        %v3251 = vadd.f32 0.0, %v3250
        %3252 = vmatprep.mubr.f32.mxu0 0.0
        %3253 = vmatmul.mubr.f32.gmra.mrb[0].mxu0 %v615
        %v3254 = vpop.f32.mrb[0].mxu0
        %v3255 = vadd.f32 0.0, %v3254
        %v3256 = vpop.f32.mrb[0].mxu0
        %v3257 = vadd.f32 0.0, %v3256
        %3258 = vmatprep.mubr.f32.mxu0 0.0
        %3259 = vmatmul.mubr.f32.gmra.mrb[0].mxu0 %v616
        %v3260 = vpop.f32.mrb[0].mxu0
        %v3261 = vadd.f32 0.0, %v3260
        %v3262 = vpop.f32.mrb[0].mxu0
        %v3263 = vadd.f32 0.0, %v3262
        %3264 = vmatprep.mubr.f32.mxu0 0.0
        %3265 = vmatmul.mubr.f32.gmra.mrb[0].mxu0 %v617
        %v3266 = vpop.f32.mrb[0].mxu0
        %v3267 = vadd.f32 0.0, %v3266
        %v3268 = vpop.f32.mrb[0].mxu0
        %v3269 = vadd.f32 0.0, %v3268
        %3270 = vmatprep.mubr.f32.mxu0 0.0
        %3271 = vmatmul.mubr.f32.gmra.mrb[0].mxu0 %v618
        %v3272 = vpop.f32.mrb[0].mxu0
        %v3273 = vadd.f32 0.0, %v3272
        %v3274 = vpop.f32.mrb[0].mxu0
        %v3275 = vadd.f32 0.0, %v3274
        %3276 = vmatprep.mubr.f32.mxu0 0.0
        %3277 = vmatmul.mubr.f32.gmra.mrb[0].mxu0 %v619
        %v3278 = vpop.f32.mrb[0].mxu0
        %v3279 = vadd.f32 0.0, %v3278
        %v3280 = vpop.f32.mrb[0].mxu0
        %v3281 = vadd.f32 0.0, %v3280
        %3282 = vmatprep.mubr.f32.mxu0 0.0
        %3283 = vmatmul.mubr.f32.gmra.mrb[0].mxu0 %v620
        %v3284 = vpop.f32.mrb[0].mxu0
        %v3285 = vadd.f32 0.0, %v3284
        %v3286 = vpop.f32.mrb[0].mxu0
        %v3287 = vadd.f32 0.0, %v3286
        %3288 = vmatprep.mubr.f32.mxu0 0.0
        %3289 = vmatmul.mubr.f32.gmra.mrb[0].mxu0 %v621
        %v3290 = vpop.f32.mrb[0].mxu0
        %v3291 = vadd.f32 0.0, %v3290
        %v3292 = vpop.f32.mrb[0].mxu0
        %v3293 = vadd.f32 0.0, %v3292
        %3294 = vmatprep.mubr.f32.mxu0 0.0
        %3295 = vmatmul.mubr.f32.gmra.mrb[0].mxu0 %v622
        %v3296 = vpop.f32.mrb[0].mxu0
        %v3297 = vadd.f32 0.0, %v3296
        %v3298 = vpop.f32.mrb[0].mxu0
        %v3299 = vadd.f32 0.0, %v3298
        %3300 = vmatprep.mubr.f32.mxu0 0.0
        %3301 = vmatmul.mubr.f32.gmra.mrb[0].mxu0 %v623
        %v3302 = vpop.f32.mrb[0].mxu0
        %v3303 = vadd.f32 0.0, %v3302
        %v3304 = vpop.f32.mrb[0].mxu0
        %v3305 = vadd.f32 0.0, %v3304
        %3306 = vdwg.mxu0
        %3307 = vmatprep.subr.mxu0 0.0
        %3308 = vmatpush1.msra.mxu0 %v2908
        %3309 = vmatprep.subr.mxu0 0.0
        %3310 = vmatpush1.msra.mxu0 %v2911
        %3311 = vmatprep.subr.mxu0 0.0
        %3312 = vmatpush1.msra.mxu0 %v2914
        %3313 = vmatprep.subr.mxu0 0.0
        %3314 = vmatpush1.msra.mxu0 %v2917
        %3315 = vmatprep.subr.mxu0 0.0
        %3316 = vmatpush1.msra.mxu0 %v2920
        %3317 = vmatprep.subr.mxu0 0.0
        %3318 = vmatpush1.msra.mxu0 %v2923
        %3319 = vmatprep.subr.mxu0 0.0
        %3320 = vmatpush1.msra.mxu0 %v2926
        %3321 = vmatprep.subr.mxu0 0.0
        %3322 = vmatpush1.msra.mxu0 %v2929
        %3323 = vmatprep.subr.mxu0 0.0
        %3324 = vmatpush1.msra.mxu0 %v2932
        %3325 = vmatprep.subr.mxu0 0.0
        %3326 = vmatpush1.msra.mxu0 %v2935
        %3327 = vmatprep.subr.mxu0 0.0
        %3328 = vmatpush1.msra.mxu0 %v2938
        %3329 = vmatprep.subr.mxu0 0.0
        %3330 = vmatpush1.msra.mxu0 %v2941
        %3331 = vmatprep.subr.mxu0 0.0
        %3332 = vmatpush1.msra.mxu0 %v2944
        %3333 = vmatprep.subr.mxu0 0.0
        %3334 = vmatpush1.msra.mxu0 %v2947
        %3335 = vmatprep.subr.mxu0 0.0
        %3336 = vmatpush1.msra.mxu0 %v2950
        %3337 = vmatprep.subr.mxu0 0.0
        %3338 = vmatpush1.msra.mxu0 %v2953
        %3339 = vmatprep.subr.mxu0 0.0
        %3340 = vmatpush1.msra.mxu0 0.0
        %3341 = vmatprep.subr.mxu0 0.0
        %3342 = vmatpush1.msra.mxu0 0.0
        %3343 = vmatprep.subr.mxu0 0.0
        %3344 = vmatpush1.msra.mxu0 0.0
        %3345 = vmatprep.subr.mxu0 0.0
        %3346 = vmatpush1.msra.mxu0 0.0
        %3347 = vmatprep.subr.mxu0 0.0
        %3348 = vmatpush1.msra.mxu0 0.0
        %3349 = vmatprep.subr.mxu0 0.0
        %3350 = vmatpush1.msra.mxu0 0.0
        %3351 = vmatprep.subr.mxu0 0.0
        %3352 = vmatpush1.msra.mxu0 0.0
        %3353 = vmatprep.subr.mxu0 0.0
        %3354 = vmatpush1.msra.mxu0 0.0
        %3355 = vmatprep.subr.mxu0 0.0
        %3356 = vmatpush1.msra.mxu0 0.0
        %3357 = vmatprep.subr.mxu0 0.0
        %3358 = vmatpush1.msra.mxu0 0.0
        %3359 = vmatprep.subr.mxu0 0.0
        %3360 = vmatpush1.msra.mxu0 0.0
        %3361 = vmatprep.subr.mxu0 0.0
        %3362 = vmatpush1.msra.mxu0 0.0
        %3363 = vmatprep.subr.mxu0 0.0
        %3364 = vmatpush1.msra.mxu0 0.0
        %3365 = vmatprep.subr.mxu0 0.0
        %3366 = vmatpush1.msra.mxu0 0.0
        %3367 = vmatprep.subr.mxu0 0.0
        %3368 = vmatpush1.msra.mxu0 0.0
        %3369 = vmatprep.subr.mxu0 0.0
        %3370 = vmatpush1.msra.mxu0 0.0
        %3371 = vmatprep.mubr.f32.mxu0 0.0
        %3372 = vmatmul.mubr.f32.gmra.mrb[0].mxu0 %v576
        %v3373 = vpop.f32.mrb[0].mxu0
        %v3374 = vadd.f32 0.0, %v3373
        %v3375 = vpop.f32.mrb[0].mxu0
        %3376 = vmatprep.mubr.f32.mxu0 0.0
        %3377 = vmatmul.mubr.f32.gmra.mrb[0].mxu0 %v577
        %v3378 = vpop.f32.mrb[0].mxu0
        %v3379 = vadd.f32 0.0, %v3378
        %v3380 = vpop.f32.mrb[0].mxu0
        %3381 = vmatprep.mubr.f32.mxu0 0.0
        %3382 = vmatmul.mubr.f32.gmra.mrb[0].mxu0 %v578
        %v3383 = vpop.f32.mrb[0].mxu0
        %v3384 = vadd.f32 0.0, %v3383
        %v3385 = vpop.f32.mrb[0].mxu0
        %3386 = vmatprep.mubr.f32.mxu0 0.0
        %3387 = vmatmul.mubr.f32.gmra.mrb[0].mxu0 %v579
        %v3388 = vpop.f32.mrb[0].mxu0
        %v3389 = vadd.f32 0.0, %v3388
        %v3390 = vpop.f32.mrb[0].mxu0
        %3391 = vmatprep.mubr.f32.mxu0 0.0
        %3392 = vmatmul.mubr.f32.gmra.mrb[0].mxu0 %v580
        %v3393 = vpop.f32.mrb[0].mxu0
        %v3394 = vadd.f32 0.0, %v3393
        %v3395 = vpop.f32.mrb[0].mxu0
        %3396 = vmatprep.mubr.f32.mxu0 0.0
        %3397 = vmatmul.mubr.f32.gmra.mrb[0].mxu0 %v581
        %v3398 = vpop.f32.mrb[0].mxu0
        %v3399 = vadd.f32 0.0, %v3398
        %v3400 = vpop.f32.mrb[0].mxu0
        %3401 = vmatprep.mubr.f32.mxu0 0.0
        %3402 = vmatmul.mubr.f32.gmra.mrb[0].mxu0 %v582
        %v3403 = vpop.f32.mrb[0].mxu0
        %v3404 = vadd.f32 0.0, %v3403
        %v3405 = vpop.f32.mrb[0].mxu0
        %3406 = vmatprep.mubr.f32.mxu0 0.0
        %3407 = vmatmul.mubr.f32.gmra.mrb[0].mxu0 %v583
        %v3408 = vpop.f32.mrb[0].mxu0
        %v3409 = vadd.f32 0.0, %v3408
        %v3410 = vpop.f32.mrb[0].mxu0
        %3411 = vmatprep.mubr.f32.mxu0 0.0
        %3412 = vmatmul.mubr.f32.gmra.mrb[0].mxu0 %v584
        %v3413 = vpop.f32.mrb[0].mxu0
        %v3414 = vadd.f32 0.0, %v3413
        %v3415 = vpop.f32.mrb[0].mxu0
        %3416 = vmatprep.mubr.f32.mxu0 0.0
        %3417 = vmatmul.mubr.f32.gmra.mrb[0].mxu0 %v585
        %v3418 = vpop.f32.mrb[0].mxu0
        %v3419 = vadd.f32 0.0, %v3418
        %v3420 = vpop.f32.mrb[0].mxu0
        %3421 = vmatprep.mubr.f32.mxu0 0.0
        %3422 = vmatmul.mubr.f32.gmra.mrb[0].mxu0 %v586
        %v3423 = vpop.f32.mrb[0].mxu0
        %v3424 = vadd.f32 0.0, %v3423
        %v3425 = vpop.f32.mrb[0].mxu0
        %3426 = vmatprep.mubr.f32.mxu0 0.0
        %3427 = vmatmul.mubr.f32.gmra.mrb[0].mxu0 %v587
        %v3428 = vpop.f32.mrb[0].mxu0
        %v3429 = vadd.f32 0.0, %v3428
        %v3430 = vpop.f32.mrb[0].mxu0
        %3431 = vmatprep.mubr.f32.mxu0 0.0
        %3432 = vmatmul.mubr.f32.gmra.mrb[0].mxu0 %v588
        %v3433 = vpop.f32.mrb[0].mxu0
        %v3434 = vadd.f32 0.0, %v3433
        %v3435 = vpop.f32.mrb[0].mxu0
        %3436 = vmatprep.mubr.f32.mxu0 0.0
        %3437 = vmatmul.mubr.f32.gmra.mrb[0].mxu0 %v589
        %v3438 = vpop.f32.mrb[0].mxu0
        %v3439 = vadd.f32 0.0, %v3438
        %v3440 = vpop.f32.mrb[0].mxu0
        %3441 = vmatprep.mubr.f32.mxu0 0.0
        %3442 = vmatmul.mubr.f32.gmra.mrb[0].mxu0 %v590
        %v3443 = vpop.f32.mrb[0].mxu0
        %v3444 = vadd.f32 0.0, %v3443
        %v3445 = vpop.f32.mrb[0].mxu0
        %3446 = vmatprep.mubr.f32.mxu0 0.0
        %3447 = vmatmul.mubr.f32.gmra.mrb[0].mxu0 %v591
        %v3448 = vpop.f32.mrb[0].mxu0
        %v3449 = vadd.f32 0.0, %v3448
        %v3450 = vpop.f32.mrb[0].mxu0
        %3451 = vmatprep.mubr.f32.mxu0 0.0
        %3452 = vmatmul.mubr.f32.gmra.mrb[0].mxu0 %v592
        %v3453 = vpop.f32.mrb[0].mxu0
        %v3454 = vadd.f32 0.0, %v3453
        %v3455 = vpop.f32.mrb[0].mxu0
        %3456 = vmatprep.mubr.f32.mxu0 0.0
        %3457 = vmatmul.mubr.f32.gmra.mrb[0].mxu0 %v593
        %v3458 = vpop.f32.mrb[0].mxu0
        %v3459 = vadd.f32 0.0, %v3458
        %v3460 = vpop.f32.mrb[0].mxu0
        %3461 = vmatprep.mubr.f32.mxu0 0.0
        %3462 = vmatmul.mubr.f32.gmra.mrb[0].mxu0 %v594
        %v3463 = vpop.f32.mrb[0].mxu0
        %v3464 = vadd.f32 0.0, %v3463
        %v3465 = vpop.f32.mrb[0].mxu0
        %3466 = vmatprep.mubr.f32.mxu0 0.0
        %3467 = vmatmul.mubr.f32.gmra.mrb[0].mxu0 %v595
        %v3468 = vpop.f32.mrb[0].mxu0
        %v3469 = vadd.f32 0.0, %v3468
        %v3470 = vpop.f32.mrb[0].mxu0
        %3471 = vmatprep.mubr.f32.mxu0 0.0
        %3472 = vmatmul.mubr.f32.gmra.mrb[0].mxu0 %v596
        %v3473 = vpop.f32.mrb[0].mxu0
        %v3474 = vadd.f32 0.0, %v3473
        %v3475 = vpop.f32.mrb[0].mxu0
        %3476 = vmatprep.mubr.f32.mxu0 0.0
        %3477 = vmatmul.mubr.f32.gmra.mrb[0].mxu0 %v597
        %v3478 = vpop.f32.mrb[0].mxu0
        %v3479 = vadd.f32 0.0, %v3478
        %v3480 = vpop.f32.mrb[0].mxu0
        %3481 = vmatprep.mubr.f32.mxu0 0.0
        %3482 = vmatmul.mubr.f32.gmra.mrb[0].mxu0 %v598
        %v3483 = vpop.f32.mrb[0].mxu0
        %v3484 = vadd.f32 0.0, %v3483
        %v3485 = vpop.f32.mrb[0].mxu0
        %3486 = vmatprep.mubr.f32.mxu0 0.0
        %3487 = vmatmul.mubr.f32.gmra.mrb[0].mxu0 %v599
        %v3488 = vpop.f32.mrb[0].mxu0
        %v3489 = vadd.f32 0.0, %v3488
        %v3490 = vpop.f32.mrb[0].mxu0
        %3491 = vmatprep.mubr.f32.mxu0 0.0
        %3492 = vmatmul.mubr.f32.gmra.mrb[0].mxu0 %v600
        %v3493 = vpop.f32.mrb[0].mxu0
        %v3494 = vadd.f32 0.0, %v3493
        %v3495 = vpop.f32.mrb[0].mxu0
        %3496 = vmatprep.mubr.f32.mxu0 0.0
        %3497 = vmatmul.mubr.f32.gmra.mrb[0].mxu0 %v601
        %v3498 = vpop.f32.mrb[0].mxu0
        %v3499 = vadd.f32 0.0, %v3498
        %v3500 = vpop.f32.mrb[0].mxu0
        %3501 = vmatprep.mubr.f32.mxu0 0.0
        %3502 = vmatmul.mubr.f32.gmra.mrb[0].mxu0 %v602
        %v3503 = vpop.f32.mrb[0].mxu0
        %v3504 = vadd.f32 0.0, %v3503
        %v3505 = vpop.f32.mrb[0].mxu0
        %3506 = vmatprep.mubr.f32.mxu0 0.0
        %3507 = vmatmul.mubr.f32.gmra.mrb[0].mxu0 %v603
        %v3508 = vpop.f32.mrb[0].mxu0
        %v3509 = vadd.f32 0.0, %v3508
        %v3510 = vpop.f32.mrb[0].mxu0
        %3511 = vmatprep.mubr.f32.mxu0 0.0
        %3512 = vmatmul.mubr.f32.gmra.mrb[0].mxu0 %v604
        %v3513 = vpop.f32.mrb[0].mxu0
        %v3514 = vadd.f32 0.0, %v3513
        %v3515 = vpop.f32.mrb[0].mxu0
        %3516 = vmatprep.mubr.f32.mxu0 0.0
        %3517 = vmatmul.mubr.f32.gmra.mrb[0].mxu0 %v605
        %v3518 = vpop.f32.mrb[0].mxu0
        %v3519 = vadd.f32 0.0, %v3518
        %v3520 = vpop.f32.mrb[0].mxu0
        %3521 = vmatprep.mubr.f32.mxu0 0.0
        %3522 = vmatmul.mubr.f32.gmra.mrb[0].mxu0 %v606
        %v3523 = vpop.f32.mrb[0].mxu0
        %v3524 = vadd.f32 0.0, %v3523
        %v3525 = vpop.f32.mrb[0].mxu0
        %3526 = vmatprep.mubr.f32.mxu0 0.0
        %3527 = vmatmul.mubr.f32.gmra.mrb[0].mxu0 %v607
        %v3528 = vpop.f32.mrb[0].mxu0
        %v3529 = vadd.f32 0.0, %v3528
        %v3530 = vpop.f32.mrb[0].mxu0
        %3531 = vmatprep.mubr.f32.mxu0 0.0
        %3532 = vmatmul.mubr.f32.gmra.mrb[0].mxu0 %v608
        %v3533 = vpop.f32.mrb[0].mxu0
        %v3534 = vadd.f32 0.0, %v3533
        %v3535 = vpop.f32.mrb[0].mxu0
        %3536 = vmatprep.mubr.f32.mxu0 0.0
        %3537 = vmatmul.mubr.f32.gmra.mrb[0].mxu0 %v609
        %v3538 = vpop.f32.mrb[0].mxu0
        %v3539 = vadd.f32 0.0, %v3538
        %v3540 = vpop.f32.mrb[0].mxu0
        %3541 = vmatprep.mubr.f32.mxu0 0.0
        %3542 = vmatmul.mubr.f32.gmra.mrb[0].mxu0 %v610
        %v3543 = vpop.f32.mrb[0].mxu0
        %v3544 = vadd.f32 0.0, %v3543
        %v3545 = vpop.f32.mrb[0].mxu0
        %3546 = vmatprep.mubr.f32.mxu0 0.0
        %3547 = vmatmul.mubr.f32.gmra.mrb[0].mxu0 %v611
        %v3548 = vpop.f32.mrb[0].mxu0
        %v3549 = vadd.f32 0.0, %v3548
        %v3550 = vpop.f32.mrb[0].mxu0
        %3551 = vmatprep.mubr.f32.mxu0 0.0
        %3552 = vmatmul.mubr.f32.gmra.mrb[0].mxu0 %v612
        %v3553 = vpop.f32.mrb[0].mxu0
        %v3554 = vadd.f32 0.0, %v3553
        %v3555 = vpop.f32.mrb[0].mxu0
        %3556 = vmatprep.mubr.f32.mxu0 0.0
        %3557 = vmatmul.mubr.f32.gmra.mrb[0].mxu0 %v613
        %v3558 = vpop.f32.mrb[0].mxu0
        %v3559 = vadd.f32 0.0, %v3558
        %v3560 = vpop.f32.mrb[0].mxu0
        %3561 = vmatprep.mubr.f32.mxu0 0.0
        %3562 = vmatmul.mubr.f32.gmra.mrb[0].mxu0 %v614
        %v3563 = vpop.f32.mrb[0].mxu0
        %v3564 = vadd.f32 0.0, %v3563
        %v3565 = vpop.f32.mrb[0].mxu0
        %3566 = vmatprep.mubr.f32.mxu0 0.0
        %3567 = vmatmul.mubr.f32.gmra.mrb[0].mxu0 %v615
        %v3568 = vpop.f32.mrb[0].mxu0
        %v3569 = vadd.f32 0.0, %v3568
        %v3570 = vpop.f32.mrb[0].mxu0
        %3571 = vmatprep.mubr.f32.mxu0 0.0
        %3572 = vmatmul.mubr.f32.gmra.mrb[0].mxu0 %v616
        %v3573 = vpop.f32.mrb[0].mxu0
        %v3574 = vadd.f32 0.0, %v3573
        %v3575 = vpop.f32.mrb[0].mxu0
        %3576 = vmatprep.mubr.f32.mxu0 0.0
        %3577 = vmatmul.mubr.f32.gmra.mrb[0].mxu0 %v617
        %v3578 = vpop.f32.mrb[0].mxu0
        %v3579 = vadd.f32 0.0, %v3578
        %v3580 = vpop.f32.mrb[0].mxu0
        %3581 = vmatprep.mubr.f32.mxu0 0.0
        %3582 = vmatmul.mubr.f32.gmra.mrb[0].mxu0 %v618
        %v3583 = vpop.f32.mrb[0].mxu0
        %v3584 = vadd.f32 0.0, %v3583
        %v3585 = vpop.f32.mrb[0].mxu0
        %3586 = vmatprep.mubr.f32.mxu0 0.0
        %3587 = vmatmul.mubr.f32.gmra.mrb[0].mxu0 %v619
        %v3588 = vpop.f32.mrb[0].mxu0
        %v3589 = vadd.f32 0.0, %v3588
        %v3590 = vpop.f32.mrb[0].mxu0
        %3591 = vmatprep.mubr.f32.mxu0 0.0
        %3592 = vmatmul.mubr.f32.gmra.mrb[0].mxu0 %v620
        %v3593 = vpop.f32.mrb[0].mxu0
        %v3594 = vadd.f32 0.0, %v3593
        %v3595 = vpop.f32.mrb[0].mxu0
        %3596 = vmatprep.mubr.f32.mxu0 0.0
        %3597 = vmatmul.mubr.f32.gmra.mrb[0].mxu0 %v621
        %v3598 = vpop.f32.mrb[0].mxu0
        %v3599 = vadd.f32 0.0, %v3598
        %v3600 = vpop.f32.mrb[0].mxu0
        %3601 = vmatprep.mubr.f32.mxu0 0.0
        %3602 = vmatmul.mubr.f32.gmra.mrb[0].mxu0 %v622
        %v3603 = vpop.f32.mrb[0].mxu0
        %v3604 = vadd.f32 0.0, %v3603
        %v3605 = vpop.f32.mrb[0].mxu0
        %3606 = vmatprep.mubr.f32.mxu0 0.0
        %3607 = vmatmul.mubr.f32.gmra.mrb[0].mxu0 %v623
        %v3608 = vpop.f32.mrb[0].mxu0
        %v3609 = vadd.f32 0.0, %v3608
        %v3610 = vpop.f32.mrb[0].mxu0
        %3611 = vdwg.mxu0
        %v3612 = vrot.slane %v3023, 1
        %v3613 = vrot.slane %v3029, 1
        %v3614 = vrot.slane %v3035, 1
        %v3615 = vrot.slane %v3041, 1
        %v3616 = vrot.slane %v3047, 1
        %v3617 = vrot.slane %v3053, 1
        %v3618 = vrot.slane %v3059, 1
        %v3619 = vrot.slane %v3065, 1
        %v3620 = vrot.slane %v3071, 1
        %v3621 = vrot.slane %v3077, 1
        %v3622 = vrot.slane %v3083, 1
        %v3623 = vrot.slane %v3089, 1
        %v3624 = vrot.slane %v3095, 1
        %v3625 = vrot.slane %v3101, 1
        %v3626 = vrot.slane %v3107, 1
        %v3627 = vrot.slane %v3113, 1
        %v3628 = vrot.slane %v3119, 1
        %v3629 = vrot.slane %v3125, 1
        %v3630 = vrot.slane %v3131, 1
        %v3631 = vrot.slane %v3137, 1
        %v3632 = vrot.slane %v3143, 1
        %v3633 = vrot.slane %v3149, 1
        %v3634 = vrot.slane %v3155, 1
        %v3635 = vrot.slane %v3161, 1
        %v3636 = vrot.slane %v3167, 1
        %v3637 = vrot.slane %v3173, 1
        %v3638 = vrot.slane %v3179, 1
        %v3639 = vrot.slane %v3185, 1
        %v3640 = vrot.slane %v3191, 1
        %v3641 = vrot.slane %v3197, 1
        %v3642 = vrot.slane %v3203, 1
        %v3643 = vrot.slane %v3209, 1
        %v3644 = vrot.slane %v3215, 1
        %v3645 = vrot.slane %v3221, 1
        %v3646 = vrot.slane %v3227, 1
        %v3647 = vrot.slane %v3233, 1
        %v3648 = vrot.slane %v3239, 1
        %v3649 = vrot.slane %v3245, 1
        %v3650 = vrot.slane %v3251, 1
        %v3651 = vrot.slane %v3257, 1
        %v3652 = vrot.slane %v3263, 1
        %v3653 = vrot.slane %v3269, 1
        %v3654 = vrot.slane %v3275, 1
        %v3655 = vrot.slane %v3281, 1
        %v3656 = vrot.slane %v3287, 1
        %v3657 = vrot.slane %v3293, 1
        %v3658 = vrot.slane %v3299, 1
        %v3659 = vrot.slane %v3305, 1
        %v3660 = vsel %vm1380, %v3658, %v3659
        %v3661 = vsel %vm1380, %v3657, %v3658
        %v3662 = vsel %vm1380, %v3656, %v3657
        %v3663 = vsel %vm1380, %v3655, %v3656
        %v3664 = vsel %vm1380, %v3654, %v3655
        %v3665 = vsel %vm1380, %v3653, %v3654
        %v3666 = vsel %vm1380, %v3652, %v3653
        %v3667 = vsel %vm1380, %v3651, %v3652
        %v3668 = vsel %vm1380, %v3650, %v3651
        %v3669 = vsel %vm1380, %v3649, %v3650
        %v3670 = vsel %vm1380, %v3648, %v3649
        %v3671 = vsel %vm1380, %v3647, %v3648
        %v3672 = vsel %vm1380, %v3646, %v3647
        %v3673 = vsel %vm1380, %v3645, %v3646
        %v3674 = vsel %vm1380, %v3644, %v3645
        %v3675 = vsel %vm1380, %v3643, %v3644
        %v3676 = vsel %vm1380, %v3642, %v3643
        %v3677 = vsel %vm1380, %v3641, %v3642
        %v3678 = vsel %vm1380, %v3640, %v3641
        %v3679 = vsel %vm1380, %v3639, %v3640
        %v3680 = vsel %vm1380, %v3638, %v3639
        %v3681 = vsel %vm1380, %v3637, %v3638
        %v3682 = vsel %vm1380, %v3636, %v3637
        %v3683 = vsel %vm1380, %v3635, %v3636
        %v3684 = vsel %vm1380, %v3634, %v3635
        %v3685 = vsel %vm1380, %v3633, %v3634
        %v3686 = vsel %vm1380, %v3632, %v3633
        %v3687 = vsel %vm1380, %v3631, %v3632
        %v3688 = vsel %vm1380, %v3630, %v3631
        %v3689 = vsel %vm1380, %v3629, %v3630
        %v3690 = vsel %vm1380, %v3628, %v3629
        %v3691 = vsel %vm1380, %v3627, %v3628
        %v3692 = vsel %vm1380, %v3626, %v3627
        %v3693 = vsel %vm1380, %v3625, %v3626
        %v3694 = vsel %vm1380, %v3624, %v3625
        %v3695 = vsel %vm1380, %v3623, %v3624
        %v3696 = vsel %vm1380, %v3622, %v3623
        %v3697 = vsel %vm1380, %v3621, %v3622
        %v3698 = vsel %vm1380, %v3620, %v3621
        %v3699 = vsel %vm1380, %v3619, %v3620
        %v3700 = vsel %vm1380, %v3618, %v3619
        %v3701 = vsel %vm1380, %v3617, %v3618
        %v3702 = vsel %vm1380, %v3616, %v3617
        %v3703 = vsel %vm1380, %v3615, %v3616
        %v3704 = vsel %vm1380, %v3614, %v3615
        %v3705 = vsel %vm1380, %v3613, %v3614
        %v3706 = vsel %vm1380, %v3612, %v3613
        %v3707 = vsel %vm1380, %v3659, %v3612
        %v3708 = vadd.f32 %v3021, %v3706
        %v3709 = vadd.f32 %v3027, %v3705
        %v3710 = vadd.f32 %v3033, %v3704
        %v3711 = vadd.f32 %v3039, %v3703
        %v3712 = vadd.f32 %v3045, %v3702
        %v3713 = vadd.f32 %v3051, %v3701
        %v3714 = vadd.f32 %v3057, %v3700
        %v3715 = vadd.f32 %v3063, %v3699
        %v3716 = vadd.f32 %v3069, %v3698
        %v3717 = vadd.f32 %v3075, %v3697
        %v3718 = vadd.f32 %v3081, %v3696
        %v3719 = vadd.f32 %v3087, %v3695
        %v3720 = vadd.f32 %v3093, %v3694
        %v3721 = vadd.f32 %v3099, %v3693
        %v3722 = vadd.f32 %v3105, %v3692
        %v3723 = vadd.f32 %v3111, %v3691
        %v3724 = vadd.f32 %v3117, %v3690
        %v3725 = vadd.f32 %v3123, %v3689
        %v3726 = vadd.f32 %v3129, %v3688
        %v3727 = vadd.f32 %v3135, %v3687
        %v3728 = vadd.f32 %v3141, %v3686
        %v3729 = vadd.f32 %v3147, %v3685
        %v3730 = vadd.f32 %v3153, %v3684
        %v3731 = vadd.f32 %v3159, %v3683
        %v3732 = vadd.f32 %v3165, %v3682
        %v3733 = vadd.f32 %v3171, %v3681
        %v3734 = vadd.f32 %v3177, %v3680
        %v3735 = vadd.f32 %v3183, %v3679
        %v3736 = vadd.f32 %v3189, %v3678
        %v3737 = vadd.f32 %v3195, %v3677
        %v3738 = vadd.f32 %v3201, %v3676
        %v3739 = vadd.f32 %v3207, %v3675
        %v3740 = vadd.f32 %v3213, %v3674
        %v3741 = vadd.f32 %v3219, %v3673
        %v3742 = vadd.f32 %v3225, %v3672
        %v3743 = vadd.f32 %v3231, %v3671
        %v3744 = vadd.f32 %v3237, %v3670
        %v3745 = vadd.f32 %v3243, %v3669
        %v3746 = vadd.f32 %v3249, %v3668
        %v3747 = vadd.f32 %v3255, %v3667
        %v3748 = vadd.f32 %v3261, %v3666
        %v3749 = vadd.f32 %v3267, %v3665
        %v3750 = vadd.f32 %v3273, %v3664
        %v3751 = vadd.f32 %v3279, %v3663
        %v3752 = vadd.f32 %v3285, %v3662
        %v3753 = vadd.f32 %v3291, %v3661
        %v3754 = vadd.f32 %v3297, %v3660
        %v3755 = vadd.f32 %v3303, %v3707
        %v3756 = vrot.slane %v3374, 2
        %v3757 = vrot.slane %v3379, 2
        %v3758 = vrot.slane %v3384, 2
        %v3759 = vrot.slane %v3389, 2
        %v3760 = vrot.slane %v3394, 2
        %v3761 = vrot.slane %v3399, 2
        %v3762 = vrot.slane %v3404, 2
        %v3763 = vrot.slane %v3409, 2
        %v3764 = vrot.slane %v3414, 2
        %v3765 = vrot.slane %v3419, 2
        %v3766 = vrot.slane %v3424, 2
        %v3767 = vrot.slane %v3429, 2
        %v3768 = vrot.slane %v3434, 2
        %v3769 = vrot.slane %v3439, 2
        %v3770 = vrot.slane %v3444, 2
        %v3771 = vrot.slane %v3449, 2
        %v3772 = vrot.slane %v3454, 2
        %v3773 = vrot.slane %v3459, 2
        %v3774 = vrot.slane %v3464, 2
        %v3775 = vrot.slane %v3469, 2
        %v3776 = vrot.slane %v3474, 2
        %v3777 = vrot.slane %v3479, 2
        %v3778 = vrot.slane %v3484, 2
        %v3779 = vrot.slane %v3489, 2
        %v3780 = vrot.slane %v3494, 2
        %v3781 = vrot.slane %v3499, 2
        %v3782 = vrot.slane %v3504, 2
        %v3783 = vrot.slane %v3509, 2
        %v3784 = vrot.slane %v3514, 2
        %v3785 = vrot.slane %v3519, 2
        %v3786 = vrot.slane %v3524, 2
        %v3787 = vrot.slane %v3529, 2
        %v3788 = vrot.slane %v3534, 2
        %v3789 = vrot.slane %v3539, 2
        %v3790 = vrot.slane %v3544, 2
        %v3791 = vrot.slane %v3549, 2
        %v3792 = vrot.slane %v3554, 2
        %v3793 = vrot.slane %v3559, 2
        %v3794 = vrot.slane %v3564, 2
        %v3795 = vrot.slane %v3569, 2
        %v3796 = vrot.slane %v3574, 2
        %v3797 = vrot.slane %v3579, 2
        %v3798 = vrot.slane %v3584, 2
        %v3799 = vrot.slane %v3589, 2
        %v3800 = vrot.slane %v3594, 2
        %v3801 = vrot.slane %v3599, 2
        %v3802 = vrot.slane %v3604, 2
        %v3803 = vrot.slane %v3609, 2
        %v3804 = vsel %vm1525, %v3802, %v3803
        %v3805 = vsel %vm1525, %v3801, %v3802
        %v3806 = vsel %vm1525, %v3800, %v3801
        %v3807 = vsel %vm1525, %v3799, %v3800
        %v3808 = vsel %vm1525, %v3798, %v3799
        %v3809 = vsel %vm1525, %v3797, %v3798
        %v3810 = vsel %vm1525, %v3796, %v3797
        %v3811 = vsel %vm1525, %v3795, %v3796
        %v3812 = vsel %vm1525, %v3794, %v3795
        %v3813 = vsel %vm1525, %v3793, %v3794
        %v3814 = vsel %vm1525, %v3792, %v3793
        %v3815 = vsel %vm1525, %v3791, %v3792
        %v3816 = vsel %vm1525, %v3790, %v3791
        %v3817 = vsel %vm1525, %v3789, %v3790
        %v3818 = vsel %vm1525, %v3788, %v3789
        %v3819 = vsel %vm1525, %v3787, %v3788
        %v3820 = vsel %vm1525, %v3786, %v3787
        %v3821 = vsel %vm1525, %v3785, %v3786
        %v3822 = vsel %vm1525, %v3784, %v3785
        %v3823 = vsel %vm1525, %v3783, %v3784
        %v3824 = vsel %vm1525, %v3782, %v3783
        %v3825 = vsel %vm1525, %v3781, %v3782
        %v3826 = vsel %vm1525, %v3780, %v3781
        %v3827 = vsel %vm1525, %v3779, %v3780
        %v3828 = vsel %vm1525, %v3778, %v3779
        %v3829 = vsel %vm1525, %v3777, %v3778
        %v3830 = vsel %vm1525, %v3776, %v3777
        %v3831 = vsel %vm1525, %v3775, %v3776
        %v3832 = vsel %vm1525, %v3774, %v3775
        %v3833 = vsel %vm1525, %v3773, %v3774
        %v3834 = vsel %vm1525, %v3772, %v3773
        %v3835 = vsel %vm1525, %v3771, %v3772
        %v3836 = vsel %vm1525, %v3770, %v3771
        %v3837 = vsel %vm1525, %v3769, %v3770
        %v3838 = vsel %vm1525, %v3768, %v3769
        %v3839 = vsel %vm1525, %v3767, %v3768
        %v3840 = vsel %vm1525, %v3766, %v3767
        %v3841 = vsel %vm1525, %v3765, %v3766
        %v3842 = vsel %vm1525, %v3764, %v3765
        %v3843 = vsel %vm1525, %v3763, %v3764
        %v3844 = vsel %vm1525, %v3762, %v3763
        %v3845 = vsel %vm1525, %v3761, %v3762
        %v3846 = vsel %vm1525, %v3760, %v3761
        %v3847 = vsel %vm1525, %v3759, %v3760
        %v3848 = vsel %vm1525, %v3758, %v3759
        %v3849 = vsel %vm1525, %v3757, %v3758
        %v3850 = vsel %vm1525, %v3756, %v3757
        %v3851 = vsel %vm1525, %v3803, %v3756
        %v3852 = vadd.f32 %v3708, %v3850
        %v3853 = vadd.f32 %v3709, %v3849
        %v3854 = vadd.f32 %v3710, %v3848
        %v3855 = vadd.f32 %v3711, %v3847
        %v3856 = vadd.f32 %v3712, %v3846
        %v3857 = vadd.f32 %v3713, %v3845
        %v3858 = vadd.f32 %v3714, %v3844
        %v3859 = vadd.f32 %v3715, %v3843
        %v3860 = vadd.f32 %v3716, %v3842
        %v3861 = vadd.f32 %v3717, %v3841
        %v3862 = vadd.f32 %v3718, %v3840
        %v3863 = vadd.f32 %v3719, %v3839
        %v3864 = vadd.f32 %v3720, %v3838
        %v3865 = vadd.f32 %v3721, %v3837
        %v3866 = vadd.f32 %v3722, %v3836
        %v3867 = vadd.f32 %v3723, %v3835
        %v3868 = vadd.f32 %v3724, %v3834
        %v3869 = vadd.f32 %v3725, %v3833
        %v3870 = vadd.f32 %v3726, %v3832
        %v3871 = vadd.f32 %v3727, %v3831
        %v3872 = vadd.f32 %v3728, %v3830
        %v3873 = vadd.f32 %v3729, %v3829
        %v3874 = vadd.f32 %v3730, %v3828
        %v3875 = vadd.f32 %v3731, %v3827
        %v3876 = vadd.f32 %v3732, %v3826
        %v3877 = vadd.f32 %v3733, %v3825
        %v3878 = vadd.f32 %v3734, %v3824
        %v3879 = vadd.f32 %v3735, %v3823
        %v3880 = vadd.f32 %v3736, %v3822
        %v3881 = vadd.f32 %v3737, %v3821
        %v3882 = vadd.f32 %v3738, %v3820
        %v3883 = vadd.f32 %v3739, %v3819
        %v3884 = vadd.f32 %v3740, %v3818
        %v3885 = vadd.f32 %v3741, %v3817
        %v3886 = vadd.f32 %v3742, %v3816
        %v3887 = vadd.f32 %v3743, %v3815
        %v3888 = vadd.f32 %v3744, %v3814
        %v3889 = vadd.f32 %v3745, %v3813
        %v3890 = vadd.f32 %v3746, %v3812
        %v3891 = vadd.f32 %v3747, %v3811
        %v3892 = vadd.f32 %v3748, %v3810
        %v3893 = vadd.f32 %v3749, %v3809
        %v3894 = vadd.f32 %v3750, %v3808
        %v3895 = vadd.f32 %v3751, %v3807
        %v3896 = vadd.f32 %v3752, %v3806
        %v3897 = vadd.f32 %v3753, %v3805
        %v3898 = vadd.f32 %v3754, %v3804
        %v3899 = vadd.f32 %v3755, %v3851
        %v3900 = vld [vmem:[#allocation2] sm:$0xff]
        %v3901 = vld [vmem:[#allocation2 + $0x8] sm:$0xff]
        %v3902 = vld [vmem:[#allocation2 + $0x10] sm:$0xff]
        %v3903 = vld [vmem:[#allocation2 + $0x18] sm:$0xff]
        %v3904 = vld [vmem:[#allocation2 + $0x20] sm:$0xff]
        %v3905 = vld [vmem:[#allocation2 + $0x28] sm:$0xff]
        %v3906 = vld [vmem:[#allocation2 + $0x30] sm:$0xff]
        %v3907 = vld [vmem:[#allocation2 + $0x38] sm:$0xff]
        %v3908 = vld [vmem:[#allocation2 + $0x40] sm:$0xff]
        %v3909 = vld [vmem:[#allocation2 + $0x48] sm:$0xff]
        %v3910 = vld [vmem:[#allocation2 + $0x50] sm:$0xff]
        %v3911 = vld [vmem:[#allocation2 + $0x58] sm:$0xff]
        %v3912 = vld [vmem:[#allocation2 + $0x60] sm:$0xff]
        %v3913 = vld [vmem:[#allocation2 + $0x68] sm:$0xff]
        %v3914 = vld [vmem:[#allocation2 + $0x70] sm:$0xff]
        %v3915 = vld [vmem:[#allocation2 + $0x78] sm:$0xff]
        %v3916 = vld [vmem:[#allocation2 + $0x80] sm:$0xff]
        %v3917 = vld [vmem:[#allocation2 + $0x88] sm:$0xff]
        %v3918 = vld [vmem:[#allocation2 + $0x90] sm:$0xff]
        %v3919 = vld [vmem:[#allocation2 + $0x98] sm:$0xff]
        %v3920 = vld [vmem:[#allocation2 + $0xa0] sm:$0xff]
        %v3921 = vld [vmem:[#allocation2 + $0xa8] sm:$0xff]
        %v3922 = vld [vmem:[#allocation2 + $0xb0] sm:$0xff]
        %v3923 = vld [vmem:[#allocation2 + $0xb8] sm:$0xff]
        %v3924 = vld [vmem:[#allocation2 + $0xc0] sm:$0xff]
        %v3925 = vld [vmem:[#allocation2 + $0xc8] sm:$0xff]
        %v3926 = vld [vmem:[#allocation2 + $0xd0] sm:$0xff]
        %v3927 = vld [vmem:[#allocation2 + $0xd8] sm:$0xff]
        %v3928 = vld [vmem:[#allocation2 + $0xe0] sm:$0xff]
        %v3929 = vld [vmem:[#allocation2 + $0xe8] sm:$0xff]
        %v3930 = vld [vmem:[#allocation2 + $0xf0] sm:$0xff]
        %v3931 = vld [vmem:[#allocation2 + $0xf8] sm:$0xff]
        %v3932 = vld [vmem:[#allocation2 + $0x100] sm:$0xff]
        %v3933 = vld [vmem:[#allocation2 + $0x108] sm:$0xff]
        %v3934 = vld [vmem:[#allocation2 + $0x110] sm:$0xff]
        %v3935 = vld [vmem:[#allocation2 + $0x118] sm:$0xff]
        %v3936 = vld [vmem:[#allocation2 + $0x120] sm:$0xff]
        %v3937 = vld [vmem:[#allocation2 + $0x128] sm:$0xff]
        %v3938 = vld [vmem:[#allocation2 + $0x130] sm:$0xff]
        %v3939 = vld [vmem:[#allocation2 + $0x138] sm:$0xff]
        %v3940 = vld [vmem:[#allocation2 + $0x140] sm:$0xff]
        %v3941 = vld [vmem:[#allocation2 + $0x148] sm:$0xff]
        %v3942 = vld [vmem:[#allocation2 + $0x150] sm:$0xff]
        %v3943 = vld [vmem:[#allocation2 + $0x158] sm:$0xff]
        %v3944 = vld [vmem:[#allocation2 + $0x160] sm:$0xff]
        %v3945 = vld [vmem:[#allocation2 + $0x168] sm:$0xff]
        %v3946 = vld [vmem:[#allocation2 + $0x170] sm:$0xff]
        %v3947 = vld [vmem:[#allocation2 + $0x178] sm:$0xff]
        %v3948 = vadd.f32 %v3900, %v3852
        %v3949 = vadd.f32 %v3901, %v3853
        %v3950 = vadd.f32 %v3902, %v3854
        %v3951 = vadd.f32 %v3903, %v3855
        %v3952 = vadd.f32 %v3904, %v3856
        %v3953 = vadd.f32 %v3905, %v3857
        %v3954 = vadd.f32 %v3906, %v3858
        %v3955 = vadd.f32 %v3907, %v3859
        %v3956 = vadd.f32 %v3908, %v3860
        %v3957 = vadd.f32 %v3909, %v3861
        %v3958 = vadd.f32 %v3910, %v3862
        %v3959 = vadd.f32 %v3911, %v3863
        %v3960 = vadd.f32 %v3912, %v3864
        %v3961 = vadd.f32 %v3913, %v3865
        %v3962 = vadd.f32 %v3914, %v3866
        %v3963 = vadd.f32 %v3915, %v3867
        %v3964 = vadd.f32 %v3916, %v3868
        %v3965 = vadd.f32 %v3917, %v3869
        %v3966 = vadd.f32 %v3918, %v3870
        %v3967 = vadd.f32 %v3919, %v3871
        %v3968 = vadd.f32 %v3920, %v3872
        %v3969 = vadd.f32 %v3921, %v3873
        %v3970 = vadd.f32 %v3922, %v3874
        %v3971 = vadd.f32 %v3923, %v3875
        %v3972 = vadd.f32 %v3924, %v3876
        %v3973 = vadd.f32 %v3925, %v3877
        %v3974 = vadd.f32 %v3926, %v3878
        %v3975 = vadd.f32 %v3927, %v3879
        %v3976 = vadd.f32 %v3928, %v3880
        %v3977 = vadd.f32 %v3929, %v3881
        %v3978 = vadd.f32 %v3930, %v3882
        %v3979 = vadd.f32 %v3931, %v3883
        %v3980 = vadd.f32 %v3932, %v3884
        %v3981 = vadd.f32 %v3933, %v3885
        %v3982 = vadd.f32 %v3934, %v3886
        %v3983 = vadd.f32 %v3935, %v3887
        %v3984 = vadd.f32 %v3936, %v3888
        %v3985 = vadd.f32 %v3937, %v3889
        %v3986 = vadd.f32 %v3938, %v3890
        %v3987 = vadd.f32 %v3939, %v3891
        %v3988 = vadd.f32 %v3940, %v3892
        %v3989 = vadd.f32 %v3941, %v3893
        %v3990 = vadd.f32 %v3942, %v3894
        %v3991 = vadd.f32 %v3943, %v3895
        %v3992 = vadd.f32 %v3944, %v3896
        %v3993 = vadd.f32 %v3945, %v3897
        %v3994 = vadd.f32 %v3946, %v3898
        %v3995 = vadd.f32 %v3947, %v3899
        %3996 = vst [vmem:[#allocation2] sm:$0xff] %v3948
        %3997 = vst [vmem:[#allocation2 + $0x8] sm:$0xff] %v3949
        %3998 = vst [vmem:[#allocation2 + $0x10] sm:$0xff] %v3950
        %3999 = vst [vmem:[#allocation2 + $0x18] sm:$0xff] %v3951
        %4000 = vst [vmem:[#allocation2 + $0x20] sm:$0xff] %v3952
        %4001 = vst [vmem:[#allocation2 + $0x28] sm:$0xff] %v3953
        %4002 = vst [vmem:[#allocation2 + $0x30] sm:$0xff] %v3954
        %4003 = vst [vmem:[#allocation2 + $0x38] sm:$0xff] %v3955
        %4004 = vst [vmem:[#allocation2 + $0x40] sm:$0xff] %v3956
        %4005 = vst [vmem:[#allocation2 + $0x48] sm:$0xff] %v3957
        %4006 = vst [vmem:[#allocation2 + $0x50] sm:$0xff] %v3958
        %4007 = vst [vmem:[#allocation2 + $0x58] sm:$0xff] %v3959
        %4008 = vst [vmem:[#allocation2 + $0x60] sm:$0xff] %v3960
        %4009 = vst [vmem:[#allocation2 + $0x68] sm:$0xff] %v3961
        %4010 = vst [vmem:[#allocation2 + $0x70] sm:$0xff] %v3962
        %4011 = vst [vmem:[#allocation2 + $0x78] sm:$0xff] %v3963
        %4012 = vst [vmem:[#allocation2 + $0x80] sm:$0xff] %v3964
        %4013 = vst [vmem:[#allocation2 + $0x88] sm:$0xff] %v3965
        %4014 = vst [vmem:[#allocation2 + $0x90] sm:$0xff] %v3966
        %4015 = vst [vmem:[#allocation2 + $0x98] sm:$0xff] %v3967
        %4016 = vst [vmem:[#allocation2 + $0xa0] sm:$0xff] %v3968
        %4017 = vst [vmem:[#allocation2 + $0xa8] sm:$0xff] %v3969
        %4018 = vst [vmem:[#allocation2 + $0xb0] sm:$0xff] %v3970
        %4019 = vst [vmem:[#allocation2 + $0xb8] sm:$0xff] %v3971
        %4020 = vst [vmem:[#allocation2 + $0xc0] sm:$0xff] %v3972
        %4021 = vst [vmem:[#allocation2 + $0xc8] sm:$0xff] %v3973
        %4022 = vst [vmem:[#allocation2 + $0xd0] sm:$0xff] %v3974
        %4023 = vst [vmem:[#allocation2 + $0xd8] sm:$0xff] %v3975
        %4024 = vst [vmem:[#allocation2 + $0xe0] sm:$0xff] %v3976
        %4025 = vst [vmem:[#allocation2 + $0xe8] sm:$0xff] %v3977
        %4026 = vst [vmem:[#allocation2 + $0xf0] sm:$0xff] %v3978
        %4027 = vst [vmem:[#allocation2 + $0xf8] sm:$0xff] %v3979
        %4028 = vst [vmem:[#allocation2 + $0x100] sm:$0xff] %v3980
        %4029 = vst [vmem:[#allocation2 + $0x108] sm:$0xff] %v3981
        %4030 = vst [vmem:[#allocation2 + $0x110] sm:$0xff] %v3982
        %4031 = vst [vmem:[#allocation2 + $0x118] sm:$0xff] %v3983
        %4032 = vst [vmem:[#allocation2 + $0x120] sm:$0xff] %v3984
        %4033 = vst [vmem:[#allocation2 + $0x128] sm:$0xff] %v3985
        %4034 = vst [vmem:[#allocation2 + $0x130] sm:$0xff] %v3986
        %4035 = vst [vmem:[#allocation2 + $0x138] sm:$0xff] %v3987
        %4036 = vst [vmem:[#allocation2 + $0x140] sm:$0xff] %v3988
        %4037 = vst [vmem:[#allocation2 + $0x148] sm:$0xff] %v3989
        %4038 = vst [vmem:[#allocation2 + $0x150] sm:$0xff] %v3990
        %4039 = vst [vmem:[#allocation2 + $0x158] sm:$0xff] %v3991
        %4040 = vst [vmem:[#allocation2 + $0x160] sm:$0xff] %v3992
        %4041 = vst [vmem:[#allocation2 + $0x168] sm:$0xff] %v3993
        %4042 = vst [vmem:[#allocation2 + $0x170] sm:$0xff] %v3994
        %4043 = vst [vmem:[#allocation2 + $0x178] sm:$0xff] %v3995
        %p4044 = scmp.eq.s32.totalorder %s34, 1
        // Predicated region
        $region81: #{tpu_custom_call.1} parent=47 // pred_check
          %p4045 = pneg %p4044
        $region82: #{tpu_custom_call.1} parent=47 // pred_check_branch
          %4047 = sbr.rel (%p4045) target = $region84
        $region83: #{tpu_custom_call.1} parent=47 // pred_region
          %v4048 = vld [vmem:[#allocation2] sm:$0xff]
          %v4049 = vld [vmem:[#allocation2 + $0x8] sm:$0xff]
          %v4050 = vld [vmem:[#allocation2 + $0x10] sm:$0xff]
          %v4051 = vld [vmem:[#allocation2 + $0x18] sm:$0xff]
          %v4052 = vld [vmem:[#allocation2 + $0x20] sm:$0xff]
          %v4053 = vld [vmem:[#allocation2 + $0x28] sm:$0xff]
          %v4054 = vld [vmem:[#allocation2 + $0x30] sm:$0xff]
          %v4055 = vld [vmem:[#allocation2 + $0x38] sm:$0xff]
          %v4056 = vld [vmem:[#allocation2 + $0x40] sm:$0xff]
          %v4057 = vld [vmem:[#allocation2 + $0x48] sm:$0xff]
          %v4058 = vld [vmem:[#allocation2 + $0x50] sm:$0xff]
          %v4059 = vld [vmem:[#allocation2 + $0x58] sm:$0xff]
          %v4060 = vld [vmem:[#allocation2 + $0x60] sm:$0xff]
          %v4061 = vld [vmem:[#allocation2 + $0x68] sm:$0xff]
          %v4062 = vld [vmem:[#allocation2 + $0x70] sm:$0xff]
          %v4063 = vld [vmem:[#allocation2 + $0x78] sm:$0xff]
          %v4064 = vld [vmem:[#allocation2 + $0x80] sm:$0xff]
          %v4065 = vld [vmem:[#allocation2 + $0x88] sm:$0xff]
          %v4066 = vld [vmem:[#allocation2 + $0x90] sm:$0xff]
          %v4067 = vld [vmem:[#allocation2 + $0x98] sm:$0xff]
          %v4068 = vld [vmem:[#allocation2 + $0xa0] sm:$0xff]
          %v4069 = vld [vmem:[#allocation2 + $0xa8] sm:$0xff]
          %v4070 = vld [vmem:[#allocation2 + $0xb0] sm:$0xff]
          %v4071 = vld [vmem:[#allocation2 + $0xb8] sm:$0xff]
          %v4072 = vld [vmem:[#allocation2 + $0xc0] sm:$0xff]
          %v4073 = vld [vmem:[#allocation2 + $0xc8] sm:$0xff]
          %v4074 = vld [vmem:[#allocation2 + $0xd0] sm:$0xff]
          %v4075 = vld [vmem:[#allocation2 + $0xd8] sm:$0xff]
          %v4076 = vld [vmem:[#allocation2 + $0xe0] sm:$0xff]
          %v4077 = vld [vmem:[#allocation2 + $0xe8] sm:$0xff]
          %v4078 = vld [vmem:[#allocation2 + $0xf0] sm:$0xff]
          %v4079 = vld [vmem:[#allocation2 + $0xf8] sm:$0xff]
          %v4080 = vld [vmem:[#allocation2 + $0x100] sm:$0xff]
          %v4081 = vld [vmem:[#allocation2 + $0x108] sm:$0xff]
          %v4082 = vld [vmem:[#allocation2 + $0x110] sm:$0xff]
          %v4083 = vld [vmem:[#allocation2 + $0x118] sm:$0xff]
          %v4084 = vld [vmem:[#allocation2 + $0x120] sm:$0xff]
          %v4085 = vld [vmem:[#allocation2 + $0x128] sm:$0xff]
          %v4086 = vld [vmem:[#allocation2 + $0x130] sm:$0xff]
          %v4087 = vld [vmem:[#allocation2 + $0x138] sm:$0xff]
          %v4088 = vld [vmem:[#allocation2 + $0x140] sm:$0xff]
          %v4089 = vld [vmem:[#allocation2 + $0x148] sm:$0xff]
          %v4090 = vld [vmem:[#allocation2 + $0x150] sm:$0xff]
          %v4091 = vld [vmem:[#allocation2 + $0x158] sm:$0xff]
          %v4092 = vld [vmem:[#allocation2 + $0x160] sm:$0xff]
          %v4093 = vld [vmem:[#allocation2 + $0x168] sm:$0xff]
          %v4094 = vld [vmem:[#allocation2 + $0x170] sm:$0xff]
          %v4095 = vld [vmem:[#allocation2 + $0x178] sm:$0xff]
          %v4096 = vmax.f32 %v4048, 0.0
          %v4097 = vmax.f32 %v4049, 0.0
          %v4098 = vmax.f32 %v4050, 0.0
          %v4099 = vmax.f32 %v4051, 0.0
          %v4100 = vmax.f32 %v4052, 0.0
          %v4101 = vmax.f32 %v4053, 0.0
          %v4102 = vmax.f32 %v4054, 0.0
          %v4103 = vmax.f32 %v4055, 0.0
          %v4104 = vmax.f32 %v4056, 0.0
          %v4105 = vmax.f32 %v4057, 0.0
          %v4106 = vmax.f32 %v4058, 0.0
          %v4107 = vmax.f32 %v4059, 0.0
          %v4108 = vmax.f32 %v4060, 0.0
          %v4109 = vmax.f32 %v4061, 0.0
          %v4110 = vmax.f32 %v4062, 0.0
          %v4111 = vmax.f32 %v4063, 0.0
          %v4112 = vmax.f32 %v4064, 0.0
          %v4113 = vmax.f32 %v4065, 0.0
          %v4114 = vmax.f32 %v4066, 0.0
          %v4115 = vmax.f32 %v4067, 0.0
          %v4116 = vmax.f32 %v4068, 0.0
          %v4117 = vmax.f32 %v4069, 0.0
          %v4118 = vmax.f32 %v4070, 0.0
          %v4119 = vmax.f32 %v4071, 0.0
          %v4120 = vmax.f32 %v4072, 0.0
          %v4121 = vmax.f32 %v4073, 0.0
          %v4122 = vmax.f32 %v4074, 0.0
          %v4123 = vmax.f32 %v4075, 0.0
          %v4124 = vmax.f32 %v4076, 0.0
          %v4125 = vmax.f32 %v4077, 0.0
          %v4126 = vmax.f32 %v4078, 0.0
          %v4127 = vmax.f32 %v4079, 0.0
          %v4128 = vmax.f32 %v4080, 0.0
          %v4129 = vmax.f32 %v4081, 0.0
          %v4130 = vmax.f32 %v4082, 0.0
          %v4131 = vmax.f32 %v4083, 0.0
          %v4132 = vmax.f32 %v4084, 0.0
          %v4133 = vmax.f32 %v4085, 0.0
          %v4134 = vmax.f32 %v4086, 0.0
          %v4135 = vmax.f32 %v4087, 0.0
          %v4136 = vmax.f32 %v4088, 0.0
          %v4137 = vmax.f32 %v4089, 0.0
          %v4138 = vmax.f32 %v4090, 0.0
          %v4139 = vmax.f32 %v4091, 0.0
          %v4140 = vmax.f32 %v4092, 0.0
          %v4141 = vmax.f32 %v4093, 0.0
          %v4142 = vmax.f32 %v4094, 0.0
          %v4143 = vmax.f32 %v4095, 0.0
          %v4144 = vld [vmem:[#allocation9] sm:$0xff]
          %v4145 = vld [vmem:[#allocation9 + $0x8] sm:$0xff]
          %v4146 = vld [vmem:[#allocation9 + $0x10] sm:$0xff]
          %v4147 = vld [vmem:[#allocation9 + $0x18] sm:$0xff]
          %v4148 = vld [vmem:[#allocation9 + $0x20] sm:$0xff]
          %v4149 = vld [vmem:[#allocation9 + $0x28] sm:$0xff]
          %v4150 = vld [vmem:[#allocation9 + $0x30] sm:$0xff]
          %v4151 = vld [vmem:[#allocation9 + $0x38] sm:$0xff]
          %v4152 = vld [vmem:[#allocation9 + $0x40] sm:$0xff]
          %v4153 = vld [vmem:[#allocation9 + $0x48] sm:$0xff]
          %v4154 = vld [vmem:[#allocation9 + $0x50] sm:$0xff]
          %v4155 = vld [vmem:[#allocation9 + $0x58] sm:$0xff]
          %v4156 = vld [vmem:[#allocation9 + $0x60] sm:$0xff]
          %v4157 = vld [vmem:[#allocation9 + $0x68] sm:$0xff]
          %v4158 = vld [vmem:[#allocation9 + $0x70] sm:$0xff]
          %v4159 = vld [vmem:[#allocation9 + $0x78] sm:$0xff]
          %v4160 = vld [vmem:[#allocation11] sm:$0x1]
          %v4162 = vlaneseq
          %v4163 = vshrl.u32 %v4162, 7
          %v4164 = vsub.s32 0, %v4163
          %v4165 = vrot.slane %v4160, %v4164
          %4167 = vmatprep.subr.mxu0 0.0
          %4168 = vmatpush1.msra.mxu0 %v4144
          %4169 = vmatprep.subr.mxu0 0.0
          %4170 = vmatpush1.msra.mxu0 %v4145
          %4171 = vmatprep.subr.mxu0 0.0
          %4172 = vmatpush1.msra.mxu0 %v4146
          %4173 = vmatprep.subr.mxu0 0.0
          %4174 = vmatpush1.msra.mxu0 %v4147
          %4175 = vmatprep.subr.mxu0 0.0
          %4176 = vmatpush1.msra.mxu0 %v4148
          %4177 = vmatprep.subr.mxu0 0.0
          %4178 = vmatpush1.msra.mxu0 %v4149
          %4179 = vmatprep.subr.mxu0 0.0
          %4180 = vmatpush1.msra.mxu0 %v4150
          %4181 = vmatprep.subr.mxu0 0.0
          %4182 = vmatpush1.msra.mxu0 %v4151
          %4183 = vmatprep.subr.mxu0 0.0
          %4184 = vmatpush1.msra.mxu0 %v4152
          %4185 = vmatprep.subr.mxu0 0.0
          %4186 = vmatpush1.msra.mxu0 %v4153
          %4187 = vmatprep.subr.mxu0 0.0
          %4188 = vmatpush1.msra.mxu0 %v4154
          %4189 = vmatprep.subr.mxu0 0.0
          %4190 = vmatpush1.msra.mxu0 %v4155
          %4191 = vmatprep.subr.mxu0 0.0
          %4192 = vmatpush1.msra.mxu0 %v4156
          %4193 = vmatprep.subr.mxu0 0.0
          %4194 = vmatpush1.msra.mxu0 %v4157
          %4195 = vmatprep.subr.mxu0 0.0
          %4196 = vmatpush1.msra.mxu0 %v4158
          %4197 = vmatprep.subr.mxu0 0.0
          %4198 = vmatpush1.msra.mxu0 %v4159
          %4199 = vmatprep.subr.mxu0 0.0
          %4200 = vmatpush1.msra.mxu0 0.0
          %4201 = vmatprep.subr.mxu0 0.0
          %4202 = vmatpush1.msra.mxu0 0.0
          %4203 = vmatprep.subr.mxu0 0.0
          %4204 = vmatpush1.msra.mxu0 0.0
          %4205 = vmatprep.subr.mxu0 0.0
          %4206 = vmatpush1.msra.mxu0 0.0
          %4207 = vmatprep.subr.mxu0 0.0
          %4208 = vmatpush1.msra.mxu0 0.0
          %4209 = vmatprep.subr.mxu0 0.0
          %4210 = vmatpush1.msra.mxu0 0.0
          %4211 = vmatprep.subr.mxu0 0.0
          %4212 = vmatpush1.msra.mxu0 0.0
          %4213 = vmatprep.subr.mxu0 0.0
          %4214 = vmatpush1.msra.mxu0 0.0
          %4215 = vmatprep.subr.mxu0 0.0
          %4216 = vmatpush1.msra.mxu0 0.0
          %4217 = vmatprep.subr.mxu0 0.0
          %4218 = vmatpush1.msra.mxu0 0.0
          %4219 = vmatprep.subr.mxu0 0.0
          %4220 = vmatpush1.msra.mxu0 0.0
          %4221 = vmatprep.subr.mxu0 0.0
          %4222 = vmatpush1.msra.mxu0 0.0
          %4223 = vmatprep.subr.mxu0 0.0
          %4224 = vmatpush1.msra.mxu0 0.0
          %4225 = vmatprep.subr.mxu0 0.0
          %4226 = vmatpush1.msra.mxu0 0.0
          %4227 = vmatprep.subr.mxu0 0.0
          %4228 = vmatpush1.msra.mxu0 0.0
          %4229 = vmatprep.subr.mxu0 0.0
          %4230 = vmatpush1.msra.mxu0 0.0
          %4231 = vmatprep.mubr.f32.mxu0 0.0
          %4232 = vmatmul.mubr.f32.gmra.mrb[0].mxu0 %v4096
          %v4233 = vpop.f32.mrb[0].mxu0
          %v4234 = vadd.f32 %v4165, %v4233
          %v4235 = vpop.f32.mrb[0].mxu0
          %4236 = vmatprep.mubr.f32.mxu0 0.0
          %4237 = vmatmul.mubr.f32.gmra.mrb[0].mxu0 %v4097
          %v4238 = vpop.f32.mrb[0].mxu0
          %v4239 = vadd.f32 %v4165, %v4238
          %v4240 = vpop.f32.mrb[0].mxu0
          %4241 = vmatprep.mubr.f32.mxu0 0.0
          %4242 = vmatmul.mubr.f32.gmra.mrb[0].mxu0 %v4098
          %v4243 = vpop.f32.mrb[0].mxu0
          %v4244 = vadd.f32 %v4165, %v4243
          %v4245 = vpop.f32.mrb[0].mxu0
          %4246 = vmatprep.mubr.f32.mxu0 0.0
          %4247 = vmatmul.mubr.f32.gmra.mrb[0].mxu0 %v4099
          %v4248 = vpop.f32.mrb[0].mxu0
          %v4249 = vadd.f32 %v4165, %v4248
          %v4250 = vpop.f32.mrb[0].mxu0
          %4251 = vmatprep.mubr.f32.mxu0 0.0
          %4252 = vmatmul.mubr.f32.gmra.mrb[0].mxu0 %v4100
          %v4253 = vpop.f32.mrb[0].mxu0
          %v4254 = vadd.f32 %v4165, %v4253
          %v4255 = vpop.f32.mrb[0].mxu0
          %4256 = vmatprep.mubr.f32.mxu0 0.0
          %4257 = vmatmul.mubr.f32.gmra.mrb[0].mxu0 %v4101
          %v4258 = vpop.f32.mrb[0].mxu0
          %v4259 = vadd.f32 %v4165, %v4258
          %v4260 = vpop.f32.mrb[0].mxu0
          %4261 = vmatprep.mubr.f32.mxu0 0.0
          %4262 = vmatmul.mubr.f32.gmra.mrb[0].mxu0 %v4102
          %v4263 = vpop.f32.mrb[0].mxu0
          %v4264 = vadd.f32 %v4165, %v4263
          %v4265 = vpop.f32.mrb[0].mxu0
          %4266 = vmatprep.mubr.f32.mxu0 0.0
          %4267 = vmatmul.mubr.f32.gmra.mrb[0].mxu0 %v4103
          %v4268 = vpop.f32.mrb[0].mxu0
          %v4269 = vadd.f32 %v4165, %v4268
          %v4270 = vpop.f32.mrb[0].mxu0
          %4271 = vmatprep.mubr.f32.mxu0 0.0
          %4272 = vmatmul.mubr.f32.gmra.mrb[0].mxu0 %v4104
          %v4273 = vpop.f32.mrb[0].mxu0
          %v4274 = vadd.f32 %v4165, %v4273
          %v4275 = vpop.f32.mrb[0].mxu0
          %4276 = vmatprep.mubr.f32.mxu0 0.0
          %4277 = vmatmul.mubr.f32.gmra.mrb[0].mxu0 %v4105
          %v4278 = vpop.f32.mrb[0].mxu0
          %v4279 = vadd.f32 %v4165, %v4278
          %v4280 = vpop.f32.mrb[0].mxu0
          %4281 = vmatprep.mubr.f32.mxu0 0.0
          %4282 = vmatmul.mubr.f32.gmra.mrb[0].mxu0 %v4106
          %v4283 = vpop.f32.mrb[0].mxu0
          %v4284 = vadd.f32 %v4165, %v4283
          %v4285 = vpop.f32.mrb[0].mxu0
          %4286 = vmatprep.mubr.f32.mxu0 0.0
          %4287 = vmatmul.mubr.f32.gmra.mrb[0].mxu0 %v4107
          %v4288 = vpop.f32.mrb[0].mxu0
          %v4289 = vadd.f32 %v4165, %v4288
          %v4290 = vpop.f32.mrb[0].mxu0
          %4291 = vmatprep.mubr.f32.mxu0 0.0
          %4292 = vmatmul.mubr.f32.gmra.mrb[0].mxu0 %v4108
          %v4293 = vpop.f32.mrb[0].mxu0
          %v4294 = vadd.f32 %v4165, %v4293
          %v4295 = vpop.f32.mrb[0].mxu0
          %4296 = vmatprep.mubr.f32.mxu0 0.0
          %4297 = vmatmul.mubr.f32.gmra.mrb[0].mxu0 %v4109
          %v4298 = vpop.f32.mrb[0].mxu0
          %v4299 = vadd.f32 %v4165, %v4298
          %v4300 = vpop.f32.mrb[0].mxu0
          %4301 = vmatprep.mubr.f32.mxu0 0.0
          %4302 = vmatmul.mubr.f32.gmra.mrb[0].mxu0 %v4110
          %v4303 = vpop.f32.mrb[0].mxu0
          %v4304 = vadd.f32 %v4165, %v4303
          %v4305 = vpop.f32.mrb[0].mxu0
          %4306 = vmatprep.mubr.f32.mxu0 0.0
          %4307 = vmatmul.mubr.f32.gmra.mrb[0].mxu0 %v4111
          %v4308 = vpop.f32.mrb[0].mxu0
          %v4309 = vadd.f32 %v4165, %v4308
          %v4310 = vpop.f32.mrb[0].mxu0
          %4311 = vmatprep.mubr.f32.mxu0 0.0
          %4312 = vmatmul.mubr.f32.gmra.mrb[0].mxu0 %v4112
          %v4313 = vpop.f32.mrb[0].mxu0
          %v4314 = vadd.f32 %v4165, %v4313
          %v4315 = vpop.f32.mrb[0].mxu0
          %4316 = vmatprep.mubr.f32.mxu0 0.0
          %4317 = vmatmul.mubr.f32.gmra.mrb[0].mxu0 %v4113
          %v4318 = vpop.f32.mrb[0].mxu0
          %v4319 = vadd.f32 %v4165, %v4318
          %v4320 = vpop.f32.mrb[0].mxu0
          %4321 = vmatprep.mubr.f32.mxu0 0.0
          %4322 = vmatmul.mubr.f32.gmra.mrb[0].mxu0 %v4114
          %v4323 = vpop.f32.mrb[0].mxu0
          %v4324 = vadd.f32 %v4165, %v4323
          %v4325 = vpop.f32.mrb[0].mxu0
          %4326 = vmatprep.mubr.f32.mxu0 0.0
          %4327 = vmatmul.mubr.f32.gmra.mrb[0].mxu0 %v4115
          %v4328 = vpop.f32.mrb[0].mxu0
          %v4329 = vadd.f32 %v4165, %v4328
          %v4330 = vpop.f32.mrb[0].mxu0
          %4331 = vmatprep.mubr.f32.mxu0 0.0
          %4332 = vmatmul.mubr.f32.gmra.mrb[0].mxu0 %v4116
          %v4333 = vpop.f32.mrb[0].mxu0
          %v4334 = vadd.f32 %v4165, %v4333
          %v4335 = vpop.f32.mrb[0].mxu0
          %4336 = vmatprep.mubr.f32.mxu0 0.0
          %4337 = vmatmul.mubr.f32.gmra.mrb[0].mxu0 %v4117
          %v4338 = vpop.f32.mrb[0].mxu0
          %v4339 = vadd.f32 %v4165, %v4338
          %v4340 = vpop.f32.mrb[0].mxu0
          %4341 = vmatprep.mubr.f32.mxu0 0.0
          %4342 = vmatmul.mubr.f32.gmra.mrb[0].mxu0 %v4118
          %v4343 = vpop.f32.mrb[0].mxu0
          %v4344 = vadd.f32 %v4165, %v4343
          %v4345 = vpop.f32.mrb[0].mxu0
          %4346 = vmatprep.mubr.f32.mxu0 0.0
          %4347 = vmatmul.mubr.f32.gmra.mrb[0].mxu0 %v4119
          %v4348 = vpop.f32.mrb[0].mxu0
          %v4349 = vadd.f32 %v4165, %v4348
          %v4350 = vpop.f32.mrb[0].mxu0
          %4351 = vmatprep.mubr.f32.mxu0 0.0
          %4352 = vmatmul.mubr.f32.gmra.mrb[0].mxu0 %v4120
          %v4353 = vpop.f32.mrb[0].mxu0
          %v4354 = vadd.f32 %v4165, %v4353
          %v4355 = vpop.f32.mrb[0].mxu0
          %4356 = vmatprep.mubr.f32.mxu0 0.0
          %4357 = vmatmul.mubr.f32.gmra.mrb[0].mxu0 %v4121
          %v4358 = vpop.f32.mrb[0].mxu0
          %v4359 = vadd.f32 %v4165, %v4358
          %v4360 = vpop.f32.mrb[0].mxu0
          %4361 = vmatprep.mubr.f32.mxu0 0.0
          %4362 = vmatmul.mubr.f32.gmra.mrb[0].mxu0 %v4122
          %v4363 = vpop.f32.mrb[0].mxu0
          %v4364 = vadd.f32 %v4165, %v4363
          %v4365 = vpop.f32.mrb[0].mxu0
          %4366 = vmatprep.mubr.f32.mxu0 0.0
          %4367 = vmatmul.mubr.f32.gmra.mrb[0].mxu0 %v4123
          %v4368 = vpop.f32.mrb[0].mxu0
          %v4369 = vadd.f32 %v4165, %v4368
          %v4370 = vpop.f32.mrb[0].mxu0
          %4371 = vmatprep.mubr.f32.mxu0 0.0
          %4372 = vmatmul.mubr.f32.gmra.mrb[0].mxu0 %v4124
          %v4373 = vpop.f32.mrb[0].mxu0
          %v4374 = vadd.f32 %v4165, %v4373
          %v4375 = vpop.f32.mrb[0].mxu0
          %4376 = vmatprep.mubr.f32.mxu0 0.0
          %4377 = vmatmul.mubr.f32.gmra.mrb[0].mxu0 %v4125
          %v4378 = vpop.f32.mrb[0].mxu0
          %v4379 = vadd.f32 %v4165, %v4378
          %v4380 = vpop.f32.mrb[0].mxu0
          %4381 = vmatprep.mubr.f32.mxu0 0.0
          %4382 = vmatmul.mubr.f32.gmra.mrb[0].mxu0 %v4126
          %v4383 = vpop.f32.mrb[0].mxu0
          %v4384 = vadd.f32 %v4165, %v4383
          %v4385 = vpop.f32.mrb[0].mxu0
          %4386 = vmatprep.mubr.f32.mxu0 0.0
          %4387 = vmatmul.mubr.f32.gmra.mrb[0].mxu0 %v4127
          %v4388 = vpop.f32.mrb[0].mxu0
          %v4389 = vadd.f32 %v4165, %v4388
          %v4390 = vpop.f32.mrb[0].mxu0
          %4391 = vmatprep.mubr.f32.mxu0 0.0
          %4392 = vmatmul.mubr.f32.gmra.mrb[0].mxu0 %v4128
          %v4393 = vpop.f32.mrb[0].mxu0
          %v4394 = vadd.f32 %v4165, %v4393
          %v4395 = vpop.f32.mrb[0].mxu0
          %4396 = vmatprep.mubr.f32.mxu0 0.0
          %4397 = vmatmul.mubr.f32.gmra.mrb[0].mxu0 %v4129
          %v4398 = vpop.f32.mrb[0].mxu0
          %v4399 = vadd.f32 %v4165, %v4398
          %v4400 = vpop.f32.mrb[0].mxu0
          %4401 = vmatprep.mubr.f32.mxu0 0.0
          %4402 = vmatmul.mubr.f32.gmra.mrb[0].mxu0 %v4130
          %v4403 = vpop.f32.mrb[0].mxu0
          %v4404 = vadd.f32 %v4165, %v4403
          %v4405 = vpop.f32.mrb[0].mxu0
          %4406 = vmatprep.mubr.f32.mxu0 0.0
          %4407 = vmatmul.mubr.f32.gmra.mrb[0].mxu0 %v4131
          %v4408 = vpop.f32.mrb[0].mxu0
          %v4409 = vadd.f32 %v4165, %v4408
          %v4410 = vpop.f32.mrb[0].mxu0
          %4411 = vmatprep.mubr.f32.mxu0 0.0
          %4412 = vmatmul.mubr.f32.gmra.mrb[0].mxu0 %v4132
          %v4413 = vpop.f32.mrb[0].mxu0
          %v4414 = vadd.f32 %v4165, %v4413
          %v4415 = vpop.f32.mrb[0].mxu0
          %4416 = vmatprep.mubr.f32.mxu0 0.0
          %4417 = vmatmul.mubr.f32.gmra.mrb[0].mxu0 %v4133
          %v4418 = vpop.f32.mrb[0].mxu0
          %v4419 = vadd.f32 %v4165, %v4418
          %v4420 = vpop.f32.mrb[0].mxu0
          %4421 = vmatprep.mubr.f32.mxu0 0.0
          %4422 = vmatmul.mubr.f32.gmra.mrb[0].mxu0 %v4134
          %v4423 = vpop.f32.mrb[0].mxu0
          %v4424 = vadd.f32 %v4165, %v4423
          %v4425 = vpop.f32.mrb[0].mxu0
          %4426 = vmatprep.mubr.f32.mxu0 0.0
          %4427 = vmatmul.mubr.f32.gmra.mrb[0].mxu0 %v4135
          %v4428 = vpop.f32.mrb[0].mxu0
          %v4429 = vadd.f32 %v4165, %v4428
          %v4430 = vpop.f32.mrb[0].mxu0
          %4431 = vmatprep.mubr.f32.mxu0 0.0
          %4432 = vmatmul.mubr.f32.gmra.mrb[0].mxu0 %v4136
          %v4433 = vpop.f32.mrb[0].mxu0
          %v4434 = vadd.f32 %v4165, %v4433
          %v4435 = vpop.f32.mrb[0].mxu0
          %4436 = vmatprep.mubr.f32.mxu0 0.0
          %4437 = vmatmul.mubr.f32.gmra.mrb[0].mxu0 %v4137
          %v4438 = vpop.f32.mrb[0].mxu0
          %v4439 = vadd.f32 %v4165, %v4438
          %v4440 = vpop.f32.mrb[0].mxu0
          %4441 = vmatprep.mubr.f32.mxu0 0.0
          %4442 = vmatmul.mubr.f32.gmra.mrb[0].mxu0 %v4138
          %v4443 = vpop.f32.mrb[0].mxu0
          %v4444 = vadd.f32 %v4165, %v4443
          %v4445 = vpop.f32.mrb[0].mxu0
          %4446 = vmatprep.mubr.f32.mxu0 0.0
          %4447 = vmatmul.mubr.f32.gmra.mrb[0].mxu0 %v4139
          %v4448 = vpop.f32.mrb[0].mxu0
          %v4449 = vadd.f32 %v4165, %v4448
          %v4450 = vpop.f32.mrb[0].mxu0
          %4451 = vmatprep.mubr.f32.mxu0 0.0
          %4452 = vmatmul.mubr.f32.gmra.mrb[0].mxu0 %v4140
          %v4453 = vpop.f32.mrb[0].mxu0
          %v4454 = vadd.f32 %v4165, %v4453
          %v4455 = vpop.f32.mrb[0].mxu0
          %4456 = vmatprep.mubr.f32.mxu0 0.0
          %4457 = vmatmul.mubr.f32.gmra.mrb[0].mxu0 %v4141
          %v4458 = vpop.f32.mrb[0].mxu0
          %v4459 = vadd.f32 %v4165, %v4458
          %v4460 = vpop.f32.mrb[0].mxu0
          %4461 = vmatprep.mubr.f32.mxu0 0.0
          %4462 = vmatmul.mubr.f32.gmra.mrb[0].mxu0 %v4142
          %v4463 = vpop.f32.mrb[0].mxu0
          %v4464 = vadd.f32 %v4165, %v4463
          %v4465 = vpop.f32.mrb[0].mxu0
          %4466 = vmatprep.mubr.f32.mxu0 0.0
          %4467 = vmatmul.mubr.f32.gmra.mrb[0].mxu0 %v4143
          %v4468 = vpop.f32.mrb[0].mxu0
          %v4469 = vadd.f32 %v4165, %v4468
          %v4470 = vpop.f32.mrb[0].mxu0
          %4471 = vdwg.mxu0
          %v4472 = vmax.f32 %v4234, 0.0
          %v4473 = vmax.f32 %v4239, 0.0
          %v4474 = vmax.f32 %v4244, 0.0
          %v4475 = vmax.f32 %v4249, 0.0
          %v4476 = vmax.f32 %v4254, 0.0
          %v4477 = vmax.f32 %v4259, 0.0
          %v4478 = vmax.f32 %v4264, 0.0
          %v4479 = vmax.f32 %v4269, 0.0
          %v4480 = vmax.f32 %v4274, 0.0
          %v4481 = vmax.f32 %v4279, 0.0
          %v4482 = vmax.f32 %v4284, 0.0
          %v4483 = vmax.f32 %v4289, 0.0
          %v4484 = vmax.f32 %v4294, 0.0
          %v4485 = vmax.f32 %v4299, 0.0
          %v4486 = vmax.f32 %v4304, 0.0
          %v4487 = vmax.f32 %v4309, 0.0
          %v4488 = vmax.f32 %v4314, 0.0
          %v4489 = vmax.f32 %v4319, 0.0
          %v4490 = vmax.f32 %v4324, 0.0
          %v4491 = vmax.f32 %v4329, 0.0
          %v4492 = vmax.f32 %v4334, 0.0
          %v4493 = vmax.f32 %v4339, 0.0
          %v4494 = vmax.f32 %v4344, 0.0
          %v4495 = vmax.f32 %v4349, 0.0
          %v4496 = vmax.f32 %v4354, 0.0
          %v4497 = vmax.f32 %v4359, 0.0
          %v4498 = vmax.f32 %v4364, 0.0
          %v4499 = vmax.f32 %v4369, 0.0
          %v4500 = vmax.f32 %v4374, 0.0
          %v4501 = vmax.f32 %v4379, 0.0
          %v4502 = vmax.f32 %v4384, 0.0
          %v4503 = vmax.f32 %v4389, 0.0
          %v4504 = vmax.f32 %v4394, 0.0
          %v4505 = vmax.f32 %v4399, 0.0
          %v4506 = vmax.f32 %v4404, 0.0
          %v4507 = vmax.f32 %v4409, 0.0
          %v4508 = vmax.f32 %v4414, 0.0
          %v4509 = vmax.f32 %v4419, 0.0
          %v4510 = vmax.f32 %v4424, 0.0
          %v4511 = vmax.f32 %v4429, 0.0
          %v4512 = vmax.f32 %v4434, 0.0
          %v4513 = vmax.f32 %v4439, 0.0
          %v4514 = vmax.f32 %v4444, 0.0
          %v4515 = vmax.f32 %v4449, 0.0
          %v4516 = vmax.f32 %v4454, 0.0
          %v4517 = vmax.f32 %v4459, 0.0
          %v4518 = vmax.f32 %v4464, 0.0
          %v4519 = vmax.f32 %v4469, 0.0
          %v4520 = vld [vmem:[#allocation12] sm:$0xff]
          %v4521 = vld [vmem:[#allocation12 + $0x8] sm:$0xff]
          %v4522 = vld [vmem:[#allocation12 + $0x10] sm:$0xff]
          %v4523 = vld [vmem:[#allocation12 + $0x18] sm:$0xff]
          %v4524 = vld [vmem:[#allocation12 + $0x20] sm:$0xff]
          %v4525 = vld [vmem:[#allocation12 + $0x28] sm:$0xff]
          %v4526 = vld [vmem:[#allocation12 + $0x30] sm:$0xff]
          %v4527 = vld [vmem:[#allocation12 + $0x38] sm:$0xff]
          %v4528 = vld [vmem:[#allocation12 + $0x40] sm:$0xff]
          %v4529 = vld [vmem:[#allocation12 + $0x48] sm:$0xff]
          %v4530 = vld [vmem:[#allocation12 + $0x50] sm:$0xff]
          %v4531 = vld [vmem:[#allocation12 + $0x58] sm:$0xff]
          %v4532 = vld [vmem:[#allocation12 + $0x60] sm:$0xff]
          %v4533 = vld [vmem:[#allocation12 + $0x68] sm:$0xff]
          %v4534 = vld [vmem:[#allocation12 + $0x70] sm:$0xff]
          %v4535 = vld [vmem:[#allocation12 + $0x78] sm:$0xff]
          %v4536 = vld [vmem:[#allocation14] sm:$0x1]
          %v4538 = vlaneseq
          %v4539 = vshrl.u32 %v4538, 7
          %v4540 = vsub.s32 0, %v4539
          %v4541 = vrot.slane %v4536, %v4540
          %4543 = vmatprep.subr.mxu0 0.0
          %4544 = vmatpush1.msra.mxu0 %v4520
          %4545 = vmatprep.subr.mxu0 0.0
          %4546 = vmatpush1.msra.mxu0 %v4521
          %4547 = vmatprep.subr.mxu0 0.0
          %4548 = vmatpush1.msra.mxu0 %v4522
          %4549 = vmatprep.subr.mxu0 0.0
          %4550 = vmatpush1.msra.mxu0 %v4523
          %4551 = vmatprep.subr.mxu0 0.0
          %4552 = vmatpush1.msra.mxu0 %v4524
          %4553 = vmatprep.subr.mxu0 0.0
          %4554 = vmatpush1.msra.mxu0 %v4525
          %4555 = vmatprep.subr.mxu0 0.0
          %4556 = vmatpush1.msra.mxu0 %v4526
          %4557 = vmatprep.subr.mxu0 0.0
          %4558 = vmatpush1.msra.mxu0 %v4527
          %4559 = vmatprep.subr.mxu0 0.0
          %4560 = vmatpush1.msra.mxu0 %v4528
          %4561 = vmatprep.subr.mxu0 0.0
          %4562 = vmatpush1.msra.mxu0 %v4529
          %4563 = vmatprep.subr.mxu0 0.0
          %4564 = vmatpush1.msra.mxu0 %v4530
          %4565 = vmatprep.subr.mxu0 0.0
          %4566 = vmatpush1.msra.mxu0 %v4531
          %4567 = vmatprep.subr.mxu0 0.0
          %4568 = vmatpush1.msra.mxu0 %v4532
          %4569 = vmatprep.subr.mxu0 0.0
          %4570 = vmatpush1.msra.mxu0 %v4533
          %4571 = vmatprep.subr.mxu0 0.0
          %4572 = vmatpush1.msra.mxu0 %v4534
          %4573 = vmatprep.subr.mxu0 0.0
          %4574 = vmatpush1.msra.mxu0 %v4535
          %4575 = vmatprep.subr.mxu0 0.0
          %4576 = vmatpush1.msra.mxu0 0.0
          %4577 = vmatprep.subr.mxu0 0.0
          %4578 = vmatpush1.msra.mxu0 0.0
          %4579 = vmatprep.subr.mxu0 0.0
          %4580 = vmatpush1.msra.mxu0 0.0
          %4581 = vmatprep.subr.mxu0 0.0
          %4582 = vmatpush1.msra.mxu0 0.0
          %4583 = vmatprep.subr.mxu0 0.0
          %4584 = vmatpush1.msra.mxu0 0.0
          %4585 = vmatprep.subr.mxu0 0.0
          %4586 = vmatpush1.msra.mxu0 0.0
          %4587 = vmatprep.subr.mxu0 0.0
          %4588 = vmatpush1.msra.mxu0 0.0
          %4589 = vmatprep.subr.mxu0 0.0
          %4590 = vmatpush1.msra.mxu0 0.0
          %4591 = vmatprep.subr.mxu0 0.0
          %4592 = vmatpush1.msra.mxu0 0.0
          %4593 = vmatprep.subr.mxu0 0.0
          %4594 = vmatpush1.msra.mxu0 0.0
          %4595 = vmatprep.subr.mxu0 0.0
          %4596 = vmatpush1.msra.mxu0 0.0
          %4597 = vmatprep.subr.mxu0 0.0
          %4598 = vmatpush1.msra.mxu0 0.0
          %4599 = vmatprep.subr.mxu0 0.0
          %4600 = vmatpush1.msra.mxu0 0.0
          %4601 = vmatprep.subr.mxu0 0.0
          %4602 = vmatpush1.msra.mxu0 0.0
          %4603 = vmatprep.subr.mxu0 0.0
          %4604 = vmatpush1.msra.mxu0 0.0
          %4605 = vmatprep.subr.mxu0 0.0
          %4606 = vmatpush1.msra.mxu0 0.0
          %4607 = vmatprep.mubr.f32.mxu0 0.0
          %4608 = vmatmul.mubr.f32.gmra.mrb[0].mxu0 %v4472
          %v4609 = vpop.f32.mrb[0].mxu0
          %v4610 = vadd.f32 %v4541, %v4609
          %v4611 = vpop.f32.mrb[0].mxu0
          %4612 = vmatprep.mubr.f32.mxu0 0.0
          %4613 = vmatmul.mubr.f32.gmra.mrb[0].mxu0 %v4473
          %v4614 = vpop.f32.mrb[0].mxu0
          %v4615 = vadd.f32 %v4541, %v4614
          %v4616 = vpop.f32.mrb[0].mxu0
          %4617 = vmatprep.mubr.f32.mxu0 0.0
          %4618 = vmatmul.mubr.f32.gmra.mrb[0].mxu0 %v4474
          %v4619 = vpop.f32.mrb[0].mxu0
          %v4620 = vpop.f32.mrb[0].mxu0
          %4621 = vmatprep.mubr.f32.mxu0 0.0
          %4622 = vmatmul.mubr.f32.gmra.mrb[0].mxu0 %v4475
          %v4623 = vpop.f32.mrb[0].mxu0
          %v4624 = vadd.f32 %v4541, %v4623
          %v4625 = vpop.f32.mrb[0].mxu0
          %4626 = vmatprep.mubr.f32.mxu0 0.0
          %4627 = vmatmul.mubr.f32.gmra.mrb[0].mxu0 %v4476
          %v4628 = vpop.f32.mrb[0].mxu0
          %v4629 = vadd.f32 %v4541, %v4628
          %v4630 = vpop.f32.mrb[0].mxu0
          %4631 = vmatprep.mubr.f32.mxu0 0.0
          %4632 = vmatmul.mubr.f32.gmra.mrb[0].mxu0 %v4477
          %v4633 = vpop.f32.mrb[0].mxu0
          %v4634 = vpop.f32.mrb[0].mxu0
          %4635 = vmatprep.mubr.f32.mxu0 0.0
          %4636 = vmatmul.mubr.f32.gmra.mrb[0].mxu0 %v4478
          %v4637 = vpop.f32.mrb[0].mxu0
          %v4638 = vadd.f32 %v4541, %v4637
          %v4639 = vpop.f32.mrb[0].mxu0
          %4640 = vmatprep.mubr.f32.mxu0 0.0
          %4641 = vmatmul.mubr.f32.gmra.mrb[0].mxu0 %v4479
          %v4642 = vpop.f32.mrb[0].mxu0
          %v4643 = vadd.f32 %v4541, %v4642
          %v4644 = vpop.f32.mrb[0].mxu0
          %4645 = vmatprep.mubr.f32.mxu0 0.0
          %4646 = vmatmul.mubr.f32.gmra.mrb[0].mxu0 %v4480
          %v4647 = vpop.f32.mrb[0].mxu0
          %v4648 = vpop.f32.mrb[0].mxu0
          %4649 = vmatprep.mubr.f32.mxu0 0.0
          %4650 = vmatmul.mubr.f32.gmra.mrb[0].mxu0 %v4481
          %v4651 = vpop.f32.mrb[0].mxu0
          %v4652 = vadd.f32 %v4541, %v4651
          %v4653 = vpop.f32.mrb[0].mxu0
          %4654 = vmatprep.mubr.f32.mxu0 0.0
          %4655 = vmatmul.mubr.f32.gmra.mrb[0].mxu0 %v4482
          %v4656 = vpop.f32.mrb[0].mxu0
          %v4657 = vadd.f32 %v4541, %v4656
          %v4658 = vpop.f32.mrb[0].mxu0
          %4659 = vmatprep.mubr.f32.mxu0 0.0
          %4660 = vmatmul.mubr.f32.gmra.mrb[0].mxu0 %v4483
          %v4661 = vpop.f32.mrb[0].mxu0
          %v4662 = vpop.f32.mrb[0].mxu0
          %4663 = vmatprep.mubr.f32.mxu0 0.0
          %4664 = vmatmul.mubr.f32.gmra.mrb[0].mxu0 %v4484
          %v4665 = vpop.f32.mrb[0].mxu0
          %v4666 = vadd.f32 %v4541, %v4665
          %v4667 = vpop.f32.mrb[0].mxu0
          %4668 = vmatprep.mubr.f32.mxu0 0.0
          %4669 = vmatmul.mubr.f32.gmra.mrb[0].mxu0 %v4485
          %v4670 = vpop.f32.mrb[0].mxu0
          %v4671 = vadd.f32 %v4541, %v4670
          %v4672 = vpop.f32.mrb[0].mxu0
          %4673 = vmatprep.mubr.f32.mxu0 0.0
          %4674 = vmatmul.mubr.f32.gmra.mrb[0].mxu0 %v4486
          %v4675 = vpop.f32.mrb[0].mxu0
          %v4676 = vpop.f32.mrb[0].mxu0
          %4677 = vmatprep.mubr.f32.mxu0 0.0
          %4678 = vmatmul.mubr.f32.gmra.mrb[0].mxu0 %v4487
          %v4679 = vpop.f32.mrb[0].mxu0
          %v4680 = vadd.f32 %v4541, %v4679
          %v4681 = vpop.f32.mrb[0].mxu0
          %4682 = vmatprep.mubr.f32.mxu0 0.0
          %4683 = vmatmul.mubr.f32.gmra.mrb[0].mxu0 %v4488
          %v4684 = vpop.f32.mrb[0].mxu0
          %v4685 = vadd.f32 %v4541, %v4684
          %v4686 = vpop.f32.mrb[0].mxu0
          %4687 = vmatprep.mubr.f32.mxu0 0.0
          %4688 = vmatmul.mubr.f32.gmra.mrb[0].mxu0 %v4489
          %v4689 = vpop.f32.mrb[0].mxu0
          %v4690 = vpop.f32.mrb[0].mxu0
          %4691 = vmatprep.mubr.f32.mxu0 0.0
          %4692 = vmatmul.mubr.f32.gmra.mrb[0].mxu0 %v4490
          %v4693 = vpop.f32.mrb[0].mxu0
          %v4694 = vadd.f32 %v4541, %v4693
          %v4695 = vpop.f32.mrb[0].mxu0
          %4696 = vmatprep.mubr.f32.mxu0 0.0
          %4697 = vmatmul.mubr.f32.gmra.mrb[0].mxu0 %v4491
          %v4698 = vpop.f32.mrb[0].mxu0
          %v4699 = vadd.f32 %v4541, %v4698
          %v4700 = vpop.f32.mrb[0].mxu0
          %4701 = vmatprep.mubr.f32.mxu0 0.0
          %4702 = vmatmul.mubr.f32.gmra.mrb[0].mxu0 %v4492
          %v4703 = vpop.f32.mrb[0].mxu0
          %v4704 = vpop.f32.mrb[0].mxu0
          %4705 = vmatprep.mubr.f32.mxu0 0.0
          %4706 = vmatmul.mubr.f32.gmra.mrb[0].mxu0 %v4493
          %v4707 = vpop.f32.mrb[0].mxu0
          %v4708 = vadd.f32 %v4541, %v4707
          %v4709 = vpop.f32.mrb[0].mxu0
          %4710 = vmatprep.mubr.f32.mxu0 0.0
          %4711 = vmatmul.mubr.f32.gmra.mrb[0].mxu0 %v4494
          %v4712 = vpop.f32.mrb[0].mxu0
          %v4713 = vadd.f32 %v4541, %v4712
          %v4714 = vpop.f32.mrb[0].mxu0
          %4715 = vmatprep.mubr.f32.mxu0 0.0
          %4716 = vmatmul.mubr.f32.gmra.mrb[0].mxu0 %v4495
          %v4717 = vpop.f32.mrb[0].mxu0
          %v4718 = vpop.f32.mrb[0].mxu0
          %4719 = vmatprep.mubr.f32.mxu0 0.0
          %4720 = vmatmul.mubr.f32.gmra.mrb[0].mxu0 %v4496
          %v4721 = vpop.f32.mrb[0].mxu0
          %v4722 = vadd.f32 %v4541, %v4721
          %v4723 = vpop.f32.mrb[0].mxu0
          %4724 = vmatprep.mubr.f32.mxu0 0.0
          %4725 = vmatmul.mubr.f32.gmra.mrb[0].mxu0 %v4497
          %v4726 = vpop.f32.mrb[0].mxu0
          %v4727 = vadd.f32 %v4541, %v4726
          %v4728 = vpop.f32.mrb[0].mxu0
          %4729 = vmatprep.mubr.f32.mxu0 0.0
          %4730 = vmatmul.mubr.f32.gmra.mrb[0].mxu0 %v4498
          %v4731 = vpop.f32.mrb[0].mxu0
          %v4732 = vpop.f32.mrb[0].mxu0
          %4733 = vmatprep.mubr.f32.mxu0 0.0
          %4734 = vmatmul.mubr.f32.gmra.mrb[0].mxu0 %v4499
          %v4735 = vpop.f32.mrb[0].mxu0
          %v4736 = vadd.f32 %v4541, %v4735
          %v4737 = vpop.f32.mrb[0].mxu0
          %4738 = vmatprep.mubr.f32.mxu0 0.0
          %4739 = vmatmul.mubr.f32.gmra.mrb[0].mxu0 %v4500
          %v4740 = vpop.f32.mrb[0].mxu0
          %v4741 = vadd.f32 %v4541, %v4740
          %v4742 = vpop.f32.mrb[0].mxu0
          %4743 = vmatprep.mubr.f32.mxu0 0.0
          %4744 = vmatmul.mubr.f32.gmra.mrb[0].mxu0 %v4501
          %v4745 = vpop.f32.mrb[0].mxu0
          %v4746 = vpop.f32.mrb[0].mxu0
          %4747 = vmatprep.mubr.f32.mxu0 0.0
          %4748 = vmatmul.mubr.f32.gmra.mrb[0].mxu0 %v4502
          %v4749 = vpop.f32.mrb[0].mxu0
          %v4750 = vadd.f32 %v4541, %v4749
          %v4751 = vpop.f32.mrb[0].mxu0
          %4752 = vmatprep.mubr.f32.mxu0 0.0
          %4753 = vmatmul.mubr.f32.gmra.mrb[0].mxu0 %v4503
          %v4754 = vpop.f32.mrb[0].mxu0
          %v4755 = vadd.f32 %v4541, %v4754
          %v4756 = vpop.f32.mrb[0].mxu0
          %4757 = vmatprep.mubr.f32.mxu0 0.0
          %4758 = vmatmul.mubr.f32.gmra.mrb[0].mxu0 %v4504
          %v4759 = vpop.f32.mrb[0].mxu0
          %v4760 = vpop.f32.mrb[0].mxu0
          %4761 = vmatprep.mubr.f32.mxu0 0.0
          %4762 = vmatmul.mubr.f32.gmra.mrb[0].mxu0 %v4505
          %v4763 = vpop.f32.mrb[0].mxu0
          %v4764 = vadd.f32 %v4541, %v4763
          %v4765 = vpop.f32.mrb[0].mxu0
          %4766 = vmatprep.mubr.f32.mxu0 0.0
          %4767 = vmatmul.mubr.f32.gmra.mrb[0].mxu0 %v4506
          %v4768 = vpop.f32.mrb[0].mxu0
          %v4769 = vadd.f32 %v4541, %v4768
          %v4770 = vpop.f32.mrb[0].mxu0
          %4771 = vmatprep.mubr.f32.mxu0 0.0
          %4772 = vmatmul.mubr.f32.gmra.mrb[0].mxu0 %v4507
          %v4773 = vpop.f32.mrb[0].mxu0
          %v4774 = vpop.f32.mrb[0].mxu0
          %4775 = vmatprep.mubr.f32.mxu0 0.0
          %4776 = vmatmul.mubr.f32.gmra.mrb[0].mxu0 %v4508
          %v4777 = vpop.f32.mrb[0].mxu0
          %v4778 = vadd.f32 %v4541, %v4777
          %v4779 = vpop.f32.mrb[0].mxu0
          %4780 = vmatprep.mubr.f32.mxu0 0.0
          %4781 = vmatmul.mubr.f32.gmra.mrb[0].mxu0 %v4509
          %v4782 = vpop.f32.mrb[0].mxu0
          %v4783 = vadd.f32 %v4541, %v4782
          %v4784 = vpop.f32.mrb[0].mxu0
          %4785 = vmatprep.mubr.f32.mxu0 0.0
          %4786 = vmatmul.mubr.f32.gmra.mrb[0].mxu0 %v4510
          %v4787 = vpop.f32.mrb[0].mxu0
          %v4788 = vpop.f32.mrb[0].mxu0
          %4789 = vmatprep.mubr.f32.mxu0 0.0
          %4790 = vmatmul.mubr.f32.gmra.mrb[0].mxu0 %v4511
          %v4791 = vpop.f32.mrb[0].mxu0
          %v4792 = vadd.f32 %v4541, %v4791
          %v4793 = vpop.f32.mrb[0].mxu0
          %4794 = vmatprep.mubr.f32.mxu0 0.0
          %4795 = vmatmul.mubr.f32.gmra.mrb[0].mxu0 %v4512
          %v4796 = vpop.f32.mrb[0].mxu0
          %v4797 = vadd.f32 %v4541, %v4796
          %v4798 = vpop.f32.mrb[0].mxu0
          %4799 = vmatprep.mubr.f32.mxu0 0.0
          %4800 = vmatmul.mubr.f32.gmra.mrb[0].mxu0 %v4513
          %v4801 = vpop.f32.mrb[0].mxu0
          %v4802 = vpop.f32.mrb[0].mxu0
          %4803 = vmatprep.mubr.f32.mxu0 0.0
          %4804 = vmatmul.mubr.f32.gmra.mrb[0].mxu0 %v4514
          %v4805 = vpop.f32.mrb[0].mxu0
          %v4806 = vadd.f32 %v4541, %v4805
          %v4807 = vpop.f32.mrb[0].mxu0
          %4808 = vmatprep.mubr.f32.mxu0 0.0
          %4809 = vmatmul.mubr.f32.gmra.mrb[0].mxu0 %v4515
          %v4810 = vpop.f32.mrb[0].mxu0
          %v4811 = vadd.f32 %v4541, %v4810
          %v4812 = vpop.f32.mrb[0].mxu0
          %4813 = vmatprep.mubr.f32.mxu0 0.0
          %4814 = vmatmul.mubr.f32.gmra.mrb[0].mxu0 %v4516
          %v4815 = vpop.f32.mrb[0].mxu0
          %v4816 = vpop.f32.mrb[0].mxu0
          %4817 = vmatprep.mubr.f32.mxu0 0.0
          %4818 = vmatmul.mubr.f32.gmra.mrb[0].mxu0 %v4517
          %v4819 = vpop.f32.mrb[0].mxu0
          %v4820 = vadd.f32 %v4541, %v4819
          %v4821 = vpop.f32.mrb[0].mxu0
          %4822 = vmatprep.mubr.f32.mxu0 0.0
          %4823 = vmatmul.mubr.f32.gmra.mrb[0].mxu0 %v4518
          %v4824 = vpop.f32.mrb[0].mxu0
          %v4825 = vadd.f32 %v4541, %v4824
          %v4826 = vpop.f32.mrb[0].mxu0
          %4827 = vmatprep.mubr.f32.mxu0 0.0
          %4828 = vmatmul.mubr.f32.gmra.mrb[0].mxu0 %v4519
          %v4829 = vpop.f32.mrb[0].mxu0
          %v4830 = vpop.f32.mrb[0].mxu0
          %4831 = vdwg.mxu0
          %v4832 = vmul.f32 %v4610, %v4610
          %v4833 = vmul.f32 %v4615, %v4615
          %v4834 = vmul.f32 %v4624, %v4624
          %v4835 = vmul.f32 %v4629, %v4629
          %v4836 = vmul.f32 %v4638, %v4638
          %v4837 = vmul.f32 %v4643, %v4643
          %v4838 = vmul.f32 %v4652, %v4652
          %v4839 = vmul.f32 %v4657, %v4657
          %v4840 = vmul.f32 %v4666, %v4666
          %v4841 = vmul.f32 %v4671, %v4671
          %v4842 = vmul.f32 %v4680, %v4680
          %v4843 = vmul.f32 %v4685, %v4685
          %v4844 = vmul.f32 %v4694, %v4694
          %v4845 = vmul.f32 %v4699, %v4699
          %v4846 = vmul.f32 %v4708, %v4708
          %v4847 = vmul.f32 %v4713, %v4713
          %v4848 = vmul.f32 %v4722, %v4722
          %v4849 = vmul.f32 %v4727, %v4727
          %v4850 = vmul.f32 %v4736, %v4736
          %v4851 = vmul.f32 %v4741, %v4741
          %v4852 = vmul.f32 %v4750, %v4750
          %v4853 = vmul.f32 %v4755, %v4755
          %v4854 = vmul.f32 %v4764, %v4764
          %v4855 = vmul.f32 %v4769, %v4769
          %v4856 = vmul.f32 %v4778, %v4778
          %v4857 = vmul.f32 %v4783, %v4783
          %v4858 = vmul.f32 %v4792, %v4792
          %v4859 = vmul.f32 %v4797, %v4797
          %v4860 = vmul.f32 %v4806, %v4806
          %v4861 = vmul.f32 %v4811, %v4811
          %v4862 = vmul.f32 %v4820, %v4820
          %v4863 = vmul.f32 %v4825, %v4825
          %4864 = vadd.xlane.f32.xlu0 %v4832
          %v4865 = vpop.xlane.xlu0 %4864
          %4866 = vadd.xlane.f32.xlu0 %v4833
          %v4867 = vpop.xlane.xlu0 %4866
          %4868 = vadd.xlane.f32.xlu0 %v4834
          %v4869 = vpop.xlane.xlu0 %4868
          %4870 = vadd.xlane.f32.xlu0 %v4835
          %v4871 = vpop.xlane.xlu0 %4870
          %4872 = vadd.xlane.f32.xlu0 %v4836
          %v4873 = vpop.xlane.xlu0 %4872
          %4874 = vadd.xlane.f32.xlu0 %v4837
          %v4875 = vpop.xlane.xlu0 %4874
          %4876 = vadd.xlane.f32.xlu0 %v4838
          %v4877 = vpop.xlane.xlu0 %4876
          %4878 = vadd.xlane.f32.xlu0 %v4839
          %v4879 = vpop.xlane.xlu0 %4878
          %4880 = vadd.xlane.f32.xlu0 %v4840
          %v4881 = vpop.xlane.xlu0 %4880
          %4882 = vadd.xlane.f32.xlu0 %v4841
          %v4883 = vpop.xlane.xlu0 %4882
          %4884 = vadd.xlane.f32.xlu0 %v4842
          %v4885 = vpop.xlane.xlu0 %4884
          %4886 = vadd.xlane.f32.xlu0 %v4843
          %v4887 = vpop.xlane.xlu0 %4886
          %4888 = vadd.xlane.f32.xlu0 %v4844
          %v4889 = vpop.xlane.xlu0 %4888
          %4890 = vadd.xlane.f32.xlu0 %v4845
          %v4891 = vpop.xlane.xlu0 %4890
          %4892 = vadd.xlane.f32.xlu0 %v4846
          %v4893 = vpop.xlane.xlu0 %4892
          %4894 = vadd.xlane.f32.xlu0 %v4847
          %v4895 = vpop.xlane.xlu0 %4894
          %4896 = vadd.xlane.f32.xlu0 %v4848
          %v4897 = vpop.xlane.xlu0 %4896
          %4898 = vadd.xlane.f32.xlu0 %v4849
          %v4899 = vpop.xlane.xlu0 %4898
          %4900 = vadd.xlane.f32.xlu0 %v4850
          %v4901 = vpop.xlane.xlu0 %4900
          %4902 = vadd.xlane.f32.xlu0 %v4851
          %v4903 = vpop.xlane.xlu0 %4902
          %4904 = vadd.xlane.f32.xlu0 %v4852
          %v4905 = vpop.xlane.xlu0 %4904
          %4906 = vadd.xlane.f32.xlu0 %v4853
          %v4907 = vpop.xlane.xlu0 %4906
          %4908 = vadd.xlane.f32.xlu0 %v4854
          %v4909 = vpop.xlane.xlu0 %4908
          %4910 = vadd.xlane.f32.xlu0 %v4855
          %v4911 = vpop.xlane.xlu0 %4910
          %4912 = vadd.xlane.f32.xlu0 %v4856
          %v4913 = vpop.xlane.xlu0 %4912
          %4914 = vadd.xlane.f32.xlu0 %v4857
          %v4915 = vpop.xlane.xlu0 %4914
          %4916 = vadd.xlane.f32.xlu0 %v4858
          %v4917 = vpop.xlane.xlu0 %4916
          %4918 = vadd.xlane.f32.xlu0 %v4859
          %v4919 = vpop.xlane.xlu0 %4918
          %4920 = vadd.xlane.f32.xlu0 %v4860
          %v4921 = vpop.xlane.xlu0 %4920
          %4922 = vadd.xlane.f32.xlu0 %v4861
          %v4923 = vpop.xlane.xlu0 %4922
          %4924 = vadd.xlane.f32.xlu0 %v4862
          %v4925 = vpop.xlane.xlu0 %4924
          %4926 = vadd.xlane.f32.xlu0 %v4863
          %v4927 = vpop.xlane.xlu0 %4926
          %v4928 = vadd.f32 %v4865, 1e-12
          %v4929 = vadd.f32 %v4867, 1e-12
          %v4930 = vadd.f32 %v4869, 1e-12
          %v4931 = vadd.f32 %v4871, 1e-12
          %v4932 = vadd.f32 %v4873, 1e-12
          %v4933 = vadd.f32 %v4875, 1e-12
          %v4934 = vadd.f32 %v4877, 1e-12
          %v4935 = vadd.f32 %v4879, 1e-12
          %v4936 = vadd.f32 %v4881, 1e-12
          %v4937 = vadd.f32 %v4883, 1e-12
          %v4938 = vadd.f32 %v4885, 1e-12
          %v4939 = vadd.f32 %v4887, 1e-12
          %v4940 = vadd.f32 %v4889, 1e-12
          %v4941 = vadd.f32 %v4891, 1e-12
          %v4942 = vadd.f32 %v4893, 1e-12
          %v4943 = vadd.f32 %v4895, 1e-12
          %v4944 = vadd.f32 %v4897, 1e-12
          %v4945 = vadd.f32 %v4899, 1e-12
          %v4946 = vadd.f32 %v4901, 1e-12
          %v4947 = vadd.f32 %v4903, 1e-12
          %v4948 = vadd.f32 %v4905, 1e-12
          %v4949 = vadd.f32 %v4907, 1e-12
          %v4950 = vadd.f32 %v4909, 1e-12
          %v4951 = vadd.f32 %v4911, 1e-12
          %v4952 = vadd.f32 %v4913, 1e-12
          %v4953 = vadd.f32 %v4915, 1e-12
          %v4954 = vadd.f32 %v4917, 1e-12
          %v4955 = vadd.f32 %v4919, 1e-12
          %v4956 = vadd.f32 %v4921, 1e-12
          %v4957 = vadd.f32 %v4923, 1e-12
          %v4958 = vadd.f32 %v4925, 1e-12
          %v4959 = vadd.f32 %v4927, 1e-12
          %v4960 = vrsqrt.pop %v4928
          %v4961 = vrsqrt.pop %v4929
          %v4962 = vrsqrt.pop %v4930
          %v4963 = vrsqrt.pop %v4931
          %v4964 = vrsqrt.pop %v4932
          %v4965 = vrsqrt.pop %v4933
          %v4966 = vrsqrt.pop %v4934
          %v4967 = vrsqrt.pop %v4935
          %v4968 = vrsqrt.pop %v4936
          %v4969 = vrsqrt.pop %v4937
          %v4970 = vrsqrt.pop %v4938
          %v4971 = vrsqrt.pop %v4939
          %v4972 = vrsqrt.pop %v4940
          %v4973 = vrsqrt.pop %v4941
          %v4974 = vrsqrt.pop %v4942
          %v4975 = vrsqrt.pop %v4943
          %v4976 = vrsqrt.pop %v4944
          %v4977 = vrsqrt.pop %v4945
          %v4978 = vrsqrt.pop %v4946
          %v4979 = vrsqrt.pop %v4947
          %v4980 = vrsqrt.pop %v4948
          %v4981 = vrsqrt.pop %v4949
          %v4982 = vrsqrt.pop %v4950
          %v4983 = vrsqrt.pop %v4951
          %v4984 = vrsqrt.pop %v4952
          %v4985 = vrsqrt.pop %v4953
          %v4986 = vrsqrt.pop %v4954
          %v4987 = vrsqrt.pop %v4955
          %v4988 = vrsqrt.pop %v4956
          %v4989 = vrsqrt.pop %v4957
          %v4990 = vrsqrt.pop %v4958
          %v4991 = vrsqrt.pop %v4959
          %v4992 = vmul.f32 %v4610, %v4960
          %v4993 = vmul.f32 %v4615, %v4961
          %v4994 = vmul.f32 %v4624, %v4962
          %v4995 = vmul.f32 %v4629, %v4963
          %v4996 = vmul.f32 %v4638, %v4964
          %v4997 = vmul.f32 %v4643, %v4965
          %v4998 = vmul.f32 %v4652, %v4966
          %v4999 = vmul.f32 %v4657, %v4967
          %v5000 = vmul.f32 %v4666, %v4968
          %v5001 = vmul.f32 %v4671, %v4969
          %v5002 = vmul.f32 %v4680, %v4970
          %v5003 = vmul.f32 %v4685, %v4971
          %v5004 = vmul.f32 %v4694, %v4972
          %v5005 = vmul.f32 %v4699, %v4973
          %v5006 = vmul.f32 %v4708, %v4974
          %v5007 = vmul.f32 %v4713, %v4975
          %v5008 = vmul.f32 %v4722, %v4976
          %v5009 = vmul.f32 %v4727, %v4977
          %v5010 = vmul.f32 %v4736, %v4978
          %v5011 = vmul.f32 %v4741, %v4979
          %v5012 = vmul.f32 %v4750, %v4980
          %v5013 = vmul.f32 %v4755, %v4981
          %v5014 = vmul.f32 %v4764, %v4982
          %v5015 = vmul.f32 %v4769, %v4983
          %v5016 = vmul.f32 %v4778, %v4984
          %v5017 = vmul.f32 %v4783, %v4985
          %v5018 = vmul.f32 %v4792, %v4986
          %v5019 = vmul.f32 %v4797, %v4987
          %v5020 = vmul.f32 %v4806, %v4988
          %v5021 = vmul.f32 %v4811, %v4989
          %v5022 = vmul.f32 %v4820, %v4990
          %v5023 = vmul.f32 %v4825, %v4991
          %5024 = vst [vmem:[%s468] sm:$0xff] %v4992
          %5025 = vst [vmem:[%s468 + $0x8] sm:$0xff] %v4993
          %5026 = vst [vmem:[%s468 + $0x10] sm:$0xff] %v4994
          %5027 = vst [vmem:[%s468 + $0x18] sm:$0xff] %v4995
          %5028 = vst [vmem:[%s468 + $0x20] sm:$0xff] %v4996
          %5029 = vst [vmem:[%s468 + $0x28] sm:$0xff] %v4997
          %5030 = vst [vmem:[%s468 + $0x30] sm:$0xff] %v4998
          %5031 = vst [vmem:[%s468 + $0x38] sm:$0xff] %v4999
          %5032 = vst [vmem:[%s468 + $0x40] sm:$0xff] %v5000
          %5033 = vst [vmem:[%s468 + $0x48] sm:$0xff] %v5001
          %5034 = vst [vmem:[%s468 + $0x50] sm:$0xff] %v5002
          %5035 = vst [vmem:[%s468 + $0x58] sm:$0xff] %v5003
          %5036 = vst [vmem:[%s468 + $0x60] sm:$0xff] %v5004
          %5037 = vst [vmem:[%s468 + $0x68] sm:$0xff] %v5005
          %5038 = vst [vmem:[%s468 + $0x70] sm:$0xff] %v5006
          %5039 = vst [vmem:[%s468 + $0x78] sm:$0xff] %v5007
          %5040 = vst [vmem:[%s468 + $0x80] sm:$0xff] %v5008
          %5041 = vst [vmem:[%s468 + $0x88] sm:$0xff] %v5009
          %5042 = vst [vmem:[%s468 + $0x90] sm:$0xff] %v5010
          %5043 = vst [vmem:[%s468 + $0x98] sm:$0xff] %v5011
          %5044 = vst [vmem:[%s468 + $0xa0] sm:$0xff] %v5012
          %5045 = vst [vmem:[%s468 + $0xa8] sm:$0xff] %v5013
          %5046 = vst [vmem:[%s468 + $0xb0] sm:$0xff] %v5014
          %5047 = vst [vmem:[%s468 + $0xb8] sm:$0xff] %v5015
          %5048 = vst [vmem:[%s468 + $0xc0] sm:$0xff] %v5016
          %5049 = vst [vmem:[%s468 + $0xc8] sm:$0xff] %v5017
          %5050 = vst [vmem:[%s468 + $0xd0] sm:$0xff] %v5018
          %5051 = vst [vmem:[%s468 + $0xd8] sm:$0xff] %v5019
          %5052 = vst [vmem:[%s468 + $0xe0] sm:$0xff] %v5020
          %5053 = vst [vmem:[%s468 + $0xe8] sm:$0xff] %v5021
          %5054 = vst [vmem:[%s468 + $0xf0] sm:$0xff] %v5022
          %5055 = vst [vmem:[%s468 + $0xf8] sm:$0xff] %v5023
        $region84: #{tpu_custom_call.1} parent=47 // pred_fallthru
          _
        %s5056 = sand.u32 %s213, 1
        %s5057 = scalar_lea.sflag [#allocation5], %s5056
        %s5058 = sand.u32 %s213, 1
        %s5059 = smul.addr %s5058, 256
        %s5060 = scalar_lea.vmem [#allocation15], %s5059
        // Predicated region
        $region85: #{tpu_custom_call.1} parent=47 // pred_check
          %p5061 = pneg %p223
        $region86: #{tpu_custom_call.1} parent=47 // pred_check_branch
          %5063 = sbr.rel (%p5061) target = $region88
        $region87: #{tpu_custom_call.1} parent=47 // pred_region
          %s5065 = ssub.s32 4096, 4096
          %5066 = vsyncadd %s5057, %s5065
          %s5067 = smul.addr %s33, 32
          %s5068 = smul.addr %s5067, 128
          %s5069 = scalar_lea.hbm %s7, %s5068
          %s5070 = sshll.u32 %s5060, 4
          %s5071 = int_to_ptr.vmem [resolvable:$true] %s5070
          %5076 = dma.vmem_to_hbm [thread:$0]  %s5071, 4096, %s5069, %s5057, 128, 128, 8
        $region88: #{tpu_custom_call.1} parent=47 // pred_fallthru
          _
      $region48: #{tpu_custom_call.1} parent=5 // pred_fallthru
        _
      %p5077 = scmp.le.s32.totalorder 2, %s24
      // Predicated region
      $region89: #{tpu_custom_call.1} parent=5 // pred_check
        %p5078 = pneg %p5077
      $region90: #{tpu_custom_call.1} parent=5 // pred_check_branch
        %5080 = sbr.rel (%p5078) target = $region92
      $region91: #{tpu_custom_call.1} parent=5 // pred_region
        %s5081 = ssub.s32 %s24, 2
        // Predicated region
        $region93: #{tpu_custom_call.1} parent=91 // pred_check
          %p5082 = pneg %p229
        $region94: #{tpu_custom_call.1} parent=91 // pred_check_branch
          %5084 = sbr.rel (%p5082) target = $region96
        $region95: #{tpu_custom_call.1} parent=91 // pred_region
          %s5085 = sand.u32 %s214, 1
          %s5086 = scalar_lea.sflag [#allocation5], %s5085
          %s5087 = sand.u32 %s214, 1
          %s5088 = smul.addr %s5087, 256
          %s5089 = scalar_lea.vmem [#allocation15], %s5088
          %5090 = dma.done %s5086, 4096
        $region96: #{tpu_custom_call.1} parent=91 // pred_fallthru
          _
      $region92: #{tpu_custom_call.1} parent=5 // pred_fallthru
        _
    $region6: #{tpu_custom_call.1} parent=1 // loop_footer
      %s28 = sadd.s32 1, %s24
    $region7: #{tpu_custom_call.1} parent=1 // loop_footer_branch
      %23 = sbr.rel target = $region3
    $region8: #{tpu_custom_call.1} parent=1 // loop_exit
      _
    %5091 = vsyncpa [#allocation4], 1
    %s5092 = scalar_lea.sflag [#allocation4], 1
    %5093 = vsyncpa %s5092, 1
    %5094 = vsyncpa [#allocation7], 1
    %s5095 = scalar_lea.sflag [#allocation7], 1
    %5096 = vsyncpa %s5095, 1
    %5097 = vsyncpa [#allocation10], 1
    %5098 = vsyncpa [#allocation13], 1
    %5099 = vsyncpa [#allocation5], 1
    %s5100 = scalar_lea.sflag [#allocation5], 1
    %5101 = vsyncpa %s5100, 1

</llo_original>
